<compile_context>
chip_gen: v5e
topology: v5e:2x2
jax: 0.10.0
libtpu: 0.0.40
codegen_flags: <defaults>
</compile_context>

<pallas_src>
import jax
import jax.numpy as jnp
from jax.experimental import pallas as pl
from jax.experimental.pallas import tpu as pltpu

# ----------------------------- sizes -----------------------------------------
B = 128                       # batch (multiple of TM so every tile is full)
TM = 64                       # batch tile (rows per grid step, multiple of 8)
IMG_C, IMG_H, IMG_W = 3, 16, 16
IMG_FLAT = IMG_C * IMG_H * IMG_W          # 768
QST_LEN = 8
VOCAB = 1000
F_IMG = 512                   # stand-in for VGG19 classifier[-1].in_features
F_QST = 768                   # BERT hidden size (pooled output dim)
EMBED = 128                   # embed_size
H1, H2 = 256, 64              # classifier hidden sizes
LABELS = 16                   # num_labels
OUT_PAD = 128                 # lane-dense classifier output width
EPS = 1e-12                   # F.normalize-style epsilon

# packed-bias layout (all offsets are multiples of 128 -> lane aligned)
B_IMG_OFF = 0
B_QST_OFF = EMBED
B_H1_OFF = 2 * EMBED
B_OUT_OFF = 2 * EMBED + H1
BIAS_LEN = 2 * EMBED + H1 + OUT_PAD       # 640


# ------------------------------------ Pallas kernel ---------------------------
def vqa_kernel(img_flat_ref, qst_feat_ref, p_img_ref, w_img_ref, w_qst_ref,
               w1_ref, w23_ref, bias_ref, out_ref):
    # Frozen VGG19 stand-in projection (fused) -> (TM, F_IMG) features in f32.
    f_img = jnp.tanh(jnp.dot(img_flat_ref[...], p_img_ref[...],
                             preferred_element_type=jnp.float32))

    # ImgEncoder.fc + L2 normalization over the feature dim (keepdim).
    img_e = jnp.dot(f_img.astype(jnp.bfloat16), w_img_ref[...],
                    preferred_element_type=jnp.float32)
    img_e = img_e + bias_ref[:, B_IMG_OFF:B_QST_OFF]
    inv_norm = jax.lax.rsqrt(jnp.sum(img_e * img_e, axis=1, keepdims=True) + EPS)
    img_e = img_e * inv_norm

    # QstEncoder_ptm.fc on the (stand-in) pooled BERT output.
    qst_e = jnp.dot(qst_feat_ref[...], w_qst_ref[...],
                    preferred_element_type=jnp.float32)
    qst_e = qst_e + bias_ref[:, B_QST_OFF:B_H1_OFF]

    # _fusion_element_wise
    fused = img_e * qst_e

    # classifier: Tanh -> Linear(E,256) -> Tanh -> [Linear(256,64) -> Dropout
    # (eval identity) -> Linear(64,labels)] folded offline into w23/b23.
    h = jnp.dot(jnp.tanh(fused).astype(jnp.bfloat16), w1_ref[...],
                preferred_element_type=jnp.float32)
    h = h + bias_ref[:, B_H1_OFF:B_OUT_OFF]
    # TODO(synk): Dropout(0.5) uses inference (eval) semantics -> identity,
    # which is what makes the w2@w3 fold valid; training-mode masking omitted.
    out = jnp.dot(jnp.tanh(h).astype(jnp.bfloat16), w23_ref[...],
                  preferred_element_type=jnp.float32)
    out = out + bias_ref[:, B_OUT_OFF:]
    out_ref[...] = out.astype(out_ref.dtype)          # lane-dense (TM, 128) store


# ------------------------------------ wrapper ---------------------------------
@jax.jit
def vqa_forward(img_flat, qst_feat, params):
    """Batched VQA forward: grid over batch tiles, weights VMEM-resident."""
    p_img, w_img, w_qst, w1, w23, biases = params
    grid = (B // TM,)
    out_pad = pl.pallas_call(
        vqa_kernel,
        out_shape=jax.ShapeDtypeStruct((B, OUT_PAD), jnp.float32),
        grid_spec=pltpu.PrefetchScalarGridSpec(
            num_scalar_prefetch=0,
            grid=grid,
            in_specs=[
                pl.BlockSpec((TM, IMG_FLAT), lambda i: (i, 0)),   # img feature tile
                pl.BlockSpec((TM, F_QST),    lambda i: (i, 0)),   # qst feature tile
                pl.BlockSpec((IMG_FLAT, F_IMG), lambda i: (0, 0)),  # resident weights
                pl.BlockSpec((F_IMG, EMBED),    lambda i: (0, 0)),
                pl.BlockSpec((F_QST, EMBED),    lambda i: (0, 0)),
                pl.BlockSpec((EMBED, H1),       lambda i: (0, 0)),
                pl.BlockSpec((H1, OUT_PAD),     lambda i: (0, 0)),
                pl.BlockSpec((1, BIAS_LEN),     lambda i: (0, 0)),  # packed biases
            ],
            out_specs=pl.BlockSpec((TM, OUT_PAD), lambda i: (i, 0)),
        ),
        compiler_params=pltpu.CompilerParams(
            dimension_semantics=("parallel",)),
    )(img_flat, qst_feat, p_img, w_img, w_qst, w1, w23, biases)
    return out_pad[:, :LABELS]


# ------------------------------------------------- parameters -----------------
def init_params(key):
    ks = jax.random.split(key, 6)

    def lin(kw, fan_in, fan_out):
        s = 1.0 / jnp.sqrt(jnp.float32(fan_in))
        kw1, kw2 = jax.random.split(kw)
        w = jax.random.uniform(kw1, (fan_in, fan_out), jnp.float32, -s, s)
        b = jax.random.uniform(kw2, (1, fan_out), jnp.float32, -s, s)
        return w, b

    # frozen image-backbone stand-in projection (fused into the kernel)
    p_img = jax.random.normal(ks[0], (IMG_FLAT, F_IMG), jnp.float32) * 0.05
    w_img, b_img = lin(ks[1], F_IMG, EMBED)      # ImgEncoder.fc
    w_qst, b_qst = lin(ks[2], F_QST, EMBED)      # QstEncoder_ptm.fc
    w1, b1 = lin(ks[3], EMBED, H1)               # classifier Linear(embed, 256)
    w2, b2 = lin(ks[4], H1, H2)                  # classifier Linear(256, 64)
    w3, b3 = lin(ks[5], H2, LABELS)              # classifier Linear(64, labels)

    # eval-mode fold across the Dropout: Linear(256,64) @ Linear(64,labels)
    w23 = w2 @ w3                                # (H1, LABELS)
    b23 = b2 @ w3 + b3                           # (1, LABELS)
    # pad classifier output to 128 lanes -> unmasked (lane-dense) stores
    w23 = jnp.pad(w23, ((0, 0), (0, OUT_PAD - LABELS)))
    b23 = jnp.pad(b23, ((0, 0), (0, OUT_PAD - LABELS)))

    biases = jnp.concatenate([b_img, b_qst, b1, b23], axis=1)   # (1, 640) f32
    bf16 = lambda w: w.astype(jnp.bfloat16)
    return (bf16(p_img), bf16(w_img), bf16(w_qst), bf16(w1), bf16(w23), biases)


def stub_backbones(key, img, qst_ids):
    """Deterministic stand-ins for the frozen pretrained backbones.
    TODO(synk): VGG19 (IMAGENET1K_V1) and bert-base-uncased are pretrained
    checkpoints with no in-script equivalent; the image backbone is a fixed
    random projection (fused into the Pallas kernel via p_img) and BERT is an
    embedding mean-pool producing a pooled (B, 768) feature."""
    tok_emb = jax.random.normal(key, (VOCAB, F_QST), jnp.float32) * 0.05
    img_flat = img.astype(jnp.float32).reshape(img.shape[0], -1)        # img.float()
    qst_pool = jnp.tanh(jnp.mean(jnp.take(tok_emb, qst_ids, axis=0), axis=1))
    return img_flat.astype(jnp.bfloat16), qst_pool.astype(jnp.bfloat16)


# ------------------------------------------------- pure-JAX reference ---------
def vqa_reference(img_flat, qst_feat, params):
    p_img, w_img, w_qst, w1, w23, biases = params
    b_img = biases[:, B_IMG_OFF:B_QST_OFF]
    b_qst = biases[:, B_QST_OFF:B_H1_OFF]
    b1 = biases[:, B_H1_OFF:B_OUT_OFF]
    b23 = biases[:, B_OUT_OFF:]
    dot = lambda a, b: jnp.dot(a, b, preferred_element_type=jnp.float32)
    f_img = jnp.tanh(dot(img_flat, p_img))
    img_e = dot(f_img.astype(jnp.bfloat16), w_img) + b_img
    img_e = img_e * jax.lax.rsqrt(jnp.sum(img_e * img_e, axis=1, keepdims=True) + EPS)
    qst_e = dot(qst_feat, w_qst) + b_qst
    fused = img_e * qst_e
    h = dot(jnp.tanh(fused).astype(jnp.bfloat16), w1) + b1
    out = dot(jnp.tanh(h).astype(jnp.bfloat16), w23) + b23
    return out[:, :LABELS]


if __name__ == "__main__":
    key = jax.random.PRNGKey(0)
    k_img, k_qst, k_bb, k_par = jax.random.split(key, 4)

    img = jax.random.normal(k_img, (B, IMG_C, IMG_H, IMG_W), jnp.float32)  # NCHW
    qst_ids = jax.random.randint(k_qst, (B, QST_LEN), 0, VOCAB, jnp.int32)

    img_flat, qst_feat = stub_backbones(k_bb, img, qst_ids)
    params = init_params(k_par)

    out = vqa_forward(img_flat, qst_feat, params)
    jax.block_until_ready(out)

    ref = vqa_reference(img_flat, qst_feat, params)
    assert out.shape == (B, LABELS)
    assert bool(jnp.all(jnp.isfinite(out)))
    assert bool(jnp.allclose(out, ref, atol=3e-2, rtol=3e-2))
    print("KERNEL_OK")
</pallas_src>

<mosaic_0001>
module attributes {stable_mosaic.version = 11 : i64} {
  func.func @vqa_kernel(%arg0: i32, %arg1: memref<64x768xbf16, #tpu.memory_space<vmem>>, %arg2: memref<64x768xbf16, #tpu.memory_space<vmem>>, %arg3: memref<768x512xbf16, #tpu.memory_space<vmem>>, %arg4: memref<512x128xbf16, #tpu.memory_space<vmem>>, %arg5: memref<768x128xbf16, #tpu.memory_space<vmem>>, %arg6: memref<128x256xbf16, #tpu.memory_space<vmem>>, %arg7: memref<256x128xbf16, #tpu.memory_space<vmem>>, %arg8: memref<1x640xf32, #tpu.memory_space<vmem>>, %arg9: memref<64x128xf32, #tpu.memory_space<vmem>>) attributes {dimension_semantics = [#tpu.dimension_semantics<parallel>], iteration_bounds = array<i64: 2>, scalar_prefetch = 0 : i64, scratch_operands = 0 : i64, tpu.core_type = #tpu.core_type<tc>, window_params = [{transform_indices = @transform_0, window_bounds = array<i64: 64, 768>}, {transform_indices = @transform_1, window_bounds = array<i64: 64, 768>}, {pipeline_mode = #tpu.pipeline_mode<synchronous>, transform_indices = @transform_2, window_bounds = array<i64: 768, 512>}, {pipeline_mode = #tpu.pipeline_mode<synchronous>, transform_indices = @transform_3, window_bounds = array<i64: 512, 128>}, {pipeline_mode = #tpu.pipeline_mode<synchronous>, transform_indices = @transform_4, window_bounds = array<i64: 768, 128>}, {pipeline_mode = #tpu.pipeline_mode<synchronous>, transform_indices = @transform_5, window_bounds = array<i64: 128, 256>}, {pipeline_mode = #tpu.pipeline_mode<synchronous>, transform_indices = @transform_6, window_bounds = array<i64: 256, 128>}, {pipeline_mode = #tpu.pipeline_mode<synchronous>, transform_indices = @transform_7, window_bounds = array<i64: 1, 640>}, {transform_indices = @transform_8, window_bounds = array<i64: 64, 128>}]} {
    %c0 = arith.constant 0 : index
    %c0_0 = arith.constant 0 : index
    %0 = vector.load %arg1[%c0, %c0_0] : memref<64x768xbf16, #tpu.memory_space<vmem>>, vector<64x768xbf16>
    %c0_1 = arith.constant 0 : index
    %c0_2 = arith.constant 0 : index
    %1 = vector.load %arg3[%c0_1, %c0_2] : memref<768x512xbf16, #tpu.memory_space<vmem>>, vector<768x512xbf16>
    %cst = arith.constant dense<0.000000e+00> : vector<64x512xf32>
    %2 = tpu.matmul %0, %1, %cst {dimension_numbers = #tpu.dot_dimension_numbers<[1], [0], [0], [1], [0, 0, 1, 1], [], []>} : vector<64x768xbf16>, vector<768x512xbf16>, vector<64x512xf32> -> vector<64x512xf32>
    %3 = math.tanh %2 : vector<64x512xf32>
    %4 = arith.truncf %3 : vector<64x512xf32> to vector<64x512xbf16>
    %c0_3 = arith.constant 0 : index
    %c0_4 = arith.constant 0 : index
    %5 = vector.load %arg4[%c0_3, %c0_4] : memref<512x128xbf16, #tpu.memory_space<vmem>>, vector<512x128xbf16>
    %cst_5 = arith.constant dense<0.000000e+00> : vector<64x128xf32>
    %6 = tpu.matmul %4, %5, %cst_5 {dimension_numbers = #tpu.dot_dimension_numbers<[1], [0], [0], [1], [0, 0, 1, 1], [], []>} : vector<64x512xbf16>, vector<512x128xbf16>, vector<64x128xf32> -> vector<64x128xf32>
    %c0_6 = arith.constant 0 : index
    %c0_7 = arith.constant 0 : index
    %7 = vector.load %arg8[%c0_6, %c0_7] : memref<1x640xf32, #tpu.memory_space<vmem>>, vector<1x128xf32>
    %8 = vector.broadcast %7 : vector<1x128xf32> to vector<64x128xf32>
    %9 = arith.addf %6, %8 : vector<64x128xf32>
    %10 = arith.mulf %9, %9 : vector<64x128xf32>
    %cst_8 = arith.constant dense<0.000000e+00> : vector<64xf32>
    %11 = vector.multi_reduction <add>, %10, %cst_8 [1] : vector<64x128xf32> to vector<64xf32>
    %12 = vector.shape_cast %11 : vector<64xf32> to vector<64x1xf32>
    %cst_9 = arith.constant 9.99999996E-13 : f32
    %13 = vector.broadcast %cst_9 : f32 to vector<64x1xf32>
    %14 = arith.addf %12, %13 : vector<64x1xf32>
    %15 = math.rsqrt %14 : vector<64x1xf32>
    %16 = vector.broadcast %15 : vector<64x1xf32> to vector<64x128xf32>
    %17 = arith.mulf %9, %16 : vector<64x128xf32>
    %c0_10 = arith.constant 0 : index
    %c0_11 = arith.constant 0 : index
    %18 = vector.load %arg2[%c0_10, %c0_11] : memref<64x768xbf16, #tpu.memory_space<vmem>>, vector<64x768xbf16>
    %c0_12 = arith.constant 0 : index
    %c0_13 = arith.constant 0 : index
    %19 = vector.load %arg5[%c0_12, %c0_13] : memref<768x128xbf16, #tpu.memory_space<vmem>>, vector<768x128xbf16>
    %cst_14 = arith.constant dense<0.000000e+00> : vector<64x128xf32>
    %20 = tpu.matmul %18, %19, %cst_14 {dimension_numbers = #tpu.dot_dimension_numbers<[1], [0], [0], [1], [0, 0, 1, 1], [], []>} : vector<64x768xbf16>, vector<768x128xbf16>, vector<64x128xf32> -> vector<64x128xf32>
    %c0_15 = arith.constant 0 : index
    %c128 = arith.constant 128 : index
    %21 = vector.load %arg8[%c0_15, %c128] : memref<1x640xf32, #tpu.memory_space<vmem>>, vector<1x128xf32>
    %22 = vector.broadcast %21 : vector<1x128xf32> to vector<64x128xf32>
    %23 = arith.addf %20, %22 : vector<64x128xf32>
    %24 = arith.mulf %17, %23 : vector<64x128xf32>
    %25 = math.tanh %24 : vector<64x128xf32>
    %26 = arith.truncf %25 : vector<64x128xf32> to vector<64x128xbf16>
    %c0_16 = arith.constant 0 : index
    %c0_17 = arith.constant 0 : index
    %27 = vector.load %arg6[%c0_16, %c0_17] : memref<128x256xbf16, #tpu.memory_space<vmem>>, vector<128x256xbf16>
    %cst_18 = arith.constant dense<0.000000e+00> : vector<64x256xf32>
    %28 = tpu.matmul %26, %27, %cst_18 {dimension_numbers = #tpu.dot_dimension_numbers<[1], [0], [0], [1], [0, 0, 1, 1], [], []>} : vector<64x128xbf16>, vector<128x256xbf16>, vector<64x256xf32> -> vector<64x256xf32>
    %c0_19 = arith.constant 0 : index
    %c256 = arith.constant 256 : index
    %29 = vector.load %arg8[%c0_19, %c256] : memref<1x640xf32, #tpu.memory_space<vmem>>, vector<1x256xf32>
    %30 = vector.broadcast %29 : vector<1x256xf32> to vector<64x256xf32>
    %31 = arith.addf %28, %30 : vector<64x256xf32>
    %32 = math.tanh %31 : vector<64x256xf32>
    %33 = arith.truncf %32 : vector<64x256xf32> to vector<64x256xbf16>
    %c0_20 = arith.constant 0 : index
    %c0_21 = arith.constant 0 : index
    %34 = vector.load %arg7[%c0_20, %c0_21] : memref<256x128xbf16, #tpu.memory_space<vmem>>, vector<256x128xbf16>
    %cst_22 = arith.constant dense<0.000000e+00> : vector<64x128xf32>
    %35 = tpu.matmul %33, %34, %cst_22 {dimension_numbers = #tpu.dot_dimension_numbers<[1], [0], [0], [1], [0, 0, 1, 1], [], []>} : vector<64x256xbf16>, vector<256x128xbf16>, vector<64x128xf32> -> vector<64x128xf32>
    %c0_23 = arith.constant 0 : index
    %c512 = arith.constant 512 : index
    %36 = vector.load %arg8[%c0_23, %c512] : memref<1x640xf32, #tpu.memory_space<vmem>>, vector<1x128xf32>
    %37 = vector.broadcast %36 : vector<1x128xf32> to vector<64x128xf32>
    %38 = arith.addf %35, %37 : vector<64x128xf32>
    %c0_24 = arith.constant 0 : index
    %c0_25 = arith.constant 0 : index
    %39 = vector.load %arg9[%c0_24, %c0_25] : memref<64x128xf32, #tpu.memory_space<vmem>>, vector<64x128xf32>
    tpu.vector_store %arg9[%c0_24, %c0_25], %38 {strides = array<i32>} : memref<64x128xf32, #tpu.memory_space<vmem>>, vector<64x128xf32>,
    return
  }
  func.func @transform_0(%arg0: i32) -> (i32, i32) {
    %c0_i32 = arith.constant 0 : i32
    %c0_i32_0 = arith.constant 0 : i32
    return %arg0, %c0_i32 : i32, i32
  }
  func.func @transform_1(%arg0: i32) -> (i32, i32) {
    %c0_i32 = arith.constant 0 : i32
    %c0_i32_0 = arith.constant 0 : i32
    return %arg0, %c0_i32 : i32, i32
  }
  func.func @transform_2(%arg0: i32) -> (i32, i32) {
    %c0_i32 = arith.constant 0 : i32
    %c0_i32_0 = arith.constant 0 : i32
    %c0_i32_1 = arith.constant 0 : i32
    return %c0_i32, %c0_i32_0 : i32, i32
  }
  func.func @transform_3(%arg0: i32) -> (i32, i32) {
    %c0_i32 = arith.constant 0 : i32
    %c0_i32_0 = arith.constant 0 : i32
    %c0_i32_1 = arith.constant 0 : i32
    return %c0_i32, %c0_i32_0 : i32, i32
  }
  func.func @transform_4(%arg0: i32) -> (i32, i32) {
    %c0_i32 = arith.constant 0 : i32
    %c0_i32_0 = arith.constant 0 : i32
    %c0_i32_1 = arith.constant 0 : i32
    return %c0_i32, %c0_i32_0 : i32, i32
  }
  func.func @transform_5(%arg0: i32) -> (i32, i32) {
    %c0_i32 = arith.constant 0 : i32
    %c0_i32_0 = arith.constant 0 : i32
    %c0_i32_1 = arith.constant 0 : i32
    return %c0_i32, %c0_i32_0 : i32, i32
  }
  func.func @transform_6(%arg0: i32) -> (i32, i32) {
    %c0_i32 = arith.constant 0 : i32
    %c0_i32_0 = arith.constant 0 : i32
    %c0_i32_1 = arith.constant 0 : i32
    return %c0_i32, %c0_i32_0 : i32, i32
  }
  func.func @transform_7(%arg0: i32) -> (i32, i32) {
    %c0_i32 = arith.constant 0 : i32
    %c0_i32_0 = arith.constant 0 : i32
    %c0_i32_1 = arith.constant 0 : i32
    return %c0_i32, %c0_i32_0 : i32, i32
  }
  func.func @transform_8(%arg0: i32) -> (i32, i32) {
    %c0_i32 = arith.constant 0 : i32
    %c0_i32_0 = arith.constant 0 : i32
    return %arg0, %c0_i32 : i32, i32
  }
}

</mosaic_0001>

<llo_original>
// kernel: vqa_forward.1
$region0: #{vqa_forward.1}
  #allocation0 [shape = 'u32[]', space=smem, size = 0x4, offset = 0x4, fixed_abs, tag = 'smem constant byte address 0x4 - core index']
  #allocation1 [shape = 'u32[72,128]{1,0:T(1,128)}', space=vmem, size = 0x9000, scoped, tag = 'internal scratch']
  %s0 = inlined_call_operand.hbm [shape: bf16[128,768], index: 0, kind: input, shape index: {}]
  %s1 = inlined_call_operand.hbm [shape: bf16[128,768], index: 1, kind: input, shape index: {}]
  %s2 = inlined_call_operand.hbm [shape: bf16[768,512], index: 2, kind: input, shape index: {}]
  %s3 = inlined_call_operand.hbm [shape: bf16[512,128], index: 3, kind: input, shape index: {}]
  %s4 = inlined_call_operand.hbm [shape: bf16[768,128], index: 4, kind: input, shape index: {}]
  %s5 = inlined_call_operand.hbm [shape: bf16[128,256], index: 5, kind: input, shape index: {}]
  %s6 = inlined_call_operand.hbm [shape: bf16[256,128], index: 6, kind: input, shape index: {}]
  %s7 = inlined_call_operand.vmem [shape: f32[1,640], index: 7, kind: input, shape index: {}]
  %s8 = inlined_call_operand.vmem [shape: f32[128,128], index: 8, kind: output, shape index: {}]
  %s9 = sld [smem:[#allocation0]]
  $region93: #{vqa_forward.1} parent=0
    _
  %s11 = ssub.s32 1, %s9
  %s12 = scalar_select 0, %s11, %s9
  $region1: #{vqa_forward.1} parent=0
    #allocation2 [shape = 'u8[196608]{0}', space=vmem, size = 0x30000, scoped, tag = 'input window, operand 0']
    #allocation3 [shape = 's32[2]{0}', space=sflag, size = 0x8, scoped, tag = 'scoped memory for vqa_forward.1']
    #allocation4 [shape = 'u8[196608]{0}', space=vmem, size = 0x30000, scoped, tag = 'input window, operand 1']
    #allocation5 [shape = 's32[2]{0}', space=sflag, size = 0x8, scoped, tag = 'scoped memory for vqa_forward.1']
    #allocation6 [shape = 'u8[786432]{0}', space=vmem, size = 0xc0000, scoped, tag = 'input window, operand 2, single buffered']
    #allocation7 [shape = 'u8[131072]{0}', space=vmem, size = 0x20000, scoped, tag = 'input window, operand 3, single buffered']
    #allocation8 [shape = 's32[1]{0}', space=sflag, size = 0x4, scoped, tag = 'scoped memory for vqa_forward.1']
    #allocation9 [shape = 'u8[196608]{0}', space=vmem, size = 0x30000, scoped, tag = 'input window, operand 4, single buffered']
    #allocation10 [shape = 'u8[65536]{0}', space=vmem, size = 0x10000, scoped, tag = 'input window, operand 5, single buffered']
    #allocation11 [shape = 's32[1]{0}', space=sflag, size = 0x4, scoped, tag = 'scoped memory for vqa_forward.1']
    #allocation12 [shape = 'u8[65536]{0}', space=vmem, size = 0x10000, scoped, tag = 'input window, operand 6, single buffered']
    %13 = vsyncpa [#allocation3], 0
    %s14 = scalar_lea.sflag [#allocation3], 1
    %15 = vsyncpa %s14, 0
    %16 = vsyncpa [#allocation5], 0
    %s17 = scalar_lea.sflag [#allocation5], 1
    %18 = vsyncpa %s17, 0
    %19 = vsyncpa [#allocation8], 0
    %20 = vsyncpa [#allocation11], 0
    loop: start=0, step=1, limit=4
    $region2: #{vqa_forward.1} parent=1 // loop_pre_header
      _
    $region3: #{vqa_forward.1} parent=1 // loop_header
      %s22 = sphi 0, %s26
      %p23 = scmp.ge.s32.totalorder %s22, 4
      %s32 = sphi 0, %s34
      %s35 = sphi 0, %s32
      %s36 = sphi 0, %s35
      %s52 = sphi 0, %s36
      %s58 = sphi 0, %s60
      %s61 = sphi 0, %s58
      %s62 = sphi 0, %s61
      %s78 = sphi 0, %s62
      %s82 = sphi 0, %s82
      %s84 = sphi 0, %s82
      %s85 = sphi 0, %s84
      %s99 = sphi 0, %s85
      %s103 = sphi 0, %s103
      %s105 = sphi 0, %s103
      %s106 = sphi 0, %s105
      %s120 = sphi 0, %s106
      %s124 = sphi 0, %s124
      %s126 = sphi 0, %s124
      %s127 = sphi 0, %s126
      %s141 = sphi 0, %s127
      %s145 = sphi 0, %s145
      %s147 = sphi 0, %s145
      %s148 = sphi 0, %s147
      %s162 = sphi 0, %s148
      %s166 = sphi 0, %s166
      %s168 = sphi 0, %s166
      %s169 = sphi 0, %s168
      %s183 = sphi 0, %s169
      %s187 = sphi 0, %s187
      %s189 = sphi 0, %s187
      %s190 = sphi 0, %s189
      %s204 = sphi 0, %s190
      %s210 = sphi 0, %s212
      %s213 = sphi 0, %s210
      %s214 = sphi 0, %s213
      %s230 = sphi 0, %s214
    $region4: #{vqa_forward.1} parent=1 // loop_header_branch
      %25 = sbr.rel (%p23) target = $region8
    $region5: #{vqa_forward.1} parent=1 // loop_body
      %s27 = ssub.s32 %s22, 1
      %s28 = ssub.s32 %s22, 2
      %s29 = sadd.s32 %s22, 1
      %s30 = ssub.s32 %s22, %s29
      %p31 = scmp.eq.s32.totalorder %s30, 0
      %s33 = sadd.s32 %s32, 1
      %s34 = scalar_select %p31, %s32, %s33
      %p37 = pneg %p31
      %p38 = scmp.eq.s32.totalorder %s22, 1
      %p39 = por %p37, %p38
      %p40 = scmp.ne.s32.totalorder %s32, %s35
      %p41 = scmp.eq.s32.totalorder %s22, 0
      %p42 = por %p40, %p41
      %p43 = scmp.ne.s32.totalorder %s32, %s35
      %p44 = scmp.eq.s32.totalorder %s27, 1
      %p45 = por %p43, %p44
      %p46 = scmp.ne.s32.totalorder %s35, %s36
      %p47 = scmp.eq.s32.totalorder %s27, 0
      %p48 = por %p46, %p47
      %p49 = scmp.ne.s32.totalorder %s35, %s36
      %p50 = scmp.eq.s32.totalorder %s28, 1
      %p51 = por %p49, %p50
      %p53 = scmp.ne.s32.totalorder %s36, %s52
      %p54 = scmp.eq.s32.totalorder %s28, 0
      %p55 = por %p53, %p54
      %s56 = ssub.s32 %s22, %s29
      %p57 = scmp.eq.s32.totalorder %s56, 0
      %s59 = sadd.s32 %s58, 1
      %s60 = scalar_select %p57, %s58, %s59
      %p63 = pneg %p57
      %p64 = scmp.eq.s32.totalorder %s22, 1
      %p65 = por %p63, %p64
      %p66 = scmp.ne.s32.totalorder %s58, %s61
      %p67 = scmp.eq.s32.totalorder %s22, 0
      %p68 = por %p66, %p67
      %p69 = scmp.ne.s32.totalorder %s58, %s61
      %p70 = scmp.eq.s32.totalorder %s27, 1
      %p71 = por %p69, %p70
      %p72 = scmp.ne.s32.totalorder %s61, %s62
      %p73 = scmp.eq.s32.totalorder %s27, 0
      %p74 = por %p72, %p73
      %p75 = scmp.ne.s32.totalorder %s61, %s62
      %p76 = scmp.eq.s32.totalorder %s28, 1
      %p77 = por %p75, %p76
      %p79 = scmp.ne.s32.totalorder %s62, %s78
      %p80 = scmp.eq.s32.totalorder %s28, 0
      %p81 = por %p79, %p80
      %s83 = sadd.s32 %s82, 1
      %p86 = scmp.eq.s32.totalorder %s22, 1
      %p87 = scmp.ne.s32.totalorder %s82, %s84
      %p88 = scmp.eq.s32.totalorder %s22, 0
      %p89 = por %p87, %p88
      %p90 = scmp.ne.s32.totalorder %s82, %s84
      %p91 = scmp.eq.s32.totalorder %s27, 1
      %p92 = por %p90, %p91
      %p93 = scmp.ne.s32.totalorder %s84, %s85
      %p94 = scmp.eq.s32.totalorder %s27, 0
      %p95 = por %p93, %p94
      %p96 = scmp.ne.s32.totalorder %s84, %s85
      %p97 = scmp.eq.s32.totalorder %s28, 1
      %p98 = por %p96, %p97
      %p100 = scmp.ne.s32.totalorder %s85, %s99
      %p101 = scmp.eq.s32.totalorder %s28, 0
      %p102 = por %p100, %p101
      %s104 = sadd.s32 %s103, 1
      %p107 = scmp.eq.s32.totalorder %s22, 1
      %p108 = scmp.ne.s32.totalorder %s103, %s105
      %p109 = scmp.eq.s32.totalorder %s22, 0
      %p110 = por %p108, %p109
      %p111 = scmp.ne.s32.totalorder %s103, %s105
      %p112 = scmp.eq.s32.totalorder %s27, 1
      %p113 = por %p111, %p112
      %p114 = scmp.ne.s32.totalorder %s105, %s106
      %p115 = scmp.eq.s32.totalorder %s27, 0
      %p116 = por %p114, %p115
      %p117 = scmp.ne.s32.totalorder %s105, %s106
      %p118 = scmp.eq.s32.totalorder %s28, 1
      %p119 = por %p117, %p118
      %p121 = scmp.ne.s32.totalorder %s106, %s120
      %p122 = scmp.eq.s32.totalorder %s28, 0
      %p123 = por %p121, %p122
      %s125 = sadd.s32 %s124, 1
      %p128 = scmp.eq.s32.totalorder %s22, 1
      %p129 = scmp.ne.s32.totalorder %s124, %s126
      %p130 = scmp.eq.s32.totalorder %s22, 0
      %p131 = por %p129, %p130
      %p132 = scmp.ne.s32.totalorder %s124, %s126
      %p133 = scmp.eq.s32.totalorder %s27, 1
      %p134 = por %p132, %p133
      %p135 = scmp.ne.s32.totalorder %s126, %s127
      %p136 = scmp.eq.s32.totalorder %s27, 0
      %p137 = por %p135, %p136
      %p138 = scmp.ne.s32.totalorder %s126, %s127
      %p139 = scmp.eq.s32.totalorder %s28, 1
      %p140 = por %p138, %p139
      %p142 = scmp.ne.s32.totalorder %s127, %s141
      %p143 = scmp.eq.s32.totalorder %s28, 0
      %p144 = por %p142, %p143
      %s146 = sadd.s32 %s145, 1
      %p149 = scmp.eq.s32.totalorder %s22, 1
      %p150 = scmp.ne.s32.totalorder %s145, %s147
      %p151 = scmp.eq.s32.totalorder %s22, 0
      %p152 = por %p150, %p151
      %p153 = scmp.ne.s32.totalorder %s145, %s147
      %p154 = scmp.eq.s32.totalorder %s27, 1
      %p155 = por %p153, %p154
      %p156 = scmp.ne.s32.totalorder %s147, %s148
      %p157 = scmp.eq.s32.totalorder %s27, 0
      %p158 = por %p156, %p157
      %p159 = scmp.ne.s32.totalorder %s147, %s148
      %p160 = scmp.eq.s32.totalorder %s28, 1
      %p161 = por %p159, %p160
      %p163 = scmp.ne.s32.totalorder %s148, %s162
      %p164 = scmp.eq.s32.totalorder %s28, 0
      %p165 = por %p163, %p164
      %s167 = sadd.s32 %s166, 1
      %p170 = scmp.eq.s32.totalorder %s22, 1
      %p171 = scmp.ne.s32.totalorder %s166, %s168
      %p172 = scmp.eq.s32.totalorder %s22, 0
      %p173 = por %p171, %p172
      %p174 = scmp.ne.s32.totalorder %s166, %s168
      %p175 = scmp.eq.s32.totalorder %s27, 1
      %p176 = por %p174, %p175
      %p177 = scmp.ne.s32.totalorder %s168, %s169
      %p178 = scmp.eq.s32.totalorder %s27, 0
      %p179 = por %p177, %p178
      %p180 = scmp.ne.s32.totalorder %s168, %s169
      %p181 = scmp.eq.s32.totalorder %s28, 1
      %p182 = por %p180, %p181
      %p184 = scmp.ne.s32.totalorder %s169, %s183
      %p185 = scmp.eq.s32.totalorder %s28, 0
      %p186 = por %p184, %p185
      %s188 = sadd.s32 %s187, 1
      %p191 = scmp.eq.s32.totalorder %s22, 1
      %p192 = scmp.ne.s32.totalorder %s187, %s189
      %p193 = scmp.eq.s32.totalorder %s22, 0
      %p194 = por %p192, %p193
      %p195 = scmp.ne.s32.totalorder %s187, %s189
      %p196 = scmp.eq.s32.totalorder %s27, 1
      %p197 = por %p195, %p196
      %p198 = scmp.ne.s32.totalorder %s189, %s190
      %p199 = scmp.eq.s32.totalorder %s27, 0
      %p200 = por %p198, %p199
      %p201 = scmp.ne.s32.totalorder %s189, %s190
      %p202 = scmp.eq.s32.totalorder %s28, 1
      %p203 = por %p201, %p202
      %p205 = scmp.ne.s32.totalorder %s190, %s204
      %p206 = scmp.eq.s32.totalorder %s28, 0
      %p207 = por %p205, %p206
      %s208 = ssub.s32 %s22, %s29
      %p209 = scmp.eq.s32.totalorder %s208, 0
      %s211 = sadd.s32 %s210, 1
      %s212 = scalar_select %p209, %s210, %s211
      %p215 = pneg %p209
      %p216 = scmp.eq.s32.totalorder %s22, 1
      %p217 = por %p215, %p216
      %p218 = scmp.ne.s32.totalorder %s210, %s213
      %p219 = scmp.eq.s32.totalorder %s22, 0
      %p220 = por %p218, %p219
      %p221 = scmp.ne.s32.totalorder %s210, %s213
      %p222 = scmp.eq.s32.totalorder %s27, 1
      %p223 = por %p221, %p222
      %p224 = scmp.ne.s32.totalorder %s213, %s214
      %p225 = scmp.eq.s32.totalorder %s27, 0
      %p226 = por %p224, %p225
      %p227 = scmp.ne.s32.totalorder %s213, %s214
      %p228 = scmp.eq.s32.totalorder %s28, 1
      %p229 = por %p227, %p228
      %p231 = scmp.ne.s32.totalorder %s214, %s230
      %p232 = scmp.eq.s32.totalorder %s28, 0
      %p233 = por %p231, %p232
      %p234 = scmp.le.s32.totalorder 1, %s22
      %p235 = scmp.lt.s32.totalorder %s22, 3
      %p236 = pnand %p234, %p235
      %p237 = pneg %p236
      // Predicated region
      $region9: #{vqa_forward.1} parent=5 // pred_check
        _
      $region10: #{vqa_forward.1} parent=5 // pred_check_branch
        %239 = sbr.rel (%p236) target = $region12
      $region11: #{vqa_forward.1} parent=5 // pred_region
        %s240 = ssub.s32 %s22, 1
        // Predicated region
        $region13: #{vqa_forward.1} parent=11 // pred_check
          %p241 = pneg %p95
        $region14: #{vqa_forward.1} parent=11 // pred_check_branch
          %243 = sbr.rel (%p241) target = $region16
        $region15: #{vqa_forward.1} parent=11 // pred_region
          %245 = vsyncadd [#allocation5], 0
          %s246 = sshll.u32 %s2, 4
          %s247 = int_to_ptr.hbm [resolvable:$true] %s246
          %s248 = sshll.u32 [#allocation6], 4
          %s249 = int_to_ptr.vmem [resolvable:$true] %s248
          %254 = dma.hbm_to_vmem [thread:$0]  %s247, 24576, %s249, [#allocation5], 256, 256, 16
        $region16: #{vqa_forward.1} parent=11 // pred_fallthru
          _
        // Predicated region
        $region17: #{vqa_forward.1} parent=11 // pred_check
          %p255 = pneg %p116
        $region18: #{vqa_forward.1} parent=11 // pred_check_branch
          %257 = sbr.rel (%p255) target = $region20
        $region19: #{vqa_forward.1} parent=11 // pred_region
          %259 = vsyncadd [#allocation8], 0
          %s260 = sshll.u32 %s3, 4
          %s261 = int_to_ptr.hbm [resolvable:$true] %s260
          %s262 = sshll.u32 [#allocation7], 4
          %s263 = int_to_ptr.vmem [resolvable:$true] %s262
          %268 = dma.hbm_to_vmem [thread:$0]  %s261, 4096, %s263, [#allocation8], 64, 64, 4
        $region20: #{vqa_forward.1} parent=11 // pred_fallthru
          _
        // Predicated region
        $region21: #{vqa_forward.1} parent=11 // pred_check
          %p269 = pneg %p137
        $region22: #{vqa_forward.1} parent=11 // pred_check_branch
          %271 = sbr.rel (%p269) target = $region24
        $region23: #{vqa_forward.1} parent=11 // pred_region
          %273 = vsyncadd [#allocation8], 0
          %s274 = sshll.u32 %s4, 4
          %s275 = int_to_ptr.hbm [resolvable:$true] %s274
          %s276 = sshll.u32 [#allocation9], 4
          %s277 = int_to_ptr.vmem [resolvable:$true] %s276
          %282 = dma.hbm_to_vmem [thread:$0]  %s275, 6144, %s277, [#allocation8], 64, 64, 4
        $region24: #{vqa_forward.1} parent=11 // pred_fallthru
          _
        // Predicated region
        $region25: #{vqa_forward.1} parent=11 // pred_check
          %p283 = pneg %p158
        $region26: #{vqa_forward.1} parent=11 // pred_check_branch
          %285 = sbr.rel (%p283) target = $region28
        $region27: #{vqa_forward.1} parent=11 // pred_region
          %287 = vsyncadd [#allocation11], 0
          %s288 = sshll.u32 %s5, 4
          %s289 = int_to_ptr.hbm [resolvable:$true] %s288
          %s290 = sshll.u32 [#allocation10], 4
          %s291 = int_to_ptr.vmem [resolvable:$true] %s290
          %296 = dma.hbm_to_vmem [thread:$0]  %s289, 2048, %s291, [#allocation11], 128, 128, 8
        $region28: #{vqa_forward.1} parent=11 // pred_fallthru
          _
        // Predicated region
        $region29: #{vqa_forward.1} parent=11 // pred_check
          %p297 = pneg %p179
        $region30: #{vqa_forward.1} parent=11 // pred_check_branch
          %299 = sbr.rel (%p297) target = $region32
        $region31: #{vqa_forward.1} parent=11 // pred_region
          %301 = vsyncadd [#allocation11], 0
          %s302 = sshll.u32 %s6, 4
          %s303 = int_to_ptr.hbm [resolvable:$true] %s302
          %s304 = sshll.u32 [#allocation12], 4
          %s305 = int_to_ptr.vmem [resolvable:$true] %s304
          %310 = dma.hbm_to_vmem [thread:$0]  %s303, 2048, %s305, [#allocation11], 64, 64, 4
        $region32: #{vqa_forward.1} parent=11 // pred_fallthru
          _
        // Predicated region
        $region33: #{vqa_forward.1} parent=11 // pred_check
          %p311 = pneg %p200
        $region34: #{vqa_forward.1} parent=11 // pred_check_branch
          %313 = sbr.rel (%p311) target = $region36
        $region35: #{vqa_forward.1} parent=11 // pred_region
          _
        $region36: #{vqa_forward.1} parent=11 // pred_fallthru
          _
      $region12: #{vqa_forward.1} parent=5 // pred_fallthru
        _
      %p314 = scmp.lt.s32.totalorder %s22, 2
      // Predicated region
      $region37: #{vqa_forward.1} parent=5 // pred_check
        %p315 = pneg %p314
      $region38: #{vqa_forward.1} parent=5 // pred_check_branch
        %317 = sbr.rel (%p315) target = $region40
      $region39: #{vqa_forward.1} parent=5 // pred_region
        // Predicated region
        $region41: #{vqa_forward.1} parent=39 // pred_check
          %p318 = pneg %p42
        $region42: #{vqa_forward.1} parent=39 // pred_check_branch
          %320 = sbr.rel (%p318) target = $region44
        $region43: #{vqa_forward.1} parent=39 // pred_region
          %s321 = sand.u32 %s32, 1
          %s322 = scalar_lea.sflag [#allocation3], %s321
          %s323 = sand.u32 %s32, 1
          %s324 = smul.addr %s323, 192
          %s325 = scalar_lea.vmem [#allocation2], %s324
          %s326 = smul.u32 8, %s22
          %328 = vsyncadd %s322, 0
          %s329 = smul.addr %s326, 6
          %s330 = smul.addr %s329, 4
          %s331 = scalar_lea.hbm %s0, %s330
          %s332 = sshll.u32 %s331, 4
          %s333 = int_to_ptr.hbm [resolvable:$true] %s332
          %s334 = sshll.u32 %s325, 4
          %s335 = int_to_ptr.vmem [resolvable:$true] %s334
          %340 = dma.hbm_to_vmem [thread:$0]  %s333, 3072, %s335, %s322, 384, 384, 24
        $region44: #{vqa_forward.1} parent=39 // pred_fallthru
          _
        // Predicated region
        $region45: #{vqa_forward.1} parent=39 // pred_check
          %p341 = pneg %p68
        $region46: #{vqa_forward.1} parent=39 // pred_check_branch
          %343 = sbr.rel (%p341) target = $region48
        $region47: #{vqa_forward.1} parent=39 // pred_region
          %s344 = sand.u32 %s22, 1
          %s345 = scalar_lea.sflag [#allocation5], %s344
          %s346 = sand.u32 %s58, 1
          %s347 = smul.addr %s346, 192
          %s348 = scalar_lea.vmem [#allocation4], %s347
          %s349 = smul.u32 8, %s22
          %351 = vsyncadd %s345, 0
          %s352 = smul.addr %s349, 6
          %s353 = smul.addr %s352, 4
          %s354 = scalar_lea.hbm %s1, %s353
          %s355 = sshll.u32 %s354, 4
          %s356 = int_to_ptr.hbm [resolvable:$true] %s355
          %s357 = sshll.u32 %s348, 4
          %s358 = int_to_ptr.vmem [resolvable:$true] %s357
          %363 = dma.hbm_to_vmem [thread:$0]  %s356, 3072, %s358, %s345, 384, 384, 24
        $region48: #{vqa_forward.1} parent=39 // pred_fallthru
          _
      $region40: #{vqa_forward.1} parent=5 // pred_fallthru
        _
      %p364 = scmp.le.s32.totalorder 1, %s22
      %p365 = scmp.lt.s32.totalorder %s22, 3
      %p366 = pnand %p364, %p365
      %p367 = pneg %p366
      // Predicated region
      $region49: #{vqa_forward.1} parent=5 // pred_check
        _
      $region50: #{vqa_forward.1} parent=5 // pred_check_branch
        %369 = sbr.rel (%p366) target = $region52
      $region51: #{vqa_forward.1} parent=5 // pred_region
        %s370 = ssub.s32 %s22, 1
        %s371 = sand.u32 %s35, 1
        %s372 = scalar_lea.sflag [#allocation3], %s371
        %s373 = sand.u32 %s35, 1
        %s374 = smul.addr %s373, 192
        %s375 = scalar_lea.vmem [#allocation2], %s374
        // Predicated region
        $region53: #{vqa_forward.1} parent=51 // pred_check
          %p376 = pneg %p48
        $region54: #{vqa_forward.1} parent=51 // pred_check_branch
          %378 = sbr.rel (%p376) target = $region56
        $region55: #{vqa_forward.1} parent=51 // pred_region
          %380 = dma.done %s372, 3072
        $region56: #{vqa_forward.1} parent=51 // pred_fallthru
          _
        %s381 = sand.u32 %s27, 1
        %s382 = scalar_lea.sflag [#allocation5], %s381
        %s383 = sand.u32 %s61, 1
        %s384 = smul.addr %s383, 192
        %s385 = scalar_lea.vmem [#allocation4], %s384
        // Predicated region
        $region57: #{vqa_forward.1} parent=51 // pred_check
          %p386 = pneg %p74
        $region58: #{vqa_forward.1} parent=51 // pred_check_branch
          %388 = sbr.rel (%p386) target = $region60
        $region59: #{vqa_forward.1} parent=51 // pred_region
          %390 = dma.done %s382, 3072
        $region60: #{vqa_forward.1} parent=51 // pred_fallthru
          _
        // Predicated region
        $region61: #{vqa_forward.1} parent=51 // pred_check
          %p391 = pneg %p95
        $region62: #{vqa_forward.1} parent=51 // pred_check_branch
          %393 = sbr.rel (%p391) target = $region64
        $region63: #{vqa_forward.1} parent=51 // pred_region
          %395 = dma.done [#allocation5], 24576
        $region64: #{vqa_forward.1} parent=51 // pred_fallthru
          _
        // Predicated region
        $region65: #{vqa_forward.1} parent=51 // pred_check
          %p396 = pneg %p116
        $region66: #{vqa_forward.1} parent=51 // pred_check_branch
          %398 = sbr.rel (%p396) target = $region68
        $region67: #{vqa_forward.1} parent=51 // pred_region
          %400 = dma.done [#allocation8], 4096
        $region68: #{vqa_forward.1} parent=51 // pred_fallthru
          _
        // Predicated region
        $region69: #{vqa_forward.1} parent=51 // pred_check
          %p401 = pneg %p137
        $region70: #{vqa_forward.1} parent=51 // pred_check_branch
          %403 = sbr.rel (%p401) target = $region72
        $region71: #{vqa_forward.1} parent=51 // pred_region
          %405 = dma.done [#allocation8], 6144
        $region72: #{vqa_forward.1} parent=51 // pred_fallthru
          _
        // Predicated region
        $region73: #{vqa_forward.1} parent=51 // pred_check
          %p406 = pneg %p158
        $region74: #{vqa_forward.1} parent=51 // pred_check_branch
          %408 = sbr.rel (%p406) target = $region76
        $region75: #{vqa_forward.1} parent=51 // pred_region
          %410 = dma.done [#allocation11], 2048
        $region76: #{vqa_forward.1} parent=51 // pred_fallthru
          _
        // Predicated region
        $region77: #{vqa_forward.1} parent=51 // pred_check
          %p411 = pneg %p179
        $region78: #{vqa_forward.1} parent=51 // pred_check_branch
          %413 = sbr.rel (%p411) target = $region80
        $region79: #{vqa_forward.1} parent=51 // pred_region
          %415 = dma.done [#allocation11], 2048
        $region80: #{vqa_forward.1} parent=51 // pred_fallthru
          _
        %s416 = sand.u32 %s35, 1
        %s417 = scalar_lea.sflag [#allocation3], %s416
        %s418 = sand.u32 %s35, 1
        %s419 = smul.addr %s418, 192
        %s420 = scalar_lea.vmem [#allocation2], %s419
        %p421 = pneg %p48
        %p422 = pneg %p45
        %s423 = sand.u32 %s27, 1
        %s424 = scalar_lea.sflag [#allocation5], %s423
        %s425 = sand.u32 %s61, 1
        %s426 = smul.addr %s425, 192
        %s427 = scalar_lea.vmem [#allocation4], %s426
        %p428 = pneg %p74
        %p429 = pneg %p71
        %p430 = pneg %p95
        %p431 = pneg %p92
        %p432 = pneg %p116
        %p433 = pneg %p113
        %p434 = pneg %p137
        %p435 = pneg %p134
        %p436 = pneg %p158
        %p437 = pneg %p155
        %p438 = pneg %p179
        %p439 = pneg %p176
        %p440 = pneg %p200
        %p441 = pneg %p197
        %p442 = pneg %p226
        %p443 = pneg %p223
        %s444 = smul.u32 8, %s27
        %p445 = scmp.lt.s32.totalorder %s444, 15
        %s446 = scalar_select %p445, %s444, 15
        %s447 = smul.addr %s446, 8
        %s448 = scalar_lea.vmem %s8, %s447
        %s449 = smul.u32 8, %s27
        %s450 = smul.u32 8, %s27
        %s451 = smul.u32 8, %s27
        %p452 = scmp.lt.s32.totalorder %s451, 15
        %s453 = scalar_select %p452, %s451, 15
        %s454 = smul.addr %s453, 8
        %s455 = scalar_lea.vmem %s8, %s454
        %s456 = smul.u32 8, %s27
        %v457 = vld [vmem:[%s375] sm:$0xff]
        %v458 = vld [vmem:[%s375 + $0x8] sm:$0xff]
        %v459 = vld [vmem:[%s375 + $0x10] sm:$0xff]
        %v460 = vld [vmem:[%s375 + $0x18] sm:$0xff]
        %v461 = vld [vmem:[%s375 + $0x20] sm:$0xff]
        %v462 = vld [vmem:[%s375 + $0x28] sm:$0xff]
        %v463 = vld [vmem:[%s375 + $0x30] sm:$0xff]
        %v464 = vld [vmem:[%s375 + $0x38] sm:$0xff]
        %v465 = vld [vmem:[%s375 + $0x40] sm:$0xff]
        %v466 = vld [vmem:[%s375 + $0x48] sm:$0xff]
        %v467 = vld [vmem:[%s375 + $0x50] sm:$0xff]
        %v468 = vld [vmem:[%s375 + $0x58] sm:$0xff]
        %v469 = vld [vmem:[%s375 + $0x60] sm:$0xff]
        %v470 = vld [vmem:[%s375 + $0x68] sm:$0xff]
        %v471 = vld [vmem:[%s375 + $0x70] sm:$0xff]
        %v472 = vld [vmem:[%s375 + $0x78] sm:$0xff]
        %v473 = vld [vmem:[%s375 + $0x80] sm:$0xff]
        %v474 = vld [vmem:[%s375 + $0x88] sm:$0xff]
        %v475 = vld [vmem:[%s375 + $0x90] sm:$0xff]
        %v476 = vld [vmem:[%s375 + $0x98] sm:$0xff]
        %v477 = vld [vmem:[%s375 + $0xa0] sm:$0xff]
        %v478 = vld [vmem:[%s375 + $0xa8] sm:$0xff]
        %v479 = vld [vmem:[%s375 + $0xb0] sm:$0xff]
        %v480 = vld [vmem:[%s375 + $0xb8] sm:$0xff]
        %v481 = vld [vmem:[#allocation6] sm:$0xff]
        %v482 = vld [vmem:[#allocation6 + $0x8] sm:$0xff]
        %v483 = vld [vmem:[#allocation6 + $0x10] sm:$0xff]
        %v484 = vld [vmem:[#allocation6 + $0x18] sm:$0xff]
        %v485 = vld [vmem:[#allocation6 + $0x20] sm:$0xff]
        %v486 = vld [vmem:[#allocation6 + $0x28] sm:$0xff]
        %v487 = vld [vmem:[#allocation6 + $0x30] sm:$0xff]
        %v488 = vld [vmem:[#allocation6 + $0x38] sm:$0xff]
        %v489 = vld [vmem:[#allocation6 + $0x40] sm:$0xff]
        %v490 = vld [vmem:[#allocation6 + $0x48] sm:$0xff]
        %v491 = vld [vmem:[#allocation6 + $0x50] sm:$0xff]
        %v492 = vld [vmem:[#allocation6 + $0x58] sm:$0xff]
        %v493 = vld [vmem:[#allocation6 + $0x60] sm:$0xff]
        %v494 = vld [vmem:[#allocation6 + $0x68] sm:$0xff]
        %v495 = vld [vmem:[#allocation6 + $0x70] sm:$0xff]
        %v496 = vld [vmem:[#allocation6 + $0x78] sm:$0xff]
        %v497 = vld [vmem:[#allocation6 + $0x80] sm:$0xff]
        %v498 = vld [vmem:[#allocation6 + $0x88] sm:$0xff]
        %v499 = vld [vmem:[#allocation6 + $0x90] sm:$0xff]
        %v500 = vld [vmem:[#allocation6 + $0x98] sm:$0xff]
        %v501 = vld [vmem:[#allocation6 + $0xa0] sm:$0xff]
        %v502 = vld [vmem:[#allocation6 + $0xa8] sm:$0xff]
        %v503 = vld [vmem:[#allocation6 + $0xb0] sm:$0xff]
        %v504 = vld [vmem:[#allocation6 + $0xb8] sm:$0xff]
        %v505 = vld [vmem:[#allocation6 + $0xc0] sm:$0xff]
        %v506 = vld [vmem:[#allocation6 + $0xc8] sm:$0xff]
        %v507 = vld [vmem:[#allocation6 + $0xd0] sm:$0xff]
        %v508 = vld [vmem:[#allocation6 + $0xd8] sm:$0xff]
        %v509 = vld [vmem:[#allocation6 + $0xe0] sm:$0xff]
        %v510 = vld [vmem:[#allocation6 + $0xe8] sm:$0xff]
        %v511 = vld [vmem:[#allocation6 + $0xf0] sm:$0xff]
        %v512 = vld [vmem:[#allocation6 + $0xf8] sm:$0xff]
        %v513 = vld [vmem:[#allocation6 + $0x100] sm:$0xff]
        %v514 = vld [vmem:[#allocation6 + $0x108] sm:$0xff]
        %v515 = vld [vmem:[#allocation6 + $0x110] sm:$0xff]
        %v516 = vld [vmem:[#allocation6 + $0x118] sm:$0xff]
        %v517 = vld [vmem:[#allocation6 + $0x120] sm:$0xff]
        %v518 = vld [vmem:[#allocation6 + $0x128] sm:$0xff]
        %v519 = vld [vmem:[#allocation6 + $0x130] sm:$0xff]
        %v520 = vld [vmem:[#allocation6 + $0x138] sm:$0xff]
        %v521 = vld [vmem:[#allocation6 + $0x140] sm:$0xff]
        %v522 = vld [vmem:[#allocation6 + $0x148] sm:$0xff]
        %v523 = vld [vmem:[#allocation6 + $0x150] sm:$0xff]
        %v524 = vld [vmem:[#allocation6 + $0x158] sm:$0xff]
        %v525 = vld [vmem:[#allocation6 + $0x160] sm:$0xff]
        %v526 = vld [vmem:[#allocation6 + $0x168] sm:$0xff]
        %v527 = vld [vmem:[#allocation6 + $0x170] sm:$0xff]
        %v528 = vld [vmem:[#allocation6 + $0x178] sm:$0xff]
        %v529 = vld [vmem:[#allocation6 + $0x180] sm:$0xff]
        %v530 = vld [vmem:[#allocation6 + $0x188] sm:$0xff]
        %v531 = vld [vmem:[#allocation6 + $0x190] sm:$0xff]
        %v532 = vld [vmem:[#allocation6 + $0x198] sm:$0xff]
        %v533 = vld [vmem:[#allocation6 + $0x1a0] sm:$0xff]
        %v534 = vld [vmem:[#allocation6 + $0x1a8] sm:$0xff]
        %v535 = vld [vmem:[#allocation6 + $0x1b0] sm:$0xff]
        %v536 = vld [vmem:[#allocation6 + $0x1b8] sm:$0xff]
        %v537 = vld [vmem:[#allocation6 + $0x1c0] sm:$0xff]
        %v538 = vld [vmem:[#allocation6 + $0x1c8] sm:$0xff]
        %v539 = vld [vmem:[#allocation6 + $0x1d0] sm:$0xff]
        %v540 = vld [vmem:[#allocation6 + $0x1d8] sm:$0xff]
        %v541 = vld [vmem:[#allocation6 + $0x1e0] sm:$0xff]
        %v542 = vld [vmem:[#allocation6 + $0x1e8] sm:$0xff]
        %v543 = vld [vmem:[#allocation6 + $0x1f0] sm:$0xff]
        %v544 = vld [vmem:[#allocation6 + $0x1f8] sm:$0xff]
        %v545 = vld [vmem:[#allocation6 + $0x200] sm:$0xff]
        %v546 = vld [vmem:[#allocation6 + $0x208] sm:$0xff]
        %v547 = vld [vmem:[#allocation6 + $0x210] sm:$0xff]
        %v548 = vld [vmem:[#allocation6 + $0x218] sm:$0xff]
        %v549 = vld [vmem:[#allocation6 + $0x220] sm:$0xff]
        %v550 = vld [vmem:[#allocation6 + $0x228] sm:$0xff]
        %v551 = vld [vmem:[#allocation6 + $0x230] sm:$0xff]
        %v552 = vld [vmem:[#allocation6 + $0x238] sm:$0xff]
        %v553 = vld [vmem:[#allocation6 + $0x240] sm:$0xff]
        %v554 = vld [vmem:[#allocation6 + $0x248] sm:$0xff]
        %v555 = vld [vmem:[#allocation6 + $0x250] sm:$0xff]
        %v556 = vld [vmem:[#allocation6 + $0x258] sm:$0xff]
        %v557 = vld [vmem:[#allocation6 + $0x260] sm:$0xff]
        %v558 = vld [vmem:[#allocation6 + $0x268] sm:$0xff]
        %v559 = vld [vmem:[#allocation6 + $0x270] sm:$0xff]
        %v560 = vld [vmem:[#allocation6 + $0x278] sm:$0xff]
        %v561 = vld [vmem:[#allocation6 + $0x280] sm:$0xff]
        %v562 = vld [vmem:[#allocation6 + $0x288] sm:$0xff]
        %v563 = vld [vmem:[#allocation6 + $0x290] sm:$0xff]
        %v564 = vld [vmem:[#allocation6 + $0x298] sm:$0xff]
        %v565 = vld [vmem:[#allocation6 + $0x2a0] sm:$0xff]
        %v566 = vld [vmem:[#allocation6 + $0x2a8] sm:$0xff]
        %v567 = vld [vmem:[#allocation6 + $0x2b0] sm:$0xff]
        %v568 = vld [vmem:[#allocation6 + $0x2b8] sm:$0xff]
        %v569 = vld [vmem:[#allocation6 + $0x2c0] sm:$0xff]
        %v570 = vld [vmem:[#allocation6 + $0x2c8] sm:$0xff]
        %v571 = vld [vmem:[#allocation6 + $0x2d0] sm:$0xff]
        %v572 = vld [vmem:[#allocation6 + $0x2d8] sm:$0xff]
        %v573 = vld [vmem:[#allocation6 + $0x2e0] sm:$0xff]
        %v574 = vld [vmem:[#allocation6 + $0x2e8] sm:$0xff]
        %v575 = vld [vmem:[#allocation6 + $0x2f0] sm:$0xff]
        %v576 = vld [vmem:[#allocation6 + $0x2f8] sm:$0xff]
        %v577 = vld [vmem:[#allocation6 + $0x300] sm:$0xff]
        %v578 = vld [vmem:[#allocation6 + $0x308] sm:$0xff]
        %v579 = vld [vmem:[#allocation6 + $0x310] sm:$0xff]
        %v580 = vld [vmem:[#allocation6 + $0x318] sm:$0xff]
        %v581 = vld [vmem:[#allocation6 + $0x320] sm:$0xff]
        %v582 = vld [vmem:[#allocation6 + $0x328] sm:$0xff]
        %v583 = vld [vmem:[#allocation6 + $0x330] sm:$0xff]
        %v584 = vld [vmem:[#allocation6 + $0x338] sm:$0xff]
        %v585 = vld [vmem:[#allocation6 + $0x340] sm:$0xff]
        %v586 = vld [vmem:[#allocation6 + $0x348] sm:$0xff]
        %v587 = vld [vmem:[#allocation6 + $0x350] sm:$0xff]
        %v588 = vld [vmem:[#allocation6 + $0x358] sm:$0xff]
        %v589 = vld [vmem:[#allocation6 + $0x360] sm:$0xff]
        %v590 = vld [vmem:[#allocation6 + $0x368] sm:$0xff]
        %v591 = vld [vmem:[#allocation6 + $0x370] sm:$0xff]
        %v592 = vld [vmem:[#allocation6 + $0x378] sm:$0xff]
        %v593 = vld [vmem:[#allocation6 + $0x380] sm:$0xff]
        %v594 = vld [vmem:[#allocation6 + $0x388] sm:$0xff]
        %v595 = vld [vmem:[#allocation6 + $0x390] sm:$0xff]
        %v596 = vld [vmem:[#allocation6 + $0x398] sm:$0xff]
        %v597 = vld [vmem:[#allocation6 + $0x3a0] sm:$0xff]
        %v598 = vld [vmem:[#allocation6 + $0x3a8] sm:$0xff]
        %v599 = vld [vmem:[#allocation6 + $0x3b0] sm:$0xff]
        %v600 = vld [vmem:[#allocation6 + $0x3b8] sm:$0xff]
        %v601 = vld [vmem:[#allocation6 + $0x3c0] sm:$0xff]
        %v602 = vld [vmem:[#allocation6 + $0x3c8] sm:$0xff]
        %v603 = vld [vmem:[#allocation6 + $0x3d0] sm:$0xff]
        %v604 = vld [vmem:[#allocation6 + $0x3d8] sm:$0xff]
        %v605 = vld [vmem:[#allocation6 + $0x3e0] sm:$0xff]
        %v606 = vld [vmem:[#allocation6 + $0x3e8] sm:$0xff]
        %v607 = vld [vmem:[#allocation6 + $0x3f0] sm:$0xff]
        %v608 = vld [vmem:[#allocation6 + $0x3f8] sm:$0xff]
        %v609 = vld [vmem:[#allocation6 + $0x400] sm:$0xff]
        %v610 = vld [vmem:[#allocation6 + $0x408] sm:$0xff]
        %v611 = vld [vmem:[#allocation6 + $0x410] sm:$0xff]
        %v612 = vld [vmem:[#allocation6 + $0x418] sm:$0xff]
        %v613 = vld [vmem:[#allocation6 + $0x420] sm:$0xff]
        %v614 = vld [vmem:[#allocation6 + $0x428] sm:$0xff]
        %v615 = vld [vmem:[#allocation6 + $0x430] sm:$0xff]
        %v616 = vld [vmem:[#allocation6 + $0x438] sm:$0xff]
        %v617 = vld [vmem:[#allocation6 + $0x440] sm:$0xff]
        %v618 = vld [vmem:[#allocation6 + $0x448] sm:$0xff]
        %v619 = vld [vmem:[#allocation6 + $0x450] sm:$0xff]
        %v620 = vld [vmem:[#allocation6 + $0x458] sm:$0xff]
        %v621 = vld [vmem:[#allocation6 + $0x460] sm:$0xff]
        %v622 = vld [vmem:[#allocation6 + $0x468] sm:$0xff]
        %v623 = vld [vmem:[#allocation6 + $0x470] sm:$0xff]
        %v624 = vld [vmem:[#allocation6 + $0x478] sm:$0xff]
        %v625 = vld [vmem:[#allocation6 + $0x480] sm:$0xff]
        %v626 = vld [vmem:[#allocation6 + $0x488] sm:$0xff]
        %v627 = vld [vmem:[#allocation6 + $0x490] sm:$0xff]
        %v628 = vld [vmem:[#allocation6 + $0x498] sm:$0xff]
        %v629 = vld [vmem:[#allocation6 + $0x4a0] sm:$0xff]
        %v630 = vld [vmem:[#allocation6 + $0x4a8] sm:$0xff]
        %v631 = vld [vmem:[#allocation6 + $0x4b0] sm:$0xff]
        %v632 = vld [vmem:[#allocation6 + $0x4b8] sm:$0xff]
        %v633 = vld [vmem:[#allocation6 + $0x4c0] sm:$0xff]
        %v634 = vld [vmem:[#allocation6 + $0x4c8] sm:$0xff]
        %v635 = vld [vmem:[#allocation6 + $0x4d0] sm:$0xff]
        %v636 = vld [vmem:[#allocation6 + $0x4d8] sm:$0xff]
        %v637 = vld [vmem:[#allocation6 + $0x4e0] sm:$0xff]
        %v638 = vld [vmem:[#allocation6 + $0x4e8] sm:$0xff]
        %v639 = vld [vmem:[#allocation6 + $0x4f0] sm:$0xff]
        %v640 = vld [vmem:[#allocation6 + $0x4f8] sm:$0xff]
        %v641 = vld [vmem:[#allocation6 + $0x500] sm:$0xff]
        %v642 = vld [vmem:[#allocation6 + $0x508] sm:$0xff]
        %v643 = vld [vmem:[#allocation6 + $0x510] sm:$0xff]
        %v644 = vld [vmem:[#allocation6 + $0x518] sm:$0xff]
        %v645 = vld [vmem:[#allocation6 + $0x520] sm:$0xff]
        %v646 = vld [vmem:[#allocation6 + $0x528] sm:$0xff]
        %v647 = vld [vmem:[#allocation6 + $0x530] sm:$0xff]
        %v648 = vld [vmem:[#allocation6 + $0x538] sm:$0xff]
        %v649 = vld [vmem:[#allocation6 + $0x540] sm:$0xff]
        %v650 = vld [vmem:[#allocation6 + $0x548] sm:$0xff]
        %v651 = vld [vmem:[#allocation6 + $0x550] sm:$0xff]
        %v652 = vld [vmem:[#allocation6 + $0x558] sm:$0xff]
        %v653 = vld [vmem:[#allocation6 + $0x560] sm:$0xff]
        %v654 = vld [vmem:[#allocation6 + $0x568] sm:$0xff]
        %v655 = vld [vmem:[#allocation6 + $0x570] sm:$0xff]
        %v656 = vld [vmem:[#allocation6 + $0x578] sm:$0xff]
        %v657 = vld [vmem:[#allocation6 + $0x580] sm:$0xff]
        %v658 = vld [vmem:[#allocation6 + $0x588] sm:$0xff]
        %v659 = vld [vmem:[#allocation6 + $0x590] sm:$0xff]
        %v660 = vld [vmem:[#allocation6 + $0x598] sm:$0xff]
        %v661 = vld [vmem:[#allocation6 + $0x5a0] sm:$0xff]
        %v662 = vld [vmem:[#allocation6 + $0x5a8] sm:$0xff]
        %v663 = vld [vmem:[#allocation6 + $0x5b0] sm:$0xff]
        %v664 = vld [vmem:[#allocation6 + $0x5b8] sm:$0xff]
        %v665 = vld [vmem:[#allocation6 + $0x5c0] sm:$0xff]
        %v666 = vld [vmem:[#allocation6 + $0x5c8] sm:$0xff]
        %v667 = vld [vmem:[#allocation6 + $0x5d0] sm:$0xff]
        %v668 = vld [vmem:[#allocation6 + $0x5d8] sm:$0xff]
        %v669 = vld [vmem:[#allocation6 + $0x5e0] sm:$0xff]
        %v670 = vld [vmem:[#allocation6 + $0x5e8] sm:$0xff]
        %v671 = vld [vmem:[#allocation6 + $0x5f0] sm:$0xff]
        %v672 = vld [vmem:[#allocation6 + $0x5f8] sm:$0xff]
        %v697 = vunpack.c.l.b16 %v457
        %v698 = vunpack.c.h.b16 %v457
        %v699 = vunpack.c.l.b16 %v458
        %v700 = vunpack.c.h.b16 %v458
        %v701 = vunpack.c.l.b16 %v459
        %v702 = vunpack.c.h.b16 %v459
        %v703 = vunpack.c.l.b16 %v460
        %v704 = vunpack.c.h.b16 %v460
        %v705 = vunpack.c.l.b16 %v461
        %v706 = vunpack.c.h.b16 %v461
        %v707 = vunpack.c.l.b16 %v462
        %v708 = vunpack.c.h.b16 %v462
        %v709 = vunpack.c.l.b16 %v463
        %v710 = vunpack.c.h.b16 %v463
        %v711 = vunpack.c.l.b16 %v464
        %v712 = vunpack.c.h.b16 %v464
        %v713 = vunpack.c.l.b16 %v465
        %v714 = vunpack.c.h.b16 %v465
        %v715 = vunpack.c.l.b16 %v466
        %v716 = vunpack.c.h.b16 %v466
        %v717 = vunpack.c.l.b16 %v467
        %v718 = vunpack.c.h.b16 %v467
        %v719 = vunpack.c.l.b16 %v468
        %v720 = vunpack.c.h.b16 %v468
        %v721 = vunpack.c.l.b16 %v469
        %v722 = vunpack.c.h.b16 %v469
        %v723 = vunpack.c.l.b16 %v470
        %v724 = vunpack.c.h.b16 %v470
        %v725 = vunpack.c.l.b16 %v471
        %v726 = vunpack.c.h.b16 %v471
        %v727 = vunpack.c.l.b16 %v472
        %v728 = vunpack.c.h.b16 %v472
        %v729 = vunpack.c.l.b16 %v473
        %v730 = vunpack.c.h.b16 %v473
        %v731 = vunpack.c.l.b16 %v474
        %v732 = vunpack.c.h.b16 %v474
        %v733 = vunpack.c.l.b16 %v475
        %v734 = vunpack.c.h.b16 %v475
        %v735 = vunpack.c.l.b16 %v476
        %v736 = vunpack.c.h.b16 %v476
        %v737 = vunpack.c.l.b16 %v477
        %v738 = vunpack.c.h.b16 %v477
        %v739 = vunpack.c.l.b16 %v478
        %v740 = vunpack.c.h.b16 %v478
        %v741 = vunpack.c.l.b16 %v479
        %v742 = vunpack.c.h.b16 %v479
        %v743 = vunpack.c.l.b16 %v480
        %v744 = vunpack.c.h.b16 %v480
        %v745 = vpack.c.b16 %v703, %v697
        %v746 = vpack.c.b16 %v704, %v698
        %v747 = vpack.c.b16 %v705, %v699
        %v748 = vpack.c.b16 %v706, %v700
        %v749 = vpack.c.b16 %v707, %v701
        %v750 = vpack.c.b16 %v708, %v702
        %v751 = vpack.c.b16 %v715, %v709
        %v752 = vpack.c.b16 %v716, %v710
        %v753 = vpack.c.b16 %v717, %v711
        %v754 = vpack.c.b16 %v718, %v712
        %v755 = vpack.c.b16 %v719, %v713
        %v756 = vpack.c.b16 %v720, %v714
        %v757 = vpack.c.b16 %v727, %v721
        %v758 = vpack.c.b16 %v728, %v722
        %v759 = vpack.c.b16 %v729, %v723
        %v760 = vpack.c.b16 %v730, %v724
        %v761 = vpack.c.b16 %v731, %v725
        %v762 = vpack.c.b16 %v732, %v726
        %v763 = vpack.c.b16 %v739, %v733
        %v764 = vpack.c.b16 %v740, %v734
        %v765 = vpack.c.b16 %v741, %v735
        %v766 = vpack.c.b16 %v742, %v736
        %v767 = vpack.c.b16 %v743, %v737
        %v768 = vpack.c.b16 %v744, %v738
        %v985 = vunpack.c.l.b16 %v481
        %v986 = vunpack.c.h.b16 %v481
        %v987 = vunpack.c.l.b16 %v482
        %v988 = vunpack.c.h.b16 %v482
        %v989 = vunpack.c.l.b16 %v483
        %v990 = vunpack.c.h.b16 %v483
        %v991 = vunpack.c.l.b16 %v484
        %v992 = vunpack.c.h.b16 %v484
        %v993 = vunpack.c.l.b16 %v485
        %v994 = vunpack.c.h.b16 %v485
        %v995 = vunpack.c.l.b16 %v486
        %v996 = vunpack.c.h.b16 %v486
        %v997 = vunpack.c.l.b16 %v487
        %v998 = vunpack.c.h.b16 %v487
        %v999 = vunpack.c.l.b16 %v488
        %v1000 = vunpack.c.h.b16 %v488
        %v1001 = vunpack.c.l.b16 %v489
        %v1002 = vunpack.c.h.b16 %v489
        %v1003 = vunpack.c.l.b16 %v490
        %v1004 = vunpack.c.h.b16 %v490
        %v1005 = vunpack.c.l.b16 %v491
        %v1006 = vunpack.c.h.b16 %v491
        %v1007 = vunpack.c.l.b16 %v492
        %v1008 = vunpack.c.h.b16 %v492
        %v1009 = vunpack.c.l.b16 %v493
        %v1010 = vunpack.c.h.b16 %v493
        %v1011 = vunpack.c.l.b16 %v494
        %v1012 = vunpack.c.h.b16 %v494
        %v1013 = vunpack.c.l.b16 %v495
        %v1014 = vunpack.c.h.b16 %v495
        %v1015 = vunpack.c.l.b16 %v496
        %v1016 = vunpack.c.h.b16 %v496
        %v1017 = vunpack.c.l.b16 %v497
        %v1018 = vunpack.c.h.b16 %v497
        %v1019 = vunpack.c.l.b16 %v498
        %v1020 = vunpack.c.h.b16 %v498
        %v1021 = vunpack.c.l.b16 %v499
        %v1022 = vunpack.c.h.b16 %v499
        %v1023 = vunpack.c.l.b16 %v500
        %v1024 = vunpack.c.h.b16 %v500
        %v1025 = vunpack.c.l.b16 %v501
        %v1026 = vunpack.c.h.b16 %v501
        %v1027 = vunpack.c.l.b16 %v502
        %v1028 = vunpack.c.h.b16 %v502
        %v1029 = vunpack.c.l.b16 %v503
        %v1030 = vunpack.c.h.b16 %v503
        %v1031 = vunpack.c.l.b16 %v504
        %v1032 = vunpack.c.h.b16 %v504
        %v1033 = vunpack.c.l.b16 %v505
        %v1034 = vunpack.c.h.b16 %v505
        %v1035 = vunpack.c.l.b16 %v506
        %v1036 = vunpack.c.h.b16 %v506
        %v1037 = vunpack.c.l.b16 %v507
        %v1038 = vunpack.c.h.b16 %v507
        %v1039 = vunpack.c.l.b16 %v508
        %v1040 = vunpack.c.h.b16 %v508
        %v1041 = vunpack.c.l.b16 %v509
        %v1042 = vunpack.c.h.b16 %v509
        %v1043 = vunpack.c.l.b16 %v510
        %v1044 = vunpack.c.h.b16 %v510
        %v1045 = vunpack.c.l.b16 %v511
        %v1046 = vunpack.c.h.b16 %v511
        %v1047 = vunpack.c.l.b16 %v512
        %v1048 = vunpack.c.h.b16 %v512
        %v1049 = vunpack.c.l.b16 %v513
        %v1050 = vunpack.c.h.b16 %v513
        %v1051 = vunpack.c.l.b16 %v514
        %v1052 = vunpack.c.h.b16 %v514
        %v1053 = vunpack.c.l.b16 %v515
        %v1054 = vunpack.c.h.b16 %v515
        %v1055 = vunpack.c.l.b16 %v516
        %v1056 = vunpack.c.h.b16 %v516
        %v1057 = vunpack.c.l.b16 %v517
        %v1058 = vunpack.c.h.b16 %v517
        %v1059 = vunpack.c.l.b16 %v518
        %v1060 = vunpack.c.h.b16 %v518
        %v1061 = vunpack.c.l.b16 %v519
        %v1062 = vunpack.c.h.b16 %v519
        %v1063 = vunpack.c.l.b16 %v520
        %v1064 = vunpack.c.h.b16 %v520
        %v1065 = vunpack.c.l.b16 %v521
        %v1066 = vunpack.c.h.b16 %v521
        %v1067 = vunpack.c.l.b16 %v522
        %v1068 = vunpack.c.h.b16 %v522
        %v1069 = vunpack.c.l.b16 %v523
        %v1070 = vunpack.c.h.b16 %v523
        %v1071 = vunpack.c.l.b16 %v524
        %v1072 = vunpack.c.h.b16 %v524
        %v1073 = vunpack.c.l.b16 %v525
        %v1074 = vunpack.c.h.b16 %v525
        %v1075 = vunpack.c.l.b16 %v526
        %v1076 = vunpack.c.h.b16 %v526
        %v1077 = vunpack.c.l.b16 %v527
        %v1078 = vunpack.c.h.b16 %v527
        %v1079 = vunpack.c.l.b16 %v528
        %v1080 = vunpack.c.h.b16 %v528
        %v1081 = vunpack.c.l.b16 %v529
        %v1082 = vunpack.c.h.b16 %v529
        %v1083 = vunpack.c.l.b16 %v530
        %v1084 = vunpack.c.h.b16 %v530
        %v1085 = vunpack.c.l.b16 %v531
        %v1086 = vunpack.c.h.b16 %v531
        %v1087 = vunpack.c.l.b16 %v532
        %v1088 = vunpack.c.h.b16 %v532
        %v1089 = vunpack.c.l.b16 %v533
        %v1090 = vunpack.c.h.b16 %v533
        %v1091 = vunpack.c.l.b16 %v534
        %v1092 = vunpack.c.h.b16 %v534
        %v1093 = vunpack.c.l.b16 %v535
        %v1094 = vunpack.c.h.b16 %v535
        %v1095 = vunpack.c.l.b16 %v536
        %v1096 = vunpack.c.h.b16 %v536
        %v1097 = vunpack.c.l.b16 %v537
        %v1098 = vunpack.c.h.b16 %v537
        %v1099 = vunpack.c.l.b16 %v538
        %v1100 = vunpack.c.h.b16 %v538
        %v1101 = vunpack.c.l.b16 %v539
        %v1102 = vunpack.c.h.b16 %v539
        %v1103 = vunpack.c.l.b16 %v540
        %v1104 = vunpack.c.h.b16 %v540
        %v1105 = vunpack.c.l.b16 %v541
        %v1106 = vunpack.c.h.b16 %v541
        %v1107 = vunpack.c.l.b16 %v542
        %v1108 = vunpack.c.h.b16 %v542
        %v1109 = vunpack.c.l.b16 %v543
        %v1110 = vunpack.c.h.b16 %v543
        %v1111 = vunpack.c.l.b16 %v544
        %v1112 = vunpack.c.h.b16 %v544
        %v1113 = vunpack.c.l.b16 %v545
        %v1114 = vunpack.c.h.b16 %v545
        %v1115 = vunpack.c.l.b16 %v546
        %v1116 = vunpack.c.h.b16 %v546
        %v1117 = vunpack.c.l.b16 %v547
        %v1118 = vunpack.c.h.b16 %v547
        %v1119 = vunpack.c.l.b16 %v548
        %v1120 = vunpack.c.h.b16 %v548
        %v1121 = vunpack.c.l.b16 %v549
        %v1122 = vunpack.c.h.b16 %v549
        %v1123 = vunpack.c.l.b16 %v550
        %v1124 = vunpack.c.h.b16 %v550
        %v1125 = vunpack.c.l.b16 %v551
        %v1126 = vunpack.c.h.b16 %v551
        %v1127 = vunpack.c.l.b16 %v552
        %v1128 = vunpack.c.h.b16 %v552
        %v1129 = vunpack.c.l.b16 %v553
        %v1130 = vunpack.c.h.b16 %v553
        %v1131 = vunpack.c.l.b16 %v554
        %v1132 = vunpack.c.h.b16 %v554
        %v1133 = vunpack.c.l.b16 %v555
        %v1134 = vunpack.c.h.b16 %v555
        %v1135 = vunpack.c.l.b16 %v556
        %v1136 = vunpack.c.h.b16 %v556
        %v1137 = vunpack.c.l.b16 %v557
        %v1138 = vunpack.c.h.b16 %v557
        %v1139 = vunpack.c.l.b16 %v558
        %v1140 = vunpack.c.h.b16 %v558
        %v1141 = vunpack.c.l.b16 %v559
        %v1142 = vunpack.c.h.b16 %v559
        %v1143 = vunpack.c.l.b16 %v560
        %v1144 = vunpack.c.h.b16 %v560
        %v1145 = vunpack.c.l.b16 %v561
        %v1146 = vunpack.c.h.b16 %v561
        %v1147 = vunpack.c.l.b16 %v562
        %v1148 = vunpack.c.h.b16 %v562
        %v1149 = vunpack.c.l.b16 %v563
        %v1150 = vunpack.c.h.b16 %v563
        %v1151 = vunpack.c.l.b16 %v564
        %v1152 = vunpack.c.h.b16 %v564
        %v1153 = vunpack.c.l.b16 %v565
        %v1154 = vunpack.c.h.b16 %v565
        %v1155 = vunpack.c.l.b16 %v566
        %v1156 = vunpack.c.h.b16 %v566
        %v1157 = vunpack.c.l.b16 %v567
        %v1158 = vunpack.c.h.b16 %v567
        %v1159 = vunpack.c.l.b16 %v568
        %v1160 = vunpack.c.h.b16 %v568
        %v1161 = vunpack.c.l.b16 %v569
        %v1162 = vunpack.c.h.b16 %v569
        %v1163 = vunpack.c.l.b16 %v570
        %v1164 = vunpack.c.h.b16 %v570
        %v1165 = vunpack.c.l.b16 %v571
        %v1166 = vunpack.c.h.b16 %v571
        %v1167 = vunpack.c.l.b16 %v572
        %v1168 = vunpack.c.h.b16 %v572
        %v1169 = vunpack.c.l.b16 %v573
        %v1170 = vunpack.c.h.b16 %v573
        %v1171 = vunpack.c.l.b16 %v574
        %v1172 = vunpack.c.h.b16 %v574
        %v1173 = vunpack.c.l.b16 %v575
        %v1174 = vunpack.c.h.b16 %v575
        %v1175 = vunpack.c.l.b16 %v576
        %v1176 = vunpack.c.h.b16 %v576
        %v1177 = vunpack.c.l.b16 %v577
        %v1178 = vunpack.c.h.b16 %v577
        %v1179 = vunpack.c.l.b16 %v578
        %v1180 = vunpack.c.h.b16 %v578
        %v1181 = vunpack.c.l.b16 %v579
        %v1182 = vunpack.c.h.b16 %v579
        %v1183 = vunpack.c.l.b16 %v580
        %v1184 = vunpack.c.h.b16 %v580
        %v1185 = vunpack.c.l.b16 %v581
        %v1186 = vunpack.c.h.b16 %v581
        %v1187 = vunpack.c.l.b16 %v582
        %v1188 = vunpack.c.h.b16 %v582
        %v1189 = vunpack.c.l.b16 %v583
        %v1190 = vunpack.c.h.b16 %v583
        %v1191 = vunpack.c.l.b16 %v584
        %v1192 = vunpack.c.h.b16 %v584
        %v1193 = vunpack.c.l.b16 %v585
        %v1194 = vunpack.c.h.b16 %v585
        %v1195 = vunpack.c.l.b16 %v586
        %v1196 = vunpack.c.h.b16 %v586
        %v1197 = vunpack.c.l.b16 %v587
        %v1198 = vunpack.c.h.b16 %v587
        %v1199 = vunpack.c.l.b16 %v588
        %v1200 = vunpack.c.h.b16 %v588
        %v1201 = vunpack.c.l.b16 %v589
        %v1202 = vunpack.c.h.b16 %v589
        %v1203 = vunpack.c.l.b16 %v590
        %v1204 = vunpack.c.h.b16 %v590
        %v1205 = vunpack.c.l.b16 %v591
        %v1206 = vunpack.c.h.b16 %v591
        %v1207 = vunpack.c.l.b16 %v592
        %v1208 = vunpack.c.h.b16 %v592
        %v1209 = vunpack.c.l.b16 %v593
        %v1210 = vunpack.c.h.b16 %v593
        %v1211 = vunpack.c.l.b16 %v594
        %v1212 = vunpack.c.h.b16 %v594
        %v1213 = vunpack.c.l.b16 %v595
        %v1214 = vunpack.c.h.b16 %v595
        %v1215 = vunpack.c.l.b16 %v596
        %v1216 = vunpack.c.h.b16 %v596
        %v1217 = vunpack.c.l.b16 %v597
        %v1218 = vunpack.c.h.b16 %v597
        %v1219 = vunpack.c.l.b16 %v598
        %v1220 = vunpack.c.h.b16 %v598
        %v1221 = vunpack.c.l.b16 %v599
        %v1222 = vunpack.c.h.b16 %v599
        %v1223 = vunpack.c.l.b16 %v600
        %v1224 = vunpack.c.h.b16 %v600
        %v1225 = vunpack.c.l.b16 %v601
        %v1226 = vunpack.c.h.b16 %v601
        %v1227 = vunpack.c.l.b16 %v602
        %v1228 = vunpack.c.h.b16 %v602
        %v1229 = vunpack.c.l.b16 %v603
        %v1230 = vunpack.c.h.b16 %v603
        %v1231 = vunpack.c.l.b16 %v604
        %v1232 = vunpack.c.h.b16 %v604
        %v1233 = vunpack.c.l.b16 %v605
        %v1234 = vunpack.c.h.b16 %v605
        %v1235 = vunpack.c.l.b16 %v606
        %v1236 = vunpack.c.h.b16 %v606
        %v1237 = vunpack.c.l.b16 %v607
        %v1238 = vunpack.c.h.b16 %v607
        %v1239 = vunpack.c.l.b16 %v608
        %v1240 = vunpack.c.h.b16 %v608
        %v1241 = vunpack.c.l.b16 %v609
        %v1242 = vunpack.c.h.b16 %v609
        %v1243 = vunpack.c.l.b16 %v610
        %v1244 = vunpack.c.h.b16 %v610
        %v1245 = vunpack.c.l.b16 %v611
        %v1246 = vunpack.c.h.b16 %v611
        %v1247 = vunpack.c.l.b16 %v612
        %v1248 = vunpack.c.h.b16 %v612
        %v1249 = vunpack.c.l.b16 %v613
        %v1250 = vunpack.c.h.b16 %v613
        %v1251 = vunpack.c.l.b16 %v614
        %v1252 = vunpack.c.h.b16 %v614
        %v1253 = vunpack.c.l.b16 %v615
        %v1254 = vunpack.c.h.b16 %v615
        %v1255 = vunpack.c.l.b16 %v616
        %v1256 = vunpack.c.h.b16 %v616
        %v1257 = vunpack.c.l.b16 %v617
        %v1258 = vunpack.c.h.b16 %v617
        %v1259 = vunpack.c.l.b16 %v618
        %v1260 = vunpack.c.h.b16 %v618
        %v1261 = vunpack.c.l.b16 %v619
        %v1262 = vunpack.c.h.b16 %v619
        %v1263 = vunpack.c.l.b16 %v620
        %v1264 = vunpack.c.h.b16 %v620
        %v1265 = vunpack.c.l.b16 %v621
        %v1266 = vunpack.c.h.b16 %v621
        %v1267 = vunpack.c.l.b16 %v622
        %v1268 = vunpack.c.h.b16 %v622
        %v1269 = vunpack.c.l.b16 %v623
        %v1270 = vunpack.c.h.b16 %v623
        %v1271 = vunpack.c.l.b16 %v624
        %v1272 = vunpack.c.h.b16 %v624
        %v1273 = vunpack.c.l.b16 %v625
        %v1274 = vunpack.c.h.b16 %v625
        %v1275 = vunpack.c.l.b16 %v626
        %v1276 = vunpack.c.h.b16 %v626
        %v1277 = vunpack.c.l.b16 %v627
        %v1278 = vunpack.c.h.b16 %v627
        %v1279 = vunpack.c.l.b16 %v628
        %v1280 = vunpack.c.h.b16 %v628
        %v1281 = vunpack.c.l.b16 %v629
        %v1282 = vunpack.c.h.b16 %v629
        %v1283 = vunpack.c.l.b16 %v630
        %v1284 = vunpack.c.h.b16 %v630
        %v1285 = vunpack.c.l.b16 %v631
        %v1286 = vunpack.c.h.b16 %v631
        %v1287 = vunpack.c.l.b16 %v632
        %v1288 = vunpack.c.h.b16 %v632
        %v1289 = vunpack.c.l.b16 %v633
        %v1290 = vunpack.c.h.b16 %v633
        %v1291 = vunpack.c.l.b16 %v634
        %v1292 = vunpack.c.h.b16 %v634
        %v1293 = vunpack.c.l.b16 %v635
        %v1294 = vunpack.c.h.b16 %v635
        %v1295 = vunpack.c.l.b16 %v636
        %v1296 = vunpack.c.h.b16 %v636
        %v1297 = vunpack.c.l.b16 %v637
        %v1298 = vunpack.c.h.b16 %v637
        %v1299 = vunpack.c.l.b16 %v638
        %v1300 = vunpack.c.h.b16 %v638
        %v1301 = vunpack.c.l.b16 %v639
        %v1302 = vunpack.c.h.b16 %v639
        %v1303 = vunpack.c.l.b16 %v640
        %v1304 = vunpack.c.h.b16 %v640
        %v1305 = vunpack.c.l.b16 %v641
        %v1306 = vunpack.c.h.b16 %v641
        %v1307 = vunpack.c.l.b16 %v642
        %v1308 = vunpack.c.h.b16 %v642
        %v1309 = vunpack.c.l.b16 %v643
        %v1310 = vunpack.c.h.b16 %v643
        %v1311 = vunpack.c.l.b16 %v644
        %v1312 = vunpack.c.h.b16 %v644
        %v1313 = vunpack.c.l.b16 %v645
        %v1314 = vunpack.c.h.b16 %v645
        %v1315 = vunpack.c.l.b16 %v646
        %v1316 = vunpack.c.h.b16 %v646
        %v1317 = vunpack.c.l.b16 %v647
        %v1318 = vunpack.c.h.b16 %v647
        %v1319 = vunpack.c.l.b16 %v648
        %v1320 = vunpack.c.h.b16 %v648
        %v1321 = vunpack.c.l.b16 %v649
        %v1322 = vunpack.c.h.b16 %v649
        %v1323 = vunpack.c.l.b16 %v650
        %v1324 = vunpack.c.h.b16 %v650
        %v1325 = vunpack.c.l.b16 %v651
        %v1326 = vunpack.c.h.b16 %v651
        %v1327 = vunpack.c.l.b16 %v652
        %v1328 = vunpack.c.h.b16 %v652
        %v1329 = vunpack.c.l.b16 %v653
        %v1330 = vunpack.c.h.b16 %v653
        %v1331 = vunpack.c.l.b16 %v654
        %v1332 = vunpack.c.h.b16 %v654
        %v1333 = vunpack.c.l.b16 %v655
        %v1334 = vunpack.c.h.b16 %v655
        %v1335 = vunpack.c.l.b16 %v656
        %v1336 = vunpack.c.h.b16 %v656
        %v1337 = vunpack.c.l.b16 %v657
        %v1338 = vunpack.c.h.b16 %v657
        %v1339 = vunpack.c.l.b16 %v658
        %v1340 = vunpack.c.h.b16 %v658
        %v1341 = vunpack.c.l.b16 %v659
        %v1342 = vunpack.c.h.b16 %v659
        %v1343 = vunpack.c.l.b16 %v660
        %v1344 = vunpack.c.h.b16 %v660
        %v1345 = vunpack.c.l.b16 %v661
        %v1346 = vunpack.c.h.b16 %v661
        %v1347 = vunpack.c.l.b16 %v662
        %v1348 = vunpack.c.h.b16 %v662
        %v1349 = vunpack.c.l.b16 %v663
        %v1350 = vunpack.c.h.b16 %v663
        %v1351 = vunpack.c.l.b16 %v664
        %v1352 = vunpack.c.h.b16 %v664
        %v1353 = vunpack.c.l.b16 %v665
        %v1354 = vunpack.c.h.b16 %v665
        %v1355 = vunpack.c.l.b16 %v666
        %v1356 = vunpack.c.h.b16 %v666
        %v1357 = vunpack.c.l.b16 %v667
        %v1358 = vunpack.c.h.b16 %v667
        %v1359 = vunpack.c.l.b16 %v668
        %v1360 = vunpack.c.h.b16 %v668
        %v1361 = vunpack.c.l.b16 %v669
        %v1362 = vunpack.c.h.b16 %v669
        %v1363 = vunpack.c.l.b16 %v670
        %v1364 = vunpack.c.h.b16 %v670
        %v1365 = vunpack.c.l.b16 %v671
        %v1366 = vunpack.c.h.b16 %v671
        %v1367 = vunpack.c.l.b16 %v672
        %v1368 = vunpack.c.h.b16 %v672
        %v1369 = vpack.c.b16 %v989, %v985
        %v1370 = vpack.c.b16 %v990, %v986
        %v1371 = vpack.c.b16 %v991, %v987
        %v1372 = vpack.c.b16 %v992, %v988
        %v1373 = vpack.c.b16 %v997, %v993
        %v1374 = vpack.c.b16 %v998, %v994
        %v1375 = vpack.c.b16 %v999, %v995
        %v1376 = vpack.c.b16 %v1000, %v996
        %v1377 = vpack.c.b16 %v1005, %v1001
        %v1378 = vpack.c.b16 %v1006, %v1002
        %v1379 = vpack.c.b16 %v1007, %v1003
        %v1380 = vpack.c.b16 %v1008, %v1004
        %v1381 = vpack.c.b16 %v1013, %v1009
        %v1382 = vpack.c.b16 %v1014, %v1010
        %v1383 = vpack.c.b16 %v1015, %v1011
        %v1384 = vpack.c.b16 %v1016, %v1012
        %v1385 = vpack.c.b16 %v1021, %v1017
        %v1386 = vpack.c.b16 %v1022, %v1018
        %v1387 = vpack.c.b16 %v1023, %v1019
        %v1388 = vpack.c.b16 %v1024, %v1020
        %v1389 = vpack.c.b16 %v1029, %v1025
        %v1390 = vpack.c.b16 %v1030, %v1026
        %v1391 = vpack.c.b16 %v1031, %v1027
        %v1392 = vpack.c.b16 %v1032, %v1028
        %v1393 = vpack.c.b16 %v1037, %v1033
        %v1394 = vpack.c.b16 %v1038, %v1034
        %v1395 = vpack.c.b16 %v1039, %v1035
        %v1396 = vpack.c.b16 %v1040, %v1036
        %v1397 = vpack.c.b16 %v1045, %v1041
        %v1398 = vpack.c.b16 %v1046, %v1042
        %v1399 = vpack.c.b16 %v1047, %v1043
        %v1400 = vpack.c.b16 %v1048, %v1044
        %v1401 = vpack.c.b16 %v1053, %v1049
        %v1402 = vpack.c.b16 %v1054, %v1050
        %v1403 = vpack.c.b16 %v1055, %v1051
        %v1404 = vpack.c.b16 %v1056, %v1052
        %v1405 = vpack.c.b16 %v1061, %v1057
        %v1406 = vpack.c.b16 %v1062, %v1058
        %v1407 = vpack.c.b16 %v1063, %v1059
        %v1408 = vpack.c.b16 %v1064, %v1060
        %v1409 = vpack.c.b16 %v1069, %v1065
        %v1410 = vpack.c.b16 %v1070, %v1066
        %v1411 = vpack.c.b16 %v1071, %v1067
        %v1412 = vpack.c.b16 %v1072, %v1068
        %v1413 = vpack.c.b16 %v1077, %v1073
        %v1414 = vpack.c.b16 %v1078, %v1074
        %v1415 = vpack.c.b16 %v1079, %v1075
        %v1416 = vpack.c.b16 %v1080, %v1076
        %v1417 = vpack.c.b16 %v1085, %v1081
        %v1418 = vpack.c.b16 %v1086, %v1082
        %v1419 = vpack.c.b16 %v1087, %v1083
        %v1420 = vpack.c.b16 %v1088, %v1084
        %v1421 = vpack.c.b16 %v1093, %v1089
        %v1422 = vpack.c.b16 %v1094, %v1090
        %v1423 = vpack.c.b16 %v1095, %v1091
        %v1424 = vpack.c.b16 %v1096, %v1092
        %v1425 = vpack.c.b16 %v1101, %v1097
        %v1426 = vpack.c.b16 %v1102, %v1098
        %v1427 = vpack.c.b16 %v1103, %v1099
        %v1428 = vpack.c.b16 %v1104, %v1100
        %v1429 = vpack.c.b16 %v1109, %v1105
        %v1430 = vpack.c.b16 %v1110, %v1106
        %v1431 = vpack.c.b16 %v1111, %v1107
        %v1432 = vpack.c.b16 %v1112, %v1108
        %v1433 = vpack.c.b16 %v1117, %v1113
        %v1434 = vpack.c.b16 %v1118, %v1114
        %v1435 = vpack.c.b16 %v1119, %v1115
        %v1436 = vpack.c.b16 %v1120, %v1116
        %v1437 = vpack.c.b16 %v1125, %v1121
        %v1438 = vpack.c.b16 %v1126, %v1122
        %v1439 = vpack.c.b16 %v1127, %v1123
        %v1440 = vpack.c.b16 %v1128, %v1124
        %v1441 = vpack.c.b16 %v1133, %v1129
        %v1442 = vpack.c.b16 %v1134, %v1130
        %v1443 = vpack.c.b16 %v1135, %v1131
        %v1444 = vpack.c.b16 %v1136, %v1132
        %v1445 = vpack.c.b16 %v1141, %v1137
        %v1446 = vpack.c.b16 %v1142, %v1138
        %v1447 = vpack.c.b16 %v1143, %v1139
        %v1448 = vpack.c.b16 %v1144, %v1140
        %v1449 = vpack.c.b16 %v1149, %v1145
        %v1450 = vpack.c.b16 %v1150, %v1146
        %v1451 = vpack.c.b16 %v1151, %v1147
        %v1452 = vpack.c.b16 %v1152, %v1148
        %v1453 = vpack.c.b16 %v1157, %v1153
        %v1454 = vpack.c.b16 %v1158, %v1154
        %v1455 = vpack.c.b16 %v1159, %v1155
        %v1456 = vpack.c.b16 %v1160, %v1156
        %v1457 = vpack.c.b16 %v1165, %v1161
        %v1458 = vpack.c.b16 %v1166, %v1162
        %v1459 = vpack.c.b16 %v1167, %v1163
        %v1460 = vpack.c.b16 %v1168, %v1164
        %v1461 = vpack.c.b16 %v1173, %v1169
        %v1462 = vpack.c.b16 %v1174, %v1170
        %v1463 = vpack.c.b16 %v1175, %v1171
        %v1464 = vpack.c.b16 %v1176, %v1172
        %v1465 = vpack.c.b16 %v1181, %v1177
        %v1466 = vpack.c.b16 %v1182, %v1178
        %v1467 = vpack.c.b16 %v1183, %v1179
        %v1468 = vpack.c.b16 %v1184, %v1180
        %v1469 = vpack.c.b16 %v1189, %v1185
        %v1470 = vpack.c.b16 %v1190, %v1186
        %v1471 = vpack.c.b16 %v1191, %v1187
        %v1472 = vpack.c.b16 %v1192, %v1188
        %v1473 = vpack.c.b16 %v1197, %v1193
        %v1474 = vpack.c.b16 %v1198, %v1194
        %v1475 = vpack.c.b16 %v1199, %v1195
        %v1476 = vpack.c.b16 %v1200, %v1196
        %v1477 = vpack.c.b16 %v1205, %v1201
        %v1478 = vpack.c.b16 %v1206, %v1202
        %v1479 = vpack.c.b16 %v1207, %v1203
        %v1480 = vpack.c.b16 %v1208, %v1204
        %v1481 = vpack.c.b16 %v1213, %v1209
        %v1482 = vpack.c.b16 %v1214, %v1210
        %v1483 = vpack.c.b16 %v1215, %v1211
        %v1484 = vpack.c.b16 %v1216, %v1212
        %v1485 = vpack.c.b16 %v1221, %v1217
        %v1486 = vpack.c.b16 %v1222, %v1218
        %v1487 = vpack.c.b16 %v1223, %v1219
        %v1488 = vpack.c.b16 %v1224, %v1220
        %v1489 = vpack.c.b16 %v1229, %v1225
        %v1490 = vpack.c.b16 %v1230, %v1226
        %v1491 = vpack.c.b16 %v1231, %v1227
        %v1492 = vpack.c.b16 %v1232, %v1228
        %v1493 = vpack.c.b16 %v1237, %v1233
        %v1494 = vpack.c.b16 %v1238, %v1234
        %v1495 = vpack.c.b16 %v1239, %v1235
        %v1496 = vpack.c.b16 %v1240, %v1236
        %v1497 = vpack.c.b16 %v1245, %v1241
        %v1498 = vpack.c.b16 %v1246, %v1242
        %v1499 = vpack.c.b16 %v1247, %v1243
        %v1500 = vpack.c.b16 %v1248, %v1244
        %v1501 = vpack.c.b16 %v1253, %v1249
        %v1502 = vpack.c.b16 %v1254, %v1250
        %v1503 = vpack.c.b16 %v1255, %v1251
        %v1504 = vpack.c.b16 %v1256, %v1252
        %v1505 = vpack.c.b16 %v1261, %v1257
        %v1506 = vpack.c.b16 %v1262, %v1258
        %v1507 = vpack.c.b16 %v1263, %v1259
        %v1508 = vpack.c.b16 %v1264, %v1260
        %v1509 = vpack.c.b16 %v1269, %v1265
        %v1510 = vpack.c.b16 %v1270, %v1266
        %v1511 = vpack.c.b16 %v1271, %v1267
        %v1512 = vpack.c.b16 %v1272, %v1268
        %v1513 = vpack.c.b16 %v1277, %v1273
        %v1514 = vpack.c.b16 %v1278, %v1274
        %v1515 = vpack.c.b16 %v1279, %v1275
        %v1516 = vpack.c.b16 %v1280, %v1276
        %v1517 = vpack.c.b16 %v1285, %v1281
        %v1518 = vpack.c.b16 %v1286, %v1282
        %v1519 = vpack.c.b16 %v1287, %v1283
        %v1520 = vpack.c.b16 %v1288, %v1284
        %v1521 = vpack.c.b16 %v1293, %v1289
        %v1522 = vpack.c.b16 %v1294, %v1290
        %v1523 = vpack.c.b16 %v1295, %v1291
        %v1524 = vpack.c.b16 %v1296, %v1292
        %v1525 = vpack.c.b16 %v1301, %v1297
        %v1526 = vpack.c.b16 %v1302, %v1298
        %v1527 = vpack.c.b16 %v1303, %v1299
        %v1528 = vpack.c.b16 %v1304, %v1300
        %v1529 = vpack.c.b16 %v1309, %v1305
        %v1530 = vpack.c.b16 %v1310, %v1306
        %v1531 = vpack.c.b16 %v1311, %v1307
        %v1532 = vpack.c.b16 %v1312, %v1308
        %v1533 = vpack.c.b16 %v1317, %v1313
        %v1534 = vpack.c.b16 %v1318, %v1314
        %v1535 = vpack.c.b16 %v1319, %v1315
        %v1536 = vpack.c.b16 %v1320, %v1316
        %v1537 = vpack.c.b16 %v1325, %v1321
        %v1538 = vpack.c.b16 %v1326, %v1322
        %v1539 = vpack.c.b16 %v1327, %v1323
        %v1540 = vpack.c.b16 %v1328, %v1324
        %v1541 = vpack.c.b16 %v1333, %v1329
        %v1542 = vpack.c.b16 %v1334, %v1330
        %v1543 = vpack.c.b16 %v1335, %v1331
        %v1544 = vpack.c.b16 %v1336, %v1332
        %v1545 = vpack.c.b16 %v1341, %v1337
        %v1546 = vpack.c.b16 %v1342, %v1338
        %v1547 = vpack.c.b16 %v1343, %v1339
        %v1548 = vpack.c.b16 %v1344, %v1340
        %v1549 = vpack.c.b16 %v1349, %v1345
        %v1550 = vpack.c.b16 %v1350, %v1346
        %v1551 = vpack.c.b16 %v1351, %v1347
        %v1552 = vpack.c.b16 %v1352, %v1348
        %v1553 = vpack.c.b16 %v1357, %v1353
        %v1554 = vpack.c.b16 %v1358, %v1354
        %v1555 = vpack.c.b16 %v1359, %v1355
        %v1556 = vpack.c.b16 %v1360, %v1356
        %v1557 = vpack.c.b16 %v1365, %v1361
        %v1558 = vpack.c.b16 %v1366, %v1362
        %v1559 = vpack.c.b16 %v1367, %v1363
        %v1560 = vpack.c.b16 %v1368, %v1364
        %1753 = vmatpush.bf16.msra.mxu0 %v1397
        %1754 = vmatpush.bf16.msra.mxu0 %v1393
        %1755 = vmatpush.bf16.msra.mxu0 %v1389
        %1756 = vmatpush.bf16.msra.mxu0 %v1385
        %1757 = vmatpush.bf16.msra.mxu0 %v1381
        %1758 = vmatpush.bf16.msra.mxu0 %v1377
        %1759 = vmatpush.bf16.msra.mxu0 %v1373
        %1760 = vmatpush.bf16.msra.mxu0 %v1369
        %1761 = vmatmul.bf16.gmra.mxu0 %v745
        %v1762 = vpop.f32.mrf.mxu0
        %v1763 = vadd.f32 0.0, %v1762
        %v1764 = vpop.f32.mrf.mxu0
        %v1765 = vadd.f32 0.0, %v1764
        %1766 = vmatmul.bf16.gmra.mxu0 %v751
        %v1767 = vpop.f32.mrf.mxu0
        %v1768 = vadd.f32 0.0, %v1767
        %v1769 = vpop.f32.mrf.mxu0
        %v1770 = vadd.f32 0.0, %v1769
        %1771 = vmatmul.bf16.gmra.mxu0 %v757
        %v1772 = vpop.f32.mrf.mxu0
        %v1773 = vadd.f32 0.0, %v1772
        %v1774 = vpop.f32.mrf.mxu0
        %v1775 = vadd.f32 0.0, %v1774
        %1776 = vmatmul.bf16.gmra.mxu0 %v763
        %v1777 = vpop.f32.mrf.mxu0
        %v1778 = vadd.f32 0.0, %v1777
        %v1779 = vpop.f32.mrf.mxu0
        %v1780 = vadd.f32 0.0, %v1779
        %1781 = vdwg.mxu0
        %1782 = vmatpush.bf16.msra.mxu0 %v1429
        %1783 = vmatpush.bf16.msra.mxu0 %v1425
        %1784 = vmatpush.bf16.msra.mxu0 %v1421
        %1785 = vmatpush.bf16.msra.mxu0 %v1417
        %1786 = vmatpush.bf16.msra.mxu0 %v1413
        %1787 = vmatpush.bf16.msra.mxu0 %v1409
        %1788 = vmatpush.bf16.msra.mxu0 %v1405
        %1789 = vmatpush.bf16.msra.mxu0 %v1401
        %1790 = vmatmul.bf16.gmra.mxu0 %v746
        %v1791 = vpop.f32.mrf.mxu0
        %v1792 = vadd.f32 %v1763, %v1791
        %v1793 = vpop.f32.mrf.mxu0
        %v1794 = vadd.f32 %v1765, %v1793
        %1795 = vmatmul.bf16.gmra.mxu0 %v752
        %v1796 = vpop.f32.mrf.mxu0
        %v1797 = vadd.f32 %v1768, %v1796
        %v1798 = vpop.f32.mrf.mxu0
        %v1799 = vadd.f32 %v1770, %v1798
        %1800 = vmatmul.bf16.gmra.mxu0 %v758
        %v1801 = vpop.f32.mrf.mxu0
        %v1802 = vadd.f32 %v1773, %v1801
        %v1803 = vpop.f32.mrf.mxu0
        %v1804 = vadd.f32 %v1775, %v1803
        %1805 = vmatmul.bf16.gmra.mxu0 %v764
        %v1806 = vpop.f32.mrf.mxu0
        %v1807 = vadd.f32 %v1778, %v1806
        %v1808 = vpop.f32.mrf.mxu0
        %v1809 = vadd.f32 %v1780, %v1808
        %1810 = vdwg.mxu0
        %1811 = vmatpush.bf16.msra.mxu0 %v1461
        %1812 = vmatpush.bf16.msra.mxu0 %v1457
        %1813 = vmatpush.bf16.msra.mxu0 %v1453
        %1814 = vmatpush.bf16.msra.mxu0 %v1449
        %1815 = vmatpush.bf16.msra.mxu0 %v1445
        %1816 = vmatpush.bf16.msra.mxu0 %v1441
        %1817 = vmatpush.bf16.msra.mxu0 %v1437
        %1818 = vmatpush.bf16.msra.mxu0 %v1433
        %1819 = vmatmul.bf16.gmra.mxu0 %v747
        %v1820 = vpop.f32.mrf.mxu0
        %v1821 = vadd.f32 %v1792, %v1820
        %v1822 = vpop.f32.mrf.mxu0
        %v1823 = vadd.f32 %v1794, %v1822
        %1824 = vmatmul.bf16.gmra.mxu0 %v753
        %v1825 = vpop.f32.mrf.mxu0
        %v1826 = vadd.f32 %v1797, %v1825
        %v1827 = vpop.f32.mrf.mxu0
        %v1828 = vadd.f32 %v1799, %v1827
        %1829 = vmatmul.bf16.gmra.mxu0 %v759
        %v1830 = vpop.f32.mrf.mxu0
        %v1831 = vadd.f32 %v1802, %v1830
        %v1832 = vpop.f32.mrf.mxu0
        %v1833 = vadd.f32 %v1804, %v1832
        %1834 = vmatmul.bf16.gmra.mxu0 %v765
        %v1835 = vpop.f32.mrf.mxu0
        %v1836 = vadd.f32 %v1807, %v1835
        %v1837 = vpop.f32.mrf.mxu0
        %v1838 = vadd.f32 %v1809, %v1837
        %1839 = vdwg.mxu0
        %1840 = vmatpush.bf16.msra.mxu0 %v1493
        %1841 = vmatpush.bf16.msra.mxu0 %v1489
        %1842 = vmatpush.bf16.msra.mxu0 %v1485
        %1843 = vmatpush.bf16.msra.mxu0 %v1481
        %1844 = vmatpush.bf16.msra.mxu0 %v1477
        %1845 = vmatpush.bf16.msra.mxu0 %v1473
        %1846 = vmatpush.bf16.msra.mxu0 %v1469
        %1847 = vmatpush.bf16.msra.mxu0 %v1465
        %1848 = vmatmul.bf16.gmra.mxu0 %v748
        %v1849 = vpop.f32.mrf.mxu0
        %v1850 = vadd.f32 %v1821, %v1849
        %v1851 = vpop.f32.mrf.mxu0
        %v1852 = vadd.f32 %v1823, %v1851
        %1853 = vmatmul.bf16.gmra.mxu0 %v754
        %v1854 = vpop.f32.mrf.mxu0
        %v1855 = vadd.f32 %v1826, %v1854
        %v1856 = vpop.f32.mrf.mxu0
        %v1857 = vadd.f32 %v1828, %v1856
        %1858 = vmatmul.bf16.gmra.mxu0 %v760
        %v1859 = vpop.f32.mrf.mxu0
        %v1860 = vadd.f32 %v1831, %v1859
        %v1861 = vpop.f32.mrf.mxu0
        %v1862 = vadd.f32 %v1833, %v1861
        %1863 = vmatmul.bf16.gmra.mxu0 %v766
        %v1864 = vpop.f32.mrf.mxu0
        %v1865 = vadd.f32 %v1836, %v1864
        %v1866 = vpop.f32.mrf.mxu0
        %v1867 = vadd.f32 %v1838, %v1866
        %1868 = vdwg.mxu0
        %1869 = vmatpush.bf16.msra.mxu0 %v1525
        %1870 = vmatpush.bf16.msra.mxu0 %v1521
        %1871 = vmatpush.bf16.msra.mxu0 %v1517
        %1872 = vmatpush.bf16.msra.mxu0 %v1513
        %1873 = vmatpush.bf16.msra.mxu0 %v1509
        %1874 = vmatpush.bf16.msra.mxu0 %v1505
        %1875 = vmatpush.bf16.msra.mxu0 %v1501
        %1876 = vmatpush.bf16.msra.mxu0 %v1497
        %1877 = vmatmul.bf16.gmra.mxu0 %v749
        %v1878 = vpop.f32.mrf.mxu0
        %v1879 = vadd.f32 %v1850, %v1878
        %v1880 = vpop.f32.mrf.mxu0
        %v1881 = vadd.f32 %v1852, %v1880
        %1882 = vmatmul.bf16.gmra.mxu0 %v755
        %v1883 = vpop.f32.mrf.mxu0
        %v1884 = vadd.f32 %v1855, %v1883
        %v1885 = vpop.f32.mrf.mxu0
        %v1886 = vadd.f32 %v1857, %v1885
        %1887 = vmatmul.bf16.gmra.mxu0 %v761
        %v1888 = vpop.f32.mrf.mxu0
        %v1889 = vadd.f32 %v1860, %v1888
        %v1890 = vpop.f32.mrf.mxu0
        %v1891 = vadd.f32 %v1862, %v1890
        %1892 = vmatmul.bf16.gmra.mxu0 %v767
        %v1893 = vpop.f32.mrf.mxu0
        %v1894 = vadd.f32 %v1865, %v1893
        %v1895 = vpop.f32.mrf.mxu0
        %v1896 = vadd.f32 %v1867, %v1895
        %1897 = vdwg.mxu0
        %1898 = vmatpush.bf16.msra.mxu0 %v1557
        %1899 = vmatpush.bf16.msra.mxu0 %v1553
        %1900 = vmatpush.bf16.msra.mxu0 %v1549
        %1901 = vmatpush.bf16.msra.mxu0 %v1545
        %1902 = vmatpush.bf16.msra.mxu0 %v1541
        %1903 = vmatpush.bf16.msra.mxu0 %v1537
        %1904 = vmatpush.bf16.msra.mxu0 %v1533
        %1905 = vmatpush.bf16.msra.mxu0 %v1529
        %1906 = vmatmul.bf16.gmra.mxu0 %v750
        %v1907 = vpop.f32.mrf.mxu0
        %v1908 = vadd.f32 %v1879, %v1907
        %v1909 = vpop.f32.mrf.mxu0
        %v1910 = vadd.f32 %v1881, %v1909
        %1911 = vmatmul.bf16.gmra.mxu0 %v756
        %v1912 = vpop.f32.mrf.mxu0
        %v1913 = vadd.f32 %v1884, %v1912
        %v1914 = vpop.f32.mrf.mxu0
        %v1915 = vadd.f32 %v1886, %v1914
        %1916 = vmatmul.bf16.gmra.mxu0 %v762
        %v1917 = vpop.f32.mrf.mxu0
        %v1918 = vadd.f32 %v1889, %v1917
        %v1919 = vpop.f32.mrf.mxu0
        %v1920 = vadd.f32 %v1891, %v1919
        %1921 = vmatmul.bf16.gmra.mxu0 %v768
        %v1922 = vpop.f32.mrf.mxu0
        %v1923 = vadd.f32 %v1894, %v1922
        %v1924 = vpop.f32.mrf.mxu0
        %v1925 = vadd.f32 %v1896, %v1924
        %1926 = vdwg.mxu0
        %1927 = vmatpush.bf16.msra.mxu0 %v1398
        %1928 = vmatpush.bf16.msra.mxu0 %v1394
        %1929 = vmatpush.bf16.msra.mxu0 %v1390
        %1930 = vmatpush.bf16.msra.mxu0 %v1386
        %1931 = vmatpush.bf16.msra.mxu0 %v1382
        %1932 = vmatpush.bf16.msra.mxu0 %v1378
        %1933 = vmatpush.bf16.msra.mxu0 %v1374
        %1934 = vmatpush.bf16.msra.mxu0 %v1370
        %1935 = vmatmul.bf16.gmra.mxu0 %v745
        %v1936 = vpop.f32.mrf.mxu0
        %v1937 = vadd.f32 0.0, %v1936
        %v1938 = vpop.f32.mrf.mxu0
        %v1939 = vadd.f32 0.0, %v1938
        %1940 = vmatmul.bf16.gmra.mxu0 %v751
        %v1941 = vpop.f32.mrf.mxu0
        %v1942 = vadd.f32 0.0, %v1941
        %v1943 = vpop.f32.mrf.mxu0
        %v1944 = vadd.f32 0.0, %v1943
        %1945 = vmatmul.bf16.gmra.mxu0 %v757
        %v1946 = vpop.f32.mrf.mxu0
        %v1947 = vadd.f32 0.0, %v1946
        %v1948 = vpop.f32.mrf.mxu0
        %v1949 = vadd.f32 0.0, %v1948
        %1950 = vmatmul.bf16.gmra.mxu0 %v763
        %v1951 = vpop.f32.mrf.mxu0
        %v1952 = vadd.f32 0.0, %v1951
        %v1953 = vpop.f32.mrf.mxu0
        %v1954 = vadd.f32 0.0, %v1953
        %1955 = vdwg.mxu0
        %1956 = vmatpush.bf16.msra.mxu0 %v1430
        %1957 = vmatpush.bf16.msra.mxu0 %v1426
        %1958 = vmatpush.bf16.msra.mxu0 %v1422
        %1959 = vmatpush.bf16.msra.mxu0 %v1418
        %1960 = vmatpush.bf16.msra.mxu0 %v1414
        %1961 = vmatpush.bf16.msra.mxu0 %v1410
        %1962 = vmatpush.bf16.msra.mxu0 %v1406
        %1963 = vmatpush.bf16.msra.mxu0 %v1402
        %1964 = vmatmul.bf16.gmra.mxu0 %v746
        %v1965 = vpop.f32.mrf.mxu0
        %v1966 = vadd.f32 %v1937, %v1965
        %v1967 = vpop.f32.mrf.mxu0
        %v1968 = vadd.f32 %v1939, %v1967
        %1969 = vmatmul.bf16.gmra.mxu0 %v752
        %v1970 = vpop.f32.mrf.mxu0
        %v1971 = vadd.f32 %v1942, %v1970
        %v1972 = vpop.f32.mrf.mxu0
        %v1973 = vadd.f32 %v1944, %v1972
        %1974 = vmatmul.bf16.gmra.mxu0 %v758
        %v1975 = vpop.f32.mrf.mxu0
        %v1976 = vadd.f32 %v1947, %v1975
        %v1977 = vpop.f32.mrf.mxu0
        %v1978 = vadd.f32 %v1949, %v1977
        %1979 = vmatmul.bf16.gmra.mxu0 %v764
        %v1980 = vpop.f32.mrf.mxu0
        %v1981 = vadd.f32 %v1952, %v1980
        %v1982 = vpop.f32.mrf.mxu0
        %v1983 = vadd.f32 %v1954, %v1982
        %1984 = vdwg.mxu0
        %1985 = vmatpush.bf16.msra.mxu0 %v1462
        %1986 = vmatpush.bf16.msra.mxu0 %v1458
        %1987 = vmatpush.bf16.msra.mxu0 %v1454
        %1988 = vmatpush.bf16.msra.mxu0 %v1450
        %1989 = vmatpush.bf16.msra.mxu0 %v1446
        %1990 = vmatpush.bf16.msra.mxu0 %v1442
        %1991 = vmatpush.bf16.msra.mxu0 %v1438
        %1992 = vmatpush.bf16.msra.mxu0 %v1434
        %1993 = vmatmul.bf16.gmra.mxu0 %v747
        %v1994 = vpop.f32.mrf.mxu0
        %v1995 = vadd.f32 %v1966, %v1994
        %v1996 = vpop.f32.mrf.mxu0
        %v1997 = vadd.f32 %v1968, %v1996
        %1998 = vmatmul.bf16.gmra.mxu0 %v753
        %v1999 = vpop.f32.mrf.mxu0
        %v2000 = vadd.f32 %v1971, %v1999
        %v2001 = vpop.f32.mrf.mxu0
        %v2002 = vadd.f32 %v1973, %v2001
        %2003 = vmatmul.bf16.gmra.mxu0 %v759
        %v2004 = vpop.f32.mrf.mxu0
        %v2005 = vadd.f32 %v1976, %v2004
        %v2006 = vpop.f32.mrf.mxu0
        %v2007 = vadd.f32 %v1978, %v2006
        %2008 = vmatmul.bf16.gmra.mxu0 %v765
        %v2009 = vpop.f32.mrf.mxu0
        %v2010 = vadd.f32 %v1981, %v2009
        %v2011 = vpop.f32.mrf.mxu0
        %v2012 = vadd.f32 %v1983, %v2011
        %2013 = vdwg.mxu0
        %2014 = vmatpush.bf16.msra.mxu0 %v1494
        %2015 = vmatpush.bf16.msra.mxu0 %v1490
        %2016 = vmatpush.bf16.msra.mxu0 %v1486
        %2017 = vmatpush.bf16.msra.mxu0 %v1482
        %2018 = vmatpush.bf16.msra.mxu0 %v1478
        %2019 = vmatpush.bf16.msra.mxu0 %v1474
        %2020 = vmatpush.bf16.msra.mxu0 %v1470
        %2021 = vmatpush.bf16.msra.mxu0 %v1466
        %2022 = vmatmul.bf16.gmra.mxu0 %v748
        %v2023 = vpop.f32.mrf.mxu0
        %v2024 = vadd.f32 %v1995, %v2023
        %v2025 = vpop.f32.mrf.mxu0
        %v2026 = vadd.f32 %v1997, %v2025
        %2027 = vmatmul.bf16.gmra.mxu0 %v754
        %v2028 = vpop.f32.mrf.mxu0
        %v2029 = vadd.f32 %v2000, %v2028
        %v2030 = vpop.f32.mrf.mxu0
        %v2031 = vadd.f32 %v2002, %v2030
        %2032 = vmatmul.bf16.gmra.mxu0 %v760
        %v2033 = vpop.f32.mrf.mxu0
        %v2034 = vadd.f32 %v2005, %v2033
        %v2035 = vpop.f32.mrf.mxu0
        %v2036 = vadd.f32 %v2007, %v2035
        %2037 = vmatmul.bf16.gmra.mxu0 %v766
        %v2038 = vpop.f32.mrf.mxu0
        %v2039 = vadd.f32 %v2010, %v2038
        %v2040 = vpop.f32.mrf.mxu0
        %v2041 = vadd.f32 %v2012, %v2040
        %2042 = vdwg.mxu0
        %2043 = vmatpush.bf16.msra.mxu0 %v1526
        %2044 = vmatpush.bf16.msra.mxu0 %v1522
        %2045 = vmatpush.bf16.msra.mxu0 %v1518
        %2046 = vmatpush.bf16.msra.mxu0 %v1514
        %2047 = vmatpush.bf16.msra.mxu0 %v1510
        %2048 = vmatpush.bf16.msra.mxu0 %v1506
        %2049 = vmatpush.bf16.msra.mxu0 %v1502
        %2050 = vmatpush.bf16.msra.mxu0 %v1498
        %2051 = vmatmul.bf16.gmra.mxu0 %v749
        %v2052 = vpop.f32.mrf.mxu0
        %v2053 = vadd.f32 %v2024, %v2052
        %v2054 = vpop.f32.mrf.mxu0
        %v2055 = vadd.f32 %v2026, %v2054
        %2056 = vmatmul.bf16.gmra.mxu0 %v755
        %v2057 = vpop.f32.mrf.mxu0
        %v2058 = vadd.f32 %v2029, %v2057
        %v2059 = vpop.f32.mrf.mxu0
        %v2060 = vadd.f32 %v2031, %v2059
        %2061 = vmatmul.bf16.gmra.mxu0 %v761
        %v2062 = vpop.f32.mrf.mxu0
        %v2063 = vadd.f32 %v2034, %v2062
        %v2064 = vpop.f32.mrf.mxu0
        %v2065 = vadd.f32 %v2036, %v2064
        %2066 = vmatmul.bf16.gmra.mxu0 %v767
        %v2067 = vpop.f32.mrf.mxu0
        %v2068 = vadd.f32 %v2039, %v2067
        %v2069 = vpop.f32.mrf.mxu0
        %v2070 = vadd.f32 %v2041, %v2069
        %2071 = vdwg.mxu0
        %2072 = vmatpush.bf16.msra.mxu0 %v1558
        %2073 = vmatpush.bf16.msra.mxu0 %v1554
        %2074 = vmatpush.bf16.msra.mxu0 %v1550
        %2075 = vmatpush.bf16.msra.mxu0 %v1546
        %2076 = vmatpush.bf16.msra.mxu0 %v1542
        %2077 = vmatpush.bf16.msra.mxu0 %v1538
        %2078 = vmatpush.bf16.msra.mxu0 %v1534
        %2079 = vmatpush.bf16.msra.mxu0 %v1530
        %2080 = vmatmul.bf16.gmra.mxu0 %v750
        %v2081 = vpop.f32.mrf.mxu0
        %v2082 = vadd.f32 %v2053, %v2081
        %v2083 = vpop.f32.mrf.mxu0
        %v2084 = vadd.f32 %v2055, %v2083
        %2085 = vmatmul.bf16.gmra.mxu0 %v756
        %v2086 = vpop.f32.mrf.mxu0
        %v2087 = vadd.f32 %v2058, %v2086
        %v2088 = vpop.f32.mrf.mxu0
        %v2089 = vadd.f32 %v2060, %v2088
        %2090 = vmatmul.bf16.gmra.mxu0 %v762
        %v2091 = vpop.f32.mrf.mxu0
        %v2092 = vadd.f32 %v2063, %v2091
        %v2093 = vpop.f32.mrf.mxu0
        %v2094 = vadd.f32 %v2065, %v2093
        %2095 = vmatmul.bf16.gmra.mxu0 %v768
        %v2096 = vpop.f32.mrf.mxu0
        %v2097 = vadd.f32 %v2068, %v2096
        %v2098 = vpop.f32.mrf.mxu0
        %v2099 = vadd.f32 %v2070, %v2098
        %2100 = vdwg.mxu0
        %2101 = vmatpush.bf16.msra.mxu0 %v1399
        %2102 = vmatpush.bf16.msra.mxu0 %v1395
        %2103 = vmatpush.bf16.msra.mxu0 %v1391
        %2104 = vmatpush.bf16.msra.mxu0 %v1387
        %2105 = vmatpush.bf16.msra.mxu0 %v1383
        %2106 = vmatpush.bf16.msra.mxu0 %v1379
        %2107 = vmatpush.bf16.msra.mxu0 %v1375
        %2108 = vmatpush.bf16.msra.mxu0 %v1371
        %2109 = vmatmul.bf16.gmra.mxu0 %v745
        %v2110 = vpop.f32.mrf.mxu0
        %v2111 = vadd.f32 0.0, %v2110
        %v2112 = vpop.f32.mrf.mxu0
        %v2113 = vadd.f32 0.0, %v2112
        %2114 = vmatmul.bf16.gmra.mxu0 %v751
        %v2115 = vpop.f32.mrf.mxu0
        %v2116 = vadd.f32 0.0, %v2115
        %v2117 = vpop.f32.mrf.mxu0
        %v2118 = vadd.f32 0.0, %v2117
        %2119 = vmatmul.bf16.gmra.mxu0 %v757
        %v2120 = vpop.f32.mrf.mxu0
        %v2121 = vadd.f32 0.0, %v2120
        %v2122 = vpop.f32.mrf.mxu0
        %v2123 = vadd.f32 0.0, %v2122
        %2124 = vmatmul.bf16.gmra.mxu0 %v763
        %v2125 = vpop.f32.mrf.mxu0
        %v2126 = vadd.f32 0.0, %v2125
        %v2127 = vpop.f32.mrf.mxu0
        %v2128 = vadd.f32 0.0, %v2127
        %2129 = vdwg.mxu0
        %2130 = vmatpush.bf16.msra.mxu0 %v1431
        %2131 = vmatpush.bf16.msra.mxu0 %v1427
        %2132 = vmatpush.bf16.msra.mxu0 %v1423
        %2133 = vmatpush.bf16.msra.mxu0 %v1419
        %2134 = vmatpush.bf16.msra.mxu0 %v1415
        %2135 = vmatpush.bf16.msra.mxu0 %v1411
        %2136 = vmatpush.bf16.msra.mxu0 %v1407
        %2137 = vmatpush.bf16.msra.mxu0 %v1403
        %2138 = vmatmul.bf16.gmra.mxu0 %v746
        %v2139 = vpop.f32.mrf.mxu0
        %v2140 = vadd.f32 %v2111, %v2139
        %v2141 = vpop.f32.mrf.mxu0
        %v2142 = vadd.f32 %v2113, %v2141
        %2143 = vmatmul.bf16.gmra.mxu0 %v752
        %v2144 = vpop.f32.mrf.mxu0
        %v2145 = vadd.f32 %v2116, %v2144
        %v2146 = vpop.f32.mrf.mxu0
        %v2147 = vadd.f32 %v2118, %v2146
        %2148 = vmatmul.bf16.gmra.mxu0 %v758
        %v2149 = vpop.f32.mrf.mxu0
        %v2150 = vadd.f32 %v2121, %v2149
        %v2151 = vpop.f32.mrf.mxu0
        %v2152 = vadd.f32 %v2123, %v2151
        %2153 = vmatmul.bf16.gmra.mxu0 %v764
        %v2154 = vpop.f32.mrf.mxu0
        %v2155 = vadd.f32 %v2126, %v2154
        %v2156 = vpop.f32.mrf.mxu0
        %v2157 = vadd.f32 %v2128, %v2156
        %2158 = vdwg.mxu0
        %2159 = vmatpush.bf16.msra.mxu0 %v1463
        %2160 = vmatpush.bf16.msra.mxu0 %v1459
        %2161 = vmatpush.bf16.msra.mxu0 %v1455
        %2162 = vmatpush.bf16.msra.mxu0 %v1451
        %2163 = vmatpush.bf16.msra.mxu0 %v1447
        %2164 = vmatpush.bf16.msra.mxu0 %v1443
        %2165 = vmatpush.bf16.msra.mxu0 %v1439
        %2166 = vmatpush.bf16.msra.mxu0 %v1435
        %2167 = vmatmul.bf16.gmra.mxu0 %v747
        %v2168 = vpop.f32.mrf.mxu0
        %v2169 = vadd.f32 %v2140, %v2168
        %v2170 = vpop.f32.mrf.mxu0
        %v2171 = vadd.f32 %v2142, %v2170
        %2172 = vmatmul.bf16.gmra.mxu0 %v753
        %v2173 = vpop.f32.mrf.mxu0
        %v2174 = vadd.f32 %v2145, %v2173
        %v2175 = vpop.f32.mrf.mxu0
        %v2176 = vadd.f32 %v2147, %v2175
        %2177 = vmatmul.bf16.gmra.mxu0 %v759
        %v2178 = vpop.f32.mrf.mxu0
        %v2179 = vadd.f32 %v2150, %v2178
        %v2180 = vpop.f32.mrf.mxu0
        %v2181 = vadd.f32 %v2152, %v2180
        %2182 = vmatmul.bf16.gmra.mxu0 %v765
        %v2183 = vpop.f32.mrf.mxu0
        %v2184 = vadd.f32 %v2155, %v2183
        %v2185 = vpop.f32.mrf.mxu0
        %v2186 = vadd.f32 %v2157, %v2185
        %2187 = vdwg.mxu0
        %2188 = vmatpush.bf16.msra.mxu0 %v1495
        %2189 = vmatpush.bf16.msra.mxu0 %v1491
        %2190 = vmatpush.bf16.msra.mxu0 %v1487
        %2191 = vmatpush.bf16.msra.mxu0 %v1483
        %2192 = vmatpush.bf16.msra.mxu0 %v1479
        %2193 = vmatpush.bf16.msra.mxu0 %v1475
        %2194 = vmatpush.bf16.msra.mxu0 %v1471
        %2195 = vmatpush.bf16.msra.mxu0 %v1467
        %2196 = vmatmul.bf16.gmra.mxu0 %v748
        %v2197 = vpop.f32.mrf.mxu0
        %v2198 = vadd.f32 %v2169, %v2197
        %v2199 = vpop.f32.mrf.mxu0
        %v2200 = vadd.f32 %v2171, %v2199
        %2201 = vmatmul.bf16.gmra.mxu0 %v754
        %v2202 = vpop.f32.mrf.mxu0
        %v2203 = vadd.f32 %v2174, %v2202
        %v2204 = vpop.f32.mrf.mxu0
        %v2205 = vadd.f32 %v2176, %v2204
        %2206 = vmatmul.bf16.gmra.mxu0 %v760
        %v2207 = vpop.f32.mrf.mxu0
        %v2208 = vadd.f32 %v2179, %v2207
        %v2209 = vpop.f32.mrf.mxu0
        %v2210 = vadd.f32 %v2181, %v2209
        %2211 = vmatmul.bf16.gmra.mxu0 %v766
        %v2212 = vpop.f32.mrf.mxu0
        %v2213 = vadd.f32 %v2184, %v2212
        %v2214 = vpop.f32.mrf.mxu0
        %v2215 = vadd.f32 %v2186, %v2214
        %2216 = vdwg.mxu0
        %2217 = vmatpush.bf16.msra.mxu0 %v1527
        %2218 = vmatpush.bf16.msra.mxu0 %v1523
        %2219 = vmatpush.bf16.msra.mxu0 %v1519
        %2220 = vmatpush.bf16.msra.mxu0 %v1515
        %2221 = vmatpush.bf16.msra.mxu0 %v1511
        %2222 = vmatpush.bf16.msra.mxu0 %v1507
        %2223 = vmatpush.bf16.msra.mxu0 %v1503
        %2224 = vmatpush.bf16.msra.mxu0 %v1499
        %2225 = vmatmul.bf16.gmra.mxu0 %v749
        %v2226 = vpop.f32.mrf.mxu0
        %v2227 = vadd.f32 %v2198, %v2226
        %v2228 = vpop.f32.mrf.mxu0
        %v2229 = vadd.f32 %v2200, %v2228
        %2230 = vmatmul.bf16.gmra.mxu0 %v755
        %v2231 = vpop.f32.mrf.mxu0
        %v2232 = vadd.f32 %v2203, %v2231
        %v2233 = vpop.f32.mrf.mxu0
        %v2234 = vadd.f32 %v2205, %v2233
        %2235 = vmatmul.bf16.gmra.mxu0 %v761
        %v2236 = vpop.f32.mrf.mxu0
        %v2237 = vadd.f32 %v2208, %v2236
        %v2238 = vpop.f32.mrf.mxu0
        %v2239 = vadd.f32 %v2210, %v2238
        %2240 = vmatmul.bf16.gmra.mxu0 %v767
        %v2241 = vpop.f32.mrf.mxu0
        %v2242 = vadd.f32 %v2213, %v2241
        %v2243 = vpop.f32.mrf.mxu0
        %v2244 = vadd.f32 %v2215, %v2243
        %2245 = vdwg.mxu0
        %2246 = vmatpush.bf16.msra.mxu0 %v1559
        %2247 = vmatpush.bf16.msra.mxu0 %v1555
        %2248 = vmatpush.bf16.msra.mxu0 %v1551
        %2249 = vmatpush.bf16.msra.mxu0 %v1547
        %2250 = vmatpush.bf16.msra.mxu0 %v1543
        %2251 = vmatpush.bf16.msra.mxu0 %v1539
        %2252 = vmatpush.bf16.msra.mxu0 %v1535
        %2253 = vmatpush.bf16.msra.mxu0 %v1531
        %2254 = vmatmul.bf16.gmra.mxu0 %v750
        %v2255 = vpop.f32.mrf.mxu0
        %v2256 = vadd.f32 %v2227, %v2255
        %v2257 = vpop.f32.mrf.mxu0
        %v2258 = vadd.f32 %v2229, %v2257
        %2259 = vmatmul.bf16.gmra.mxu0 %v756
        %v2260 = vpop.f32.mrf.mxu0
        %v2261 = vadd.f32 %v2232, %v2260
        %v2262 = vpop.f32.mrf.mxu0
        %v2263 = vadd.f32 %v2234, %v2262
        %2264 = vmatmul.bf16.gmra.mxu0 %v762
        %v2265 = vpop.f32.mrf.mxu0
        %v2266 = vadd.f32 %v2237, %v2265
        %v2267 = vpop.f32.mrf.mxu0
        %v2268 = vadd.f32 %v2239, %v2267
        %2269 = vmatmul.bf16.gmra.mxu0 %v768
        %v2270 = vpop.f32.mrf.mxu0
        %v2271 = vadd.f32 %v2242, %v2270
        %v2272 = vpop.f32.mrf.mxu0
        %v2273 = vadd.f32 %v2244, %v2272
        %2274 = vdwg.mxu0
        %2275 = vmatpush.bf16.msra.mxu0 %v1400
        %2276 = vmatpush.bf16.msra.mxu0 %v1396
        %2277 = vmatpush.bf16.msra.mxu0 %v1392
        %2278 = vmatpush.bf16.msra.mxu0 %v1388
        %2279 = vmatpush.bf16.msra.mxu0 %v1384
        %2280 = vmatpush.bf16.msra.mxu0 %v1380
        %2281 = vmatpush.bf16.msra.mxu0 %v1376
        %2282 = vmatpush.bf16.msra.mxu0 %v1372
        %2283 = vmatmul.bf16.gmra.mxu0 %v745
        %v2284 = vpop.f32.mrf.mxu0
        %v2285 = vadd.f32 0.0, %v2284
        %v2286 = vpop.f32.mrf.mxu0
        %v2287 = vadd.f32 0.0, %v2286
        %2288 = vmatmul.bf16.gmra.mxu0 %v751
        %v2289 = vpop.f32.mrf.mxu0
        %v2290 = vadd.f32 0.0, %v2289
        %v2291 = vpop.f32.mrf.mxu0
        %v2292 = vadd.f32 0.0, %v2291
        %2293 = vmatmul.bf16.gmra.mxu0 %v757
        %v2294 = vpop.f32.mrf.mxu0
        %v2295 = vadd.f32 0.0, %v2294
        %v2296 = vpop.f32.mrf.mxu0
        %v2297 = vadd.f32 0.0, %v2296
        %2298 = vmatmul.bf16.gmra.mxu0 %v763
        %v2299 = vpop.f32.mrf.mxu0
        %v2300 = vadd.f32 0.0, %v2299
        %v2301 = vpop.f32.mrf.mxu0
        %v2302 = vadd.f32 0.0, %v2301
        %2303 = vdwg.mxu0
        %2304 = vmatpush.bf16.msra.mxu0 %v1432
        %2305 = vmatpush.bf16.msra.mxu0 %v1428
        %2306 = vmatpush.bf16.msra.mxu0 %v1424
        %2307 = vmatpush.bf16.msra.mxu0 %v1420
        %2308 = vmatpush.bf16.msra.mxu0 %v1416
        %2309 = vmatpush.bf16.msra.mxu0 %v1412
        %2310 = vmatpush.bf16.msra.mxu0 %v1408
        %2311 = vmatpush.bf16.msra.mxu0 %v1404
        %2312 = vmatmul.bf16.gmra.mxu0 %v746
        %v2313 = vpop.f32.mrf.mxu0
        %v2314 = vadd.f32 %v2285, %v2313
        %v2315 = vpop.f32.mrf.mxu0
        %v2316 = vadd.f32 %v2287, %v2315
        %2317 = vmatmul.bf16.gmra.mxu0 %v752
        %v2318 = vpop.f32.mrf.mxu0
        %v2319 = vadd.f32 %v2290, %v2318
        %v2320 = vpop.f32.mrf.mxu0
        %v2321 = vadd.f32 %v2292, %v2320
        %2322 = vmatmul.bf16.gmra.mxu0 %v758
        %v2323 = vpop.f32.mrf.mxu0
        %v2324 = vadd.f32 %v2295, %v2323
        %v2325 = vpop.f32.mrf.mxu0
        %v2326 = vadd.f32 %v2297, %v2325
        %2327 = vmatmul.bf16.gmra.mxu0 %v764
        %v2328 = vpop.f32.mrf.mxu0
        %v2329 = vadd.f32 %v2300, %v2328
        %v2330 = vpop.f32.mrf.mxu0
        %v2331 = vadd.f32 %v2302, %v2330
        %2332 = vdwg.mxu0
        %2333 = vmatpush.bf16.msra.mxu0 %v1464
        %2334 = vmatpush.bf16.msra.mxu0 %v1460
        %2335 = vmatpush.bf16.msra.mxu0 %v1456
        %2336 = vmatpush.bf16.msra.mxu0 %v1452
        %2337 = vmatpush.bf16.msra.mxu0 %v1448
        %2338 = vmatpush.bf16.msra.mxu0 %v1444
        %2339 = vmatpush.bf16.msra.mxu0 %v1440
        %2340 = vmatpush.bf16.msra.mxu0 %v1436
        %2341 = vmatmul.bf16.gmra.mxu0 %v747
        %v2342 = vpop.f32.mrf.mxu0
        %v2343 = vadd.f32 %v2314, %v2342
        %v2344 = vpop.f32.mrf.mxu0
        %v2345 = vadd.f32 %v2316, %v2344
        %2346 = vmatmul.bf16.gmra.mxu0 %v753
        %v2347 = vpop.f32.mrf.mxu0
        %v2348 = vadd.f32 %v2319, %v2347
        %v2349 = vpop.f32.mrf.mxu0
        %v2350 = vadd.f32 %v2321, %v2349
        %2351 = vmatmul.bf16.gmra.mxu0 %v759
        %v2352 = vpop.f32.mrf.mxu0
        %v2353 = vadd.f32 %v2324, %v2352
        %v2354 = vpop.f32.mrf.mxu0
        %v2355 = vadd.f32 %v2326, %v2354
        %2356 = vmatmul.bf16.gmra.mxu0 %v765
        %v2357 = vpop.f32.mrf.mxu0
        %v2358 = vadd.f32 %v2329, %v2357
        %v2359 = vpop.f32.mrf.mxu0
        %v2360 = vadd.f32 %v2331, %v2359
        %2361 = vdwg.mxu0
        %2362 = vmatpush.bf16.msra.mxu0 %v1496
        %2363 = vmatpush.bf16.msra.mxu0 %v1492
        %2364 = vmatpush.bf16.msra.mxu0 %v1488
        %2365 = vmatpush.bf16.msra.mxu0 %v1484
        %2366 = vmatpush.bf16.msra.mxu0 %v1480
        %2367 = vmatpush.bf16.msra.mxu0 %v1476
        %2368 = vmatpush.bf16.msra.mxu0 %v1472
        %2369 = vmatpush.bf16.msra.mxu0 %v1468
        %2370 = vmatmul.bf16.gmra.mxu0 %v748
        %v2371 = vpop.f32.mrf.mxu0
        %v2372 = vadd.f32 %v2343, %v2371
        %v2373 = vpop.f32.mrf.mxu0
        %v2374 = vadd.f32 %v2345, %v2373
        %2375 = vmatmul.bf16.gmra.mxu0 %v754
        %v2376 = vpop.f32.mrf.mxu0
        %v2377 = vadd.f32 %v2348, %v2376
        %v2378 = vpop.f32.mrf.mxu0
        %v2379 = vadd.f32 %v2350, %v2378
        %2380 = vmatmul.bf16.gmra.mxu0 %v760
        %v2381 = vpop.f32.mrf.mxu0
        %v2382 = vadd.f32 %v2353, %v2381
        %v2383 = vpop.f32.mrf.mxu0
        %v2384 = vadd.f32 %v2355, %v2383
        %2385 = vmatmul.bf16.gmra.mxu0 %v766
        %v2386 = vpop.f32.mrf.mxu0
        %v2387 = vadd.f32 %v2358, %v2386
        %v2388 = vpop.f32.mrf.mxu0
        %v2389 = vadd.f32 %v2360, %v2388
        %2390 = vdwg.mxu0
        %2391 = vmatpush.bf16.msra.mxu0 %v1528
        %2392 = vmatpush.bf16.msra.mxu0 %v1524
        %2393 = vmatpush.bf16.msra.mxu0 %v1520
        %2394 = vmatpush.bf16.msra.mxu0 %v1516
        %2395 = vmatpush.bf16.msra.mxu0 %v1512
        %2396 = vmatpush.bf16.msra.mxu0 %v1508
        %2397 = vmatpush.bf16.msra.mxu0 %v1504
        %2398 = vmatpush.bf16.msra.mxu0 %v1500
        %2399 = vmatmul.bf16.gmra.mxu0 %v749
        %v2400 = vpop.f32.mrf.mxu0
        %v2401 = vadd.f32 %v2372, %v2400
        %v2402 = vpop.f32.mrf.mxu0
        %v2403 = vadd.f32 %v2374, %v2402
        %2404 = vmatmul.bf16.gmra.mxu0 %v755
        %v2405 = vpop.f32.mrf.mxu0
        %v2406 = vadd.f32 %v2377, %v2405
        %v2407 = vpop.f32.mrf.mxu0
        %v2408 = vadd.f32 %v2379, %v2407
        %2409 = vmatmul.bf16.gmra.mxu0 %v761
        %v2410 = vpop.f32.mrf.mxu0
        %v2411 = vadd.f32 %v2382, %v2410
        %v2412 = vpop.f32.mrf.mxu0
        %v2413 = vadd.f32 %v2384, %v2412
        %2414 = vmatmul.bf16.gmra.mxu0 %v767
        %v2415 = vpop.f32.mrf.mxu0
        %v2416 = vadd.f32 %v2387, %v2415
        %v2417 = vpop.f32.mrf.mxu0
        %v2418 = vadd.f32 %v2389, %v2417
        %2419 = vdwg.mxu0
        %2420 = vmatpush.bf16.msra.mxu0 %v1560
        %2421 = vmatpush.bf16.msra.mxu0 %v1556
        %2422 = vmatpush.bf16.msra.mxu0 %v1552
        %2423 = vmatpush.bf16.msra.mxu0 %v1548
        %2424 = vmatpush.bf16.msra.mxu0 %v1544
        %2425 = vmatpush.bf16.msra.mxu0 %v1540
        %2426 = vmatpush.bf16.msra.mxu0 %v1536
        %2427 = vmatpush.bf16.msra.mxu0 %v1532
        %2428 = vmatmul.bf16.gmra.mxu0 %v750
        %v2429 = vpop.f32.mrf.mxu0
        %v2430 = vadd.f32 %v2401, %v2429
        %v2431 = vpop.f32.mrf.mxu0
        %v2432 = vadd.f32 %v2403, %v2431
        %2433 = vmatmul.bf16.gmra.mxu0 %v756
        %v2434 = vpop.f32.mrf.mxu0
        %v2435 = vadd.f32 %v2406, %v2434
        %v2436 = vpop.f32.mrf.mxu0
        %v2437 = vadd.f32 %v2408, %v2436
        %2438 = vmatmul.bf16.gmra.mxu0 %v762
        %v2439 = vpop.f32.mrf.mxu0
        %v2440 = vadd.f32 %v2411, %v2439
        %v2441 = vpop.f32.mrf.mxu0
        %v2442 = vadd.f32 %v2413, %v2441
        %2443 = vmatmul.bf16.gmra.mxu0 %v768
        %v2444 = vpop.f32.mrf.mxu0
        %v2445 = vadd.f32 %v2416, %v2444
        %v2446 = vpop.f32.mrf.mxu0
        %v2447 = vadd.f32 %v2418, %v2446
        %2448 = vdwg.mxu0
        %v2449 = vtanh.pop %v1908
        %v2450 = vtanh.pop %v2082
        %v2451 = vtanh.pop %v2256
        %v2452 = vtanh.pop %v2430
        %v2453 = vtanh.pop %v1910
        %v2454 = vtanh.pop %v2084
        %v2455 = vtanh.pop %v2258
        %v2456 = vtanh.pop %v2432
        %v2457 = vtanh.pop %v1913
        %v2458 = vtanh.pop %v2087
        %v2459 = vtanh.pop %v2261
        %v2460 = vtanh.pop %v2435
        %v2461 = vtanh.pop %v1915
        %v2462 = vtanh.pop %v2089
        %v2463 = vtanh.pop %v2263
        %v2464 = vtanh.pop %v2437
        %v2465 = vtanh.pop %v1918
        %v2466 = vtanh.pop %v2092
        %v2467 = vtanh.pop %v2266
        %v2468 = vtanh.pop %v2440
        %v2469 = vtanh.pop %v1920
        %v2470 = vtanh.pop %v2094
        %v2471 = vtanh.pop %v2268
        %v2472 = vtanh.pop %v2442
        %v2473 = vtanh.pop %v1923
        %v2474 = vtanh.pop %v2097
        %v2475 = vtanh.pop %v2271
        %v2476 = vtanh.pop %v2445
        %v2477 = vtanh.pop %v1925
        %v2478 = vtanh.pop %v2099
        %v2479 = vtanh.pop %v2273
        %v2480 = vtanh.pop %v2447
        %v2481 = vpack.c.bf16 %v2453, %v2449
        %v2482 = vpack.c.bf16 %v2454, %v2450
        %v2483 = vpack.c.bf16 %v2455, %v2451
        %v2484 = vpack.c.bf16 %v2456, %v2452
        %v2485 = vpack.c.bf16 %v2461, %v2457
        %v2486 = vpack.c.bf16 %v2462, %v2458
        %v2487 = vpack.c.bf16 %v2463, %v2459
        %v2488 = vpack.c.bf16 %v2464, %v2460
        %v2489 = vpack.c.bf16 %v2469, %v2465
        %v2490 = vpack.c.bf16 %v2470, %v2466
        %v2491 = vpack.c.bf16 %v2471, %v2467
        %v2492 = vpack.c.bf16 %v2472, %v2468
        %v2493 = vpack.c.bf16 %v2477, %v2473
        %v2494 = vpack.c.bf16 %v2478, %v2474
        %v2495 = vpack.c.bf16 %v2479, %v2475
        %v2496 = vpack.c.bf16 %v2480, %v2476
        %v2497 = vld [vmem:[#allocation7] sm:$0xf]
        %v2498 = vld [vmem:[#allocation7 + $0x4] sm:$0xf]
        %v2499 = vld [vmem:[#allocation7 + $0x8] sm:$0xf]
        %v2500 = vld [vmem:[#allocation7 + $0xc] sm:$0xf]
        %v2501 = vld [vmem:[#allocation7 + $0x10] sm:$0xf]
        %v2502 = vld [vmem:[#allocation7 + $0x14] sm:$0xf]
        %v2503 = vld [vmem:[#allocation7 + $0x18] sm:$0xf]
        %v2504 = vld [vmem:[#allocation7 + $0x1c] sm:$0xf]
        %v2505 = vld [vmem:[#allocation7 + $0x20] sm:$0xf]
        %v2506 = vld [vmem:[#allocation7 + $0x24] sm:$0xf]
        %v2507 = vld [vmem:[#allocation7 + $0x28] sm:$0xf]
        %v2508 = vld [vmem:[#allocation7 + $0x2c] sm:$0xf]
        %v2509 = vld [vmem:[#allocation7 + $0x30] sm:$0xf]
        %v2510 = vld [vmem:[#allocation7 + $0x34] sm:$0xf]
        %v2511 = vld [vmem:[#allocation7 + $0x38] sm:$0xf]
        %v2512 = vld [vmem:[#allocation7 + $0x3c] sm:$0xf]
        %v2513 = vld [vmem:[#allocation7 + $0x40] sm:$0xf]
        %v2514 = vld [vmem:[#allocation7 + $0x44] sm:$0xf]
        %v2515 = vld [vmem:[#allocation7 + $0x48] sm:$0xf]
        %v2516 = vld [vmem:[#allocation7 + $0x4c] sm:$0xf]
        %v2517 = vld [vmem:[#allocation7 + $0x50] sm:$0xf]
        %v2518 = vld [vmem:[#allocation7 + $0x54] sm:$0xf]
        %v2519 = vld [vmem:[#allocation7 + $0x58] sm:$0xf]
        %v2520 = vld [vmem:[#allocation7 + $0x5c] sm:$0xf]
        %v2521 = vld [vmem:[#allocation7 + $0x60] sm:$0xf]
        %v2522 = vld [vmem:[#allocation7 + $0x64] sm:$0xf]
        %v2523 = vld [vmem:[#allocation7 + $0x68] sm:$0xf]
        %v2524 = vld [vmem:[#allocation7 + $0x6c] sm:$0xf]
        %v2525 = vld [vmem:[#allocation7 + $0x70] sm:$0xf]
        %v2526 = vld [vmem:[#allocation7 + $0x74] sm:$0xf]
        %v2527 = vld [vmem:[#allocation7 + $0x78] sm:$0xf]
        %v2528 = vld [vmem:[#allocation7 + $0x7c] sm:$0xf]
        %v2529 = vld [vmem:[#allocation7 + $0x80] sm:$0xf]
        %v2530 = vld [vmem:[#allocation7 + $0x84] sm:$0xf]
        %v2531 = vld [vmem:[#allocation7 + $0x88] sm:$0xf]
        %v2532 = vld [vmem:[#allocation7 + $0x8c] sm:$0xf]
        %v2533 = vld [vmem:[#allocation7 + $0x90] sm:$0xf]
        %v2534 = vld [vmem:[#allocation7 + $0x94] sm:$0xf]
        %v2535 = vld [vmem:[#allocation7 + $0x98] sm:$0xf]
        %v2536 = vld [vmem:[#allocation7 + $0x9c] sm:$0xf]
        %v2537 = vld [vmem:[#allocation7 + $0xa0] sm:$0xf]
        %v2538 = vld [vmem:[#allocation7 + $0xa4] sm:$0xf]
        %v2539 = vld [vmem:[#allocation7 + $0xa8] sm:$0xf]
        %v2540 = vld [vmem:[#allocation7 + $0xac] sm:$0xf]
        %v2541 = vld [vmem:[#allocation7 + $0xb0] sm:$0xf]
        %v2542 = vld [vmem:[#allocation7 + $0xb4] sm:$0xf]
        %v2543 = vld [vmem:[#allocation7 + $0xb8] sm:$0xf]
        %v2544 = vld [vmem:[#allocation7 + $0xbc] sm:$0xf]
        %v2545 = vld [vmem:[#allocation7 + $0xc0] sm:$0xf]
        %v2546 = vld [vmem:[#allocation7 + $0xc4] sm:$0xf]
        %v2547 = vld [vmem:[#allocation7 + $0xc8] sm:$0xf]
        %v2548 = vld [vmem:[#allocation7 + $0xcc] sm:$0xf]
        %v2549 = vld [vmem:[#allocation7 + $0xd0] sm:$0xf]
        %v2550 = vld [vmem:[#allocation7 + $0xd4] sm:$0xf]
        %v2551 = vld [vmem:[#allocation7 + $0xd8] sm:$0xf]
        %v2552 = vld [vmem:[#allocation7 + $0xdc] sm:$0xf]
        %v2553 = vld [vmem:[#allocation7 + $0xe0] sm:$0xf]
        %v2554 = vld [vmem:[#allocation7 + $0xe4] sm:$0xf]
        %v2555 = vld [vmem:[#allocation7 + $0xe8] sm:$0xf]
        %v2556 = vld [vmem:[#allocation7 + $0xec] sm:$0xf]
        %v2557 = vld [vmem:[#allocation7 + $0xf0] sm:$0xf]
        %v2558 = vld [vmem:[#allocation7 + $0xf4] sm:$0xf]
        %v2559 = vld [vmem:[#allocation7 + $0xf8] sm:$0xf]
        %v2560 = vld [vmem:[#allocation7 + $0xfc] sm:$0xf]
        %v2561 = vld [vmem:[%s7] sm:$0x1]
        %v2563 = vperm.slane %v2561, 0
        %v2629 = vunpack.c.l.b16 %v2497
        %v2630 = vunpack.c.l.b16 %v2498
        %v2631 = vunpack.c.l.b16 %v2499
        %v2632 = vunpack.c.l.b16 %v2500
        %v2633 = vunpack.c.l.b16 %v2501
        %v2634 = vunpack.c.l.b16 %v2502
        %v2635 = vunpack.c.l.b16 %v2503
        %v2636 = vunpack.c.l.b16 %v2504
        %v2637 = vunpack.c.l.b16 %v2505
        %v2638 = vunpack.c.l.b16 %v2506
        %v2639 = vunpack.c.l.b16 %v2507
        %v2640 = vunpack.c.l.b16 %v2508
        %v2641 = vunpack.c.l.b16 %v2509
        %v2642 = vunpack.c.l.b16 %v2510
        %v2643 = vunpack.c.l.b16 %v2511
        %v2644 = vunpack.c.l.b16 %v2512
        %v2645 = vunpack.c.l.b16 %v2513
        %v2646 = vunpack.c.l.b16 %v2514
        %v2647 = vunpack.c.l.b16 %v2515
        %v2648 = vunpack.c.l.b16 %v2516
        %v2649 = vunpack.c.l.b16 %v2517
        %v2650 = vunpack.c.l.b16 %v2518
        %v2651 = vunpack.c.l.b16 %v2519
        %v2652 = vunpack.c.l.b16 %v2520
        %v2653 = vunpack.c.l.b16 %v2521
        %v2654 = vunpack.c.l.b16 %v2522
        %v2655 = vunpack.c.l.b16 %v2523
        %v2656 = vunpack.c.l.b16 %v2524
        %v2657 = vunpack.c.l.b16 %v2525
        %v2658 = vunpack.c.l.b16 %v2526
        %v2659 = vunpack.c.l.b16 %v2527
        %v2660 = vunpack.c.l.b16 %v2528
        %v2661 = vunpack.c.l.b16 %v2529
        %v2662 = vunpack.c.l.b16 %v2530
        %v2663 = vunpack.c.l.b16 %v2531
        %v2664 = vunpack.c.l.b16 %v2532
        %v2665 = vunpack.c.l.b16 %v2533
        %v2666 = vunpack.c.l.b16 %v2534
        %v2667 = vunpack.c.l.b16 %v2535
        %v2668 = vunpack.c.l.b16 %v2536
        %v2669 = vunpack.c.l.b16 %v2537
        %v2670 = vunpack.c.l.b16 %v2538
        %v2671 = vunpack.c.l.b16 %v2539
        %v2672 = vunpack.c.l.b16 %v2540
        %v2673 = vunpack.c.l.b16 %v2541
        %v2674 = vunpack.c.l.b16 %v2542
        %v2675 = vunpack.c.l.b16 %v2543
        %v2676 = vunpack.c.l.b16 %v2544
        %v2677 = vunpack.c.l.b16 %v2545
        %v2678 = vunpack.c.l.b16 %v2546
        %v2679 = vunpack.c.l.b16 %v2547
        %v2680 = vunpack.c.l.b16 %v2548
        %v2681 = vunpack.c.l.b16 %v2549
        %v2682 = vunpack.c.l.b16 %v2550
        %v2683 = vunpack.c.l.b16 %v2551
        %v2684 = vunpack.c.l.b16 %v2552
        %v2685 = vunpack.c.l.b16 %v2553
        %v2686 = vunpack.c.l.b16 %v2554
        %v2687 = vunpack.c.l.b16 %v2555
        %v2688 = vunpack.c.l.b16 %v2556
        %v2689 = vunpack.c.l.b16 %v2557
        %v2690 = vunpack.c.l.b16 %v2558
        %v2691 = vunpack.c.l.b16 %v2559
        %v2692 = vunpack.c.l.b16 %v2560
        %v2693 = vpack.c.b16 %v2630, %v2629
        %v2694 = vpack.c.b16 %v2632, %v2631
        %v2695 = vpack.c.b16 %v2634, %v2633
        %v2696 = vpack.c.b16 %v2636, %v2635
        %v2697 = vpack.c.b16 %v2638, %v2637
        %v2698 = vpack.c.b16 %v2640, %v2639
        %v2699 = vpack.c.b16 %v2642, %v2641
        %v2700 = vpack.c.b16 %v2644, %v2643
        %v2701 = vpack.c.b16 %v2646, %v2645
        %v2702 = vpack.c.b16 %v2648, %v2647
        %v2703 = vpack.c.b16 %v2650, %v2649
        %v2704 = vpack.c.b16 %v2652, %v2651
        %v2705 = vpack.c.b16 %v2654, %v2653
        %v2706 = vpack.c.b16 %v2656, %v2655
        %v2707 = vpack.c.b16 %v2658, %v2657
        %v2708 = vpack.c.b16 %v2660, %v2659
        %v2709 = vpack.c.b16 %v2662, %v2661
        %v2710 = vpack.c.b16 %v2664, %v2663
        %v2711 = vpack.c.b16 %v2666, %v2665
        %v2712 = vpack.c.b16 %v2668, %v2667
        %v2713 = vpack.c.b16 %v2670, %v2669
        %v2714 = vpack.c.b16 %v2672, %v2671
        %v2715 = vpack.c.b16 %v2674, %v2673
        %v2716 = vpack.c.b16 %v2676, %v2675
        %v2717 = vpack.c.b16 %v2678, %v2677
        %v2718 = vpack.c.b16 %v2680, %v2679
        %v2719 = vpack.c.b16 %v2682, %v2681
        %v2720 = vpack.c.b16 %v2684, %v2683
        %v2721 = vpack.c.b16 %v2686, %v2685
        %v2722 = vpack.c.b16 %v2688, %v2687
        %v2723 = vpack.c.b16 %v2690, %v2689
        %v2724 = vpack.c.b16 %v2692, %v2691
        %2757 = vmatpush.bf16.msra.mxu0 %v2700
        %2758 = vmatpush.bf16.msra.mxu0 %v2699
        %2759 = vmatpush.bf16.msra.mxu0 %v2698
        %2760 = vmatpush.bf16.msra.mxu0 %v2697
        %2761 = vmatpush.bf16.msra.mxu0 %v2696
        %2762 = vmatpush.bf16.msra.mxu0 %v2695
        %2763 = vmatpush.bf16.msra.mxu0 %v2694
        %2764 = vmatpush.bf16.msra.mxu0 %v2693
        %2765 = vmatmul.bf16.gmra.mxu0 %v2481
        %v2766 = vpop.f32.mrf.mxu0
        %v2767 = vadd.f32 %v2563, %v2766
        %v2768 = vpop.f32.mrf.mxu0
        %v2769 = vadd.f32 %v2563, %v2768
        %2770 = vmatmul.bf16.gmra.mxu0 %v2485
        %v2771 = vpop.f32.mrf.mxu0
        %v2772 = vadd.f32 %v2563, %v2771
        %v2773 = vpop.f32.mrf.mxu0
        %v2774 = vadd.f32 %v2563, %v2773
        %2775 = vmatmul.bf16.gmra.mxu0 %v2489
        %v2776 = vpop.f32.mrf.mxu0
        %v2777 = vadd.f32 %v2563, %v2776
        %v2778 = vpop.f32.mrf.mxu0
        %v2779 = vadd.f32 %v2563, %v2778
        %2780 = vmatmul.bf16.gmra.mxu0 %v2493
        %v2781 = vpop.f32.mrf.mxu0
        %v2782 = vadd.f32 %v2563, %v2781
        %v2783 = vpop.f32.mrf.mxu0
        %v2784 = vadd.f32 %v2563, %v2783
        %2785 = vdwg.mxu0
        %2786 = vmatpush.bf16.msra.mxu0 %v2708
        %2787 = vmatpush.bf16.msra.mxu0 %v2707
        %2788 = vmatpush.bf16.msra.mxu0 %v2706
        %2789 = vmatpush.bf16.msra.mxu0 %v2705
        %2790 = vmatpush.bf16.msra.mxu0 %v2704
        %2791 = vmatpush.bf16.msra.mxu0 %v2703
        %2792 = vmatpush.bf16.msra.mxu0 %v2702
        %2793 = vmatpush.bf16.msra.mxu0 %v2701
        %2794 = vmatmul.bf16.gmra.mxu0 %v2482
        %v2795 = vpop.f32.mrf.mxu0
        %v2796 = vadd.f32 %v2767, %v2795
        %v2797 = vpop.f32.mrf.mxu0
        %v2798 = vadd.f32 %v2769, %v2797
        %2799 = vmatmul.bf16.gmra.mxu0 %v2486
        %v2800 = vpop.f32.mrf.mxu0
        %v2801 = vadd.f32 %v2772, %v2800
        %v2802 = vpop.f32.mrf.mxu0
        %v2803 = vadd.f32 %v2774, %v2802
        %2804 = vmatmul.bf16.gmra.mxu0 %v2490
        %v2805 = vpop.f32.mrf.mxu0
        %v2806 = vadd.f32 %v2777, %v2805
        %v2807 = vpop.f32.mrf.mxu0
        %v2808 = vadd.f32 %v2779, %v2807
        %2809 = vmatmul.bf16.gmra.mxu0 %v2494
        %v2810 = vpop.f32.mrf.mxu0
        %v2811 = vadd.f32 %v2782, %v2810
        %v2812 = vpop.f32.mrf.mxu0
        %v2813 = vadd.f32 %v2784, %v2812
        %2814 = vdwg.mxu0
        %2815 = vmatpush.bf16.msra.mxu0 %v2716
        %2816 = vmatpush.bf16.msra.mxu0 %v2715
        %2817 = vmatpush.bf16.msra.mxu0 %v2714
        %2818 = vmatpush.bf16.msra.mxu0 %v2713
        %2819 = vmatpush.bf16.msra.mxu0 %v2712
        %2820 = vmatpush.bf16.msra.mxu0 %v2711
        %2821 = vmatpush.bf16.msra.mxu0 %v2710
        %2822 = vmatpush.bf16.msra.mxu0 %v2709
        %2823 = vmatmul.bf16.gmra.mxu0 %v2483
        %v2824 = vpop.f32.mrf.mxu0
        %v2825 = vadd.f32 %v2796, %v2824
        %v2826 = vpop.f32.mrf.mxu0
        %v2827 = vadd.f32 %v2798, %v2826
        %2828 = vmatmul.bf16.gmra.mxu0 %v2487
        %v2829 = vpop.f32.mrf.mxu0
        %v2830 = vadd.f32 %v2801, %v2829
        %v2831 = vpop.f32.mrf.mxu0
        %v2832 = vadd.f32 %v2803, %v2831
        %2833 = vmatmul.bf16.gmra.mxu0 %v2491
        %v2834 = vpop.f32.mrf.mxu0
        %v2835 = vadd.f32 %v2806, %v2834
        %v2836 = vpop.f32.mrf.mxu0
        %v2837 = vadd.f32 %v2808, %v2836
        %2838 = vmatmul.bf16.gmra.mxu0 %v2495
        %v2839 = vpop.f32.mrf.mxu0
        %v2840 = vadd.f32 %v2811, %v2839
        %v2841 = vpop.f32.mrf.mxu0
        %v2842 = vadd.f32 %v2813, %v2841
        %2843 = vdwg.mxu0
        %2844 = vmatpush.bf16.msra.mxu0 %v2724
        %2845 = vmatpush.bf16.msra.mxu0 %v2723
        %2846 = vmatpush.bf16.msra.mxu0 %v2722
        %2847 = vmatpush.bf16.msra.mxu0 %v2721
        %2848 = vmatpush.bf16.msra.mxu0 %v2720
        %2849 = vmatpush.bf16.msra.mxu0 %v2719
        %2850 = vmatpush.bf16.msra.mxu0 %v2718
        %2851 = vmatpush.bf16.msra.mxu0 %v2717
        %2852 = vmatmul.bf16.gmra.mxu0 %v2484
        %v2853 = vpop.f32.mrf.mxu0
        %v2854 = vadd.f32 %v2825, %v2853
        %v2855 = vpop.f32.mrf.mxu0
        %v2856 = vadd.f32 %v2827, %v2855
        %2857 = vmatmul.bf16.gmra.mxu0 %v2488
        %v2858 = vpop.f32.mrf.mxu0
        %v2859 = vadd.f32 %v2830, %v2858
        %v2860 = vpop.f32.mrf.mxu0
        %v2861 = vadd.f32 %v2832, %v2860
        %2862 = vmatmul.bf16.gmra.mxu0 %v2492
        %v2863 = vpop.f32.mrf.mxu0
        %v2864 = vadd.f32 %v2835, %v2863
        %v2865 = vpop.f32.mrf.mxu0
        %v2866 = vadd.f32 %v2837, %v2865
        %2867 = vmatmul.bf16.gmra.mxu0 %v2496
        %v2868 = vpop.f32.mrf.mxu0
        %v2869 = vadd.f32 %v2840, %v2868
        %v2870 = vpop.f32.mrf.mxu0
        %v2871 = vadd.f32 %v2842, %v2870
        %2872 = vdwg.mxu0
        %v2873 = vmul.f32 %v2854, %v2854
        %v2874 = vmul.f32 %v2856, %v2856
        %v2875 = vmul.f32 %v2859, %v2859
        %v2876 = vmul.f32 %v2861, %v2861
        %v2877 = vmul.f32 %v2864, %v2864
        %v2878 = vmul.f32 %v2866, %v2866
        %v2879 = vmul.f32 %v2869, %v2869
        %v2880 = vmul.f32 %v2871, %v2871
        %2881 = vadd.xlane.f32.xlu0 %v2873
        %v2882 = vpop.xlane.xlu0 %2881
        %2883 = vadd.xlane.f32.xlu0 %v2874
        %v2884 = vpop.xlane.xlu0 %2883
        %2885 = vadd.xlane.f32.xlu0 %v2875
        %v2886 = vpop.xlane.xlu0 %2885
        %2887 = vadd.xlane.f32.xlu0 %v2876
        %v2888 = vpop.xlane.xlu0 %2887
        %2889 = vadd.xlane.f32.xlu0 %v2877
        %v2890 = vpop.xlane.xlu0 %2889
        %2891 = vadd.xlane.f32.xlu0 %v2878
        %v2892 = vpop.xlane.xlu0 %2891
        %2893 = vadd.xlane.f32.xlu0 %v2879
        %v2894 = vpop.xlane.xlu0 %2893
        %2895 = vadd.xlane.f32.xlu0 %v2880
        %v2896 = vpop.xlane.xlu0 %2895
        %v2897 = vadd.f32 %v2882, 1e-12
        %v2898 = vadd.f32 %v2884, 1e-12
        %v2899 = vadd.f32 %v2886, 1e-12
        %v2900 = vadd.f32 %v2888, 1e-12
        %v2901 = vadd.f32 %v2890, 1e-12
        %v2902 = vadd.f32 %v2892, 1e-12
        %v2903 = vadd.f32 %v2894, 1e-12
        %v2904 = vadd.f32 %v2896, 1e-12
        %v2905 = vrsqrt.pop %v2897
        %v2906 = vmul.f32 %v2905, %v2897
        %v2907 = vmul.f32 %v2906, %v2905
        %v2908 = vmul.f32 0.5, %v2907
        %v2909 = vsub.f32 1.5, %v2908
        %v2910 = vmul.f32 %v2905, %v2909
        %vm2911 = vweird.f32 %v2897
        %vm2912 = vweird.f32 %v2905
        %vm2913 = vmor %vm2911, %vm2912
        %v2914 = vsel %vm2913, %v2905, %v2910
        %v2915 = vrsqrt.pop %v2898
        %v2916 = vmul.f32 %v2915, %v2898
        %v2917 = vmul.f32 %v2916, %v2915
        %v2918 = vmul.f32 0.5, %v2917
        %v2919 = vsub.f32 1.5, %v2918
        %v2920 = vmul.f32 %v2915, %v2919
        %vm2921 = vweird.f32 %v2898
        %vm2922 = vweird.f32 %v2915
        %vm2923 = vmor %vm2921, %vm2922
        %v2924 = vsel %vm2923, %v2915, %v2920
        %v2925 = vrsqrt.pop %v2899
        %v2926 = vmul.f32 %v2925, %v2899
        %v2927 = vmul.f32 %v2926, %v2925
        %v2928 = vmul.f32 0.5, %v2927
        %v2929 = vsub.f32 1.5, %v2928
        %v2930 = vmul.f32 %v2925, %v2929
        %vm2931 = vweird.f32 %v2899
        %vm2932 = vweird.f32 %v2925
        %vm2933 = vmor %vm2931, %vm2932
        %v2934 = vsel %vm2933, %v2925, %v2930
        %v2935 = vrsqrt.pop %v2900
        %v2936 = vmul.f32 %v2935, %v2900
        %v2937 = vmul.f32 %v2936, %v2935
        %v2938 = vmul.f32 0.5, %v2937
        %v2939 = vsub.f32 1.5, %v2938
        %v2940 = vmul.f32 %v2935, %v2939
        %vm2941 = vweird.f32 %v2900
        %vm2942 = vweird.f32 %v2935
        %vm2943 = vmor %vm2941, %vm2942
        %v2944 = vsel %vm2943, %v2935, %v2940
        %v2945 = vrsqrt.pop %v2901
        %v2946 = vmul.f32 %v2945, %v2901
        %v2947 = vmul.f32 %v2946, %v2945
        %v2948 = vmul.f32 0.5, %v2947
        %v2949 = vsub.f32 1.5, %v2948
        %v2950 = vmul.f32 %v2945, %v2949
        %vm2951 = vweird.f32 %v2901
        %vm2952 = vweird.f32 %v2945
        %vm2953 = vmor %vm2951, %vm2952
        %v2954 = vsel %vm2953, %v2945, %v2950
        %v2955 = vrsqrt.pop %v2902
        %v2956 = vmul.f32 %v2955, %v2902
        %v2957 = vmul.f32 %v2956, %v2955
        %v2958 = vmul.f32 0.5, %v2957
        %v2959 = vsub.f32 1.5, %v2958
        %v2960 = vmul.f32 %v2955, %v2959
        %vm2961 = vweird.f32 %v2902
        %vm2962 = vweird.f32 %v2955
        %vm2963 = vmor %vm2961, %vm2962
        %v2964 = vsel %vm2963, %v2955, %v2960
        %v2965 = vrsqrt.pop %v2903
        %v2966 = vmul.f32 %v2965, %v2903
        %v2967 = vmul.f32 %v2966, %v2965
        %v2968 = vmul.f32 0.5, %v2967
        %v2969 = vsub.f32 1.5, %v2968
        %v2970 = vmul.f32 %v2965, %v2969
        %vm2971 = vweird.f32 %v2903
        %vm2972 = vweird.f32 %v2965
        %vm2973 = vmor %vm2971, %vm2972
        %v2974 = vsel %vm2973, %v2965, %v2970
        %v2975 = vrsqrt.pop %v2904
        %v2976 = vmul.f32 %v2975, %v2904
        %v2977 = vmul.f32 %v2976, %v2975
        %v2978 = vmul.f32 0.5, %v2977
        %v2979 = vsub.f32 1.5, %v2978
        %v2980 = vmul.f32 %v2975, %v2979
        %vm2981 = vweird.f32 %v2904
        %vm2982 = vweird.f32 %v2975
        %vm2983 = vmor %vm2981, %vm2982
        %v2984 = vsel %vm2983, %v2975, %v2980
        %v2985 = vmul.f32 %v2854, %v2914
        %v2986 = vmul.f32 %v2856, %v2924
        %v2987 = vmul.f32 %v2859, %v2934
        %v2988 = vmul.f32 %v2861, %v2944
        %v2989 = vmul.f32 %v2864, %v2954
        %v2990 = vmul.f32 %v2866, %v2964
        %v2991 = vmul.f32 %v2869, %v2974
        %v2992 = vmul.f32 %v2871, %v2984
        %v2993 = vld [vmem:[%s385] sm:$0xff]
        %v2994 = vld [vmem:[%s385 + $0x8] sm:$0xff]
        %v2995 = vld [vmem:[%s385 + $0x10] sm:$0xff]
        %v2996 = vld [vmem:[%s385 + $0x18] sm:$0xff]
        %v2997 = vld [vmem:[%s385 + $0x20] sm:$0xff]
        %v2998 = vld [vmem:[%s385 + $0x28] sm:$0xff]
        %v2999 = vld [vmem:[%s385 + $0x30] sm:$0xff]
        %v3000 = vld [vmem:[%s385 + $0x38] sm:$0xff]
        %v3001 = vld [vmem:[%s385 + $0x40] sm:$0xff]
        %v3002 = vld [vmem:[%s385 + $0x48] sm:$0xff]
        %v3003 = vld [vmem:[%s385 + $0x50] sm:$0xff]
        %v3004 = vld [vmem:[%s385 + $0x58] sm:$0xff]
        %v3005 = vld [vmem:[%s385 + $0x60] sm:$0xff]
        %v3006 = vld [vmem:[%s385 + $0x68] sm:$0xff]
        %v3007 = vld [vmem:[%s385 + $0x70] sm:$0xff]
        %v3008 = vld [vmem:[%s385 + $0x78] sm:$0xff]
        %v3009 = vld [vmem:[%s385 + $0x80] sm:$0xff]
        %v3010 = vld [vmem:[%s385 + $0x88] sm:$0xff]
        %v3011 = vld [vmem:[%s385 + $0x90] sm:$0xff]
        %v3012 = vld [vmem:[%s385 + $0x98] sm:$0xff]
        %v3013 = vld [vmem:[%s385 + $0xa0] sm:$0xff]
        %v3014 = vld [vmem:[%s385 + $0xa8] sm:$0xff]
        %v3015 = vld [vmem:[%s385 + $0xb0] sm:$0xff]
        %v3016 = vld [vmem:[%s385 + $0xb8] sm:$0xff]
        %v3017 = vld [vmem:[#allocation9] sm:$0xf]
        %v3018 = vld [vmem:[#allocation9 + $0x4] sm:$0xf]
        %v3019 = vld [vmem:[#allocation9 + $0x8] sm:$0xf]
        %v3020 = vld [vmem:[#allocation9 + $0xc] sm:$0xf]
        %v3021 = vld [vmem:[#allocation9 + $0x10] sm:$0xf]
        %v3022 = vld [vmem:[#allocation9 + $0x14] sm:$0xf]
        %v3023 = vld [vmem:[#allocation9 + $0x18] sm:$0xf]
        %v3024 = vld [vmem:[#allocation9 + $0x1c] sm:$0xf]
        %v3025 = vld [vmem:[#allocation9 + $0x20] sm:$0xf]
        %v3026 = vld [vmem:[#allocation9 + $0x24] sm:$0xf]
        %v3027 = vld [vmem:[#allocation9 + $0x28] sm:$0xf]
        %v3028 = vld [vmem:[#allocation9 + $0x2c] sm:$0xf]
        %v3029 = vld [vmem:[#allocation9 + $0x30] sm:$0xf]
        %v3030 = vld [vmem:[#allocation9 + $0x34] sm:$0xf]
        %v3031 = vld [vmem:[#allocation9 + $0x38] sm:$0xf]
        %v3032 = vld [vmem:[#allocation9 + $0x3c] sm:$0xf]
        %v3033 = vld [vmem:[#allocation9 + $0x40] sm:$0xf]
        %v3034 = vld [vmem:[#allocation9 + $0x44] sm:$0xf]
        %v3035 = vld [vmem:[#allocation9 + $0x48] sm:$0xf]
        %v3036 = vld [vmem:[#allocation9 + $0x4c] sm:$0xf]
        %v3037 = vld [vmem:[#allocation9 + $0x50] sm:$0xf]
        %v3038 = vld [vmem:[#allocation9 + $0x54] sm:$0xf]
        %v3039 = vld [vmem:[#allocation9 + $0x58] sm:$0xf]
        %v3040 = vld [vmem:[#allocation9 + $0x5c] sm:$0xf]
        %v3041 = vld [vmem:[#allocation9 + $0x60] sm:$0xf]
        %v3042 = vld [vmem:[#allocation9 + $0x64] sm:$0xf]
        %v3043 = vld [vmem:[#allocation9 + $0x68] sm:$0xf]
        %v3044 = vld [vmem:[#allocation9 + $0x6c] sm:$0xf]
        %v3045 = vld [vmem:[#allocation9 + $0x70] sm:$0xf]
        %v3046 = vld [vmem:[#allocation9 + $0x74] sm:$0xf]
        %v3047 = vld [vmem:[#allocation9 + $0x78] sm:$0xf]
        %v3048 = vld [vmem:[#allocation9 + $0x7c] sm:$0xf]
        %v3049 = vld [vmem:[#allocation9 + $0x80] sm:$0xf]
        %v3050 = vld [vmem:[#allocation9 + $0x84] sm:$0xf]
        %v3051 = vld [vmem:[#allocation9 + $0x88] sm:$0xf]
        %v3052 = vld [vmem:[#allocation9 + $0x8c] sm:$0xf]
        %v3053 = vld [vmem:[#allocation9 + $0x90] sm:$0xf]
        %v3054 = vld [vmem:[#allocation9 + $0x94] sm:$0xf]
        %v3055 = vld [vmem:[#allocation9 + $0x98] sm:$0xf]
        %v3056 = vld [vmem:[#allocation9 + $0x9c] sm:$0xf]
        %v3057 = vld [vmem:[#allocation9 + $0xa0] sm:$0xf]
        %v3058 = vld [vmem:[#allocation9 + $0xa4] sm:$0xf]
        %v3059 = vld [vmem:[#allocation9 + $0xa8] sm:$0xf]
        %v3060 = vld [vmem:[#allocation9 + $0xac] sm:$0xf]
        %v3061 = vld [vmem:[#allocation9 + $0xb0] sm:$0xf]
        %v3062 = vld [vmem:[#allocation9 + $0xb4] sm:$0xf]
        %v3063 = vld [vmem:[#allocation9 + $0xb8] sm:$0xf]
        %v3064 = vld [vmem:[#allocation9 + $0xbc] sm:$0xf]
        %v3065 = vld [vmem:[#allocation9 + $0xc0] sm:$0xf]
        %v3066 = vld [vmem:[#allocation9 + $0xc4] sm:$0xf]
        %v3067 = vld [vmem:[#allocation9 + $0xc8] sm:$0xf]
        %v3068 = vld [vmem:[#allocation9 + $0xcc] sm:$0xf]
        %v3069 = vld [vmem:[#allocation9 + $0xd0] sm:$0xf]
        %v3070 = vld [vmem:[#allocation9 + $0xd4] sm:$0xf]
        %v3071 = vld [vmem:[#allocation9 + $0xd8] sm:$0xf]
        %v3072 = vld [vmem:[#allocation9 + $0xdc] sm:$0xf]
        %v3073 = vld [vmem:[#allocation9 + $0xe0] sm:$0xf]
        %v3074 = vld [vmem:[#allocation9 + $0xe4] sm:$0xf]
        %v3075 = vld [vmem:[#allocation9 + $0xe8] sm:$0xf]
        %v3076 = vld [vmem:[#allocation9 + $0xec] sm:$0xf]
        %v3077 = vld [vmem:[#allocation9 + $0xf0] sm:$0xf]
        %v3078 = vld [vmem:[#allocation9 + $0xf4] sm:$0xf]
        %v3079 = vld [vmem:[#allocation9 + $0xf8] sm:$0xf]
        %v3080 = vld [vmem:[#allocation9 + $0xfc] sm:$0xf]
        %v3081 = vld [vmem:[#allocation9 + $0x100] sm:$0xf]
        %v3082 = vld [vmem:[#allocation9 + $0x104] sm:$0xf]
        %v3083 = vld [vmem:[#allocation9 + $0x108] sm:$0xf]
        %v3084 = vld [vmem:[#allocation9 + $0x10c] sm:$0xf]
        %v3085 = vld [vmem:[#allocation9 + $0x110] sm:$0xf]
        %v3086 = vld [vmem:[#allocation9 + $0x114] sm:$0xf]
        %v3087 = vld [vmem:[#allocation9 + $0x118] sm:$0xf]
        %v3088 = vld [vmem:[#allocation9 + $0x11c] sm:$0xf]
        %v3089 = vld [vmem:[#allocation9 + $0x120] sm:$0xf]
        %v3090 = vld [vmem:[#allocation9 + $0x124] sm:$0xf]
        %v3091 = vld [vmem:[#allocation9 + $0x128] sm:$0xf]
        %v3092 = vld [vmem:[#allocation9 + $0x12c] sm:$0xf]
        %v3093 = vld [vmem:[#allocation9 + $0x130] sm:$0xf]
        %v3094 = vld [vmem:[#allocation9 + $0x134] sm:$0xf]
        %v3095 = vld [vmem:[#allocation9 + $0x138] sm:$0xf]
        %v3096 = vld [vmem:[#allocation9 + $0x13c] sm:$0xf]
        %v3097 = vld [vmem:[#allocation9 + $0x140] sm:$0xf]
        %v3098 = vld [vmem:[#allocation9 + $0x144] sm:$0xf]
        %v3099 = vld [vmem:[#allocation9 + $0x148] sm:$0xf]
        %v3100 = vld [vmem:[#allocation9 + $0x14c] sm:$0xf]
        %v3101 = vld [vmem:[#allocation9 + $0x150] sm:$0xf]
        %v3102 = vld [vmem:[#allocation9 + $0x154] sm:$0xf]
        %v3103 = vld [vmem:[#allocation9 + $0x158] sm:$0xf]
        %v3104 = vld [vmem:[#allocation9 + $0x15c] sm:$0xf]
        %v3105 = vld [vmem:[#allocation9 + $0x160] sm:$0xf]
        %v3106 = vld [vmem:[#allocation9 + $0x164] sm:$0xf]
        %v3107 = vld [vmem:[#allocation9 + $0x168] sm:$0xf]
        %v3108 = vld [vmem:[#allocation9 + $0x16c] sm:$0xf]
        %v3109 = vld [vmem:[#allocation9 + $0x170] sm:$0xf]
        %v3110 = vld [vmem:[#allocation9 + $0x174] sm:$0xf]
        %v3111 = vld [vmem:[#allocation9 + $0x178] sm:$0xf]
        %v3112 = vld [vmem:[#allocation9 + $0x17c] sm:$0xf]
        %v3113 = vld [vmem:[%s7 + $0x1] sm:$0x1]
        %v3115 = vperm.slane %v3113, 0
        %v3141 = vunpack.c.l.b16 %v2993
        %v3142 = vunpack.c.h.b16 %v2993
        %v3143 = vunpack.c.l.b16 %v2994
        %v3144 = vunpack.c.h.b16 %v2994
        %v3145 = vunpack.c.l.b16 %v2995
        %v3146 = vunpack.c.h.b16 %v2995
        %v3147 = vunpack.c.l.b16 %v2996
        %v3148 = vunpack.c.h.b16 %v2996
        %v3149 = vunpack.c.l.b16 %v2997
        %v3150 = vunpack.c.h.b16 %v2997
        %v3151 = vunpack.c.l.b16 %v2998
        %v3152 = vunpack.c.h.b16 %v2998
        %v3153 = vunpack.c.l.b16 %v2999
        %v3154 = vunpack.c.h.b16 %v2999
        %v3155 = vunpack.c.l.b16 %v3000
        %v3156 = vunpack.c.h.b16 %v3000
        %v3157 = vunpack.c.l.b16 %v3001
        %v3158 = vunpack.c.h.b16 %v3001
        %v3159 = vunpack.c.l.b16 %v3002
        %v3160 = vunpack.c.h.b16 %v3002
        %v3161 = vunpack.c.l.b16 %v3003
        %v3162 = vunpack.c.h.b16 %v3003
        %v3163 = vunpack.c.l.b16 %v3004
        %v3164 = vunpack.c.h.b16 %v3004
        %v3165 = vunpack.c.l.b16 %v3005
        %v3166 = vunpack.c.h.b16 %v3005
        %v3167 = vunpack.c.l.b16 %v3006
        %v3168 = vunpack.c.h.b16 %v3006
        %v3169 = vunpack.c.l.b16 %v3007
        %v3170 = vunpack.c.h.b16 %v3007
        %v3171 = vunpack.c.l.b16 %v3008
        %v3172 = vunpack.c.h.b16 %v3008
        %v3173 = vunpack.c.l.b16 %v3009
        %v3174 = vunpack.c.h.b16 %v3009
        %v3175 = vunpack.c.l.b16 %v3010
        %v3176 = vunpack.c.h.b16 %v3010
        %v3177 = vunpack.c.l.b16 %v3011
        %v3178 = vunpack.c.h.b16 %v3011
        %v3179 = vunpack.c.l.b16 %v3012
        %v3180 = vunpack.c.h.b16 %v3012
        %v3181 = vunpack.c.l.b16 %v3013
        %v3182 = vunpack.c.h.b16 %v3013
        %v3183 = vunpack.c.l.b16 %v3014
        %v3184 = vunpack.c.h.b16 %v3014
        %v3185 = vunpack.c.l.b16 %v3015
        %v3186 = vunpack.c.h.b16 %v3015
        %v3187 = vunpack.c.l.b16 %v3016
        %v3188 = vunpack.c.h.b16 %v3016
        %v3189 = vpack.c.b16 %v3147, %v3141
        %v3190 = vpack.c.b16 %v3148, %v3142
        %v3191 = vpack.c.b16 %v3149, %v3143
        %v3192 = vpack.c.b16 %v3150, %v3144
        %v3193 = vpack.c.b16 %v3151, %v3145
        %v3194 = vpack.c.b16 %v3152, %v3146
        %v3195 = vpack.c.b16 %v3159, %v3153
        %v3196 = vpack.c.b16 %v3160, %v3154
        %v3197 = vpack.c.b16 %v3161, %v3155
        %v3198 = vpack.c.b16 %v3162, %v3156
        %v3199 = vpack.c.b16 %v3163, %v3157
        %v3200 = vpack.c.b16 %v3164, %v3158
        %v3201 = vpack.c.b16 %v3171, %v3165
        %v3202 = vpack.c.b16 %v3172, %v3166
        %v3203 = vpack.c.b16 %v3173, %v3167
        %v3204 = vpack.c.b16 %v3174, %v3168
        %v3205 = vpack.c.b16 %v3175, %v3169
        %v3206 = vpack.c.b16 %v3176, %v3170
        %v3207 = vpack.c.b16 %v3183, %v3177
        %v3208 = vpack.c.b16 %v3184, %v3178
        %v3209 = vpack.c.b16 %v3185, %v3179
        %v3210 = vpack.c.b16 %v3186, %v3180
        %v3211 = vpack.c.b16 %v3187, %v3181
        %v3212 = vpack.c.b16 %v3188, %v3182
        %v3333 = vunpack.c.l.b16 %v3017
        %v3334 = vunpack.c.l.b16 %v3018
        %v3335 = vunpack.c.l.b16 %v3019
        %v3336 = vunpack.c.l.b16 %v3020
        %v3337 = vunpack.c.l.b16 %v3021
        %v3338 = vunpack.c.l.b16 %v3022
        %v3339 = vunpack.c.l.b16 %v3023
        %v3340 = vunpack.c.l.b16 %v3024
        %v3341 = vunpack.c.l.b16 %v3025
        %v3342 = vunpack.c.l.b16 %v3026
        %v3343 = vunpack.c.l.b16 %v3027
        %v3344 = vunpack.c.l.b16 %v3028
        %v3345 = vunpack.c.l.b16 %v3029
        %v3346 = vunpack.c.l.b16 %v3030
        %v3347 = vunpack.c.l.b16 %v3031
        %v3348 = vunpack.c.l.b16 %v3032
        %v3349 = vunpack.c.l.b16 %v3033
        %v3350 = vunpack.c.l.b16 %v3034
        %v3351 = vunpack.c.l.b16 %v3035
        %v3352 = vunpack.c.l.b16 %v3036
        %v3353 = vunpack.c.l.b16 %v3037
        %v3354 = vunpack.c.l.b16 %v3038
        %v3355 = vunpack.c.l.b16 %v3039
        %v3356 = vunpack.c.l.b16 %v3040
        %v3357 = vunpack.c.l.b16 %v3041
        %v3358 = vunpack.c.l.b16 %v3042
        %v3359 = vunpack.c.l.b16 %v3043
        %v3360 = vunpack.c.l.b16 %v3044
        %v3361 = vunpack.c.l.b16 %v3045
        %v3362 = vunpack.c.l.b16 %v3046
        %v3363 = vunpack.c.l.b16 %v3047
        %v3364 = vunpack.c.l.b16 %v3048
        %v3365 = vunpack.c.l.b16 %v3049
        %v3366 = vunpack.c.l.b16 %v3050
        %v3367 = vunpack.c.l.b16 %v3051
        %v3368 = vunpack.c.l.b16 %v3052
        %v3369 = vunpack.c.l.b16 %v3053
        %v3370 = vunpack.c.l.b16 %v3054
        %v3371 = vunpack.c.l.b16 %v3055
        %v3372 = vunpack.c.l.b16 %v3056
        %v3373 = vunpack.c.l.b16 %v3057
        %v3374 = vunpack.c.l.b16 %v3058
        %v3375 = vunpack.c.l.b16 %v3059
        %v3376 = vunpack.c.l.b16 %v3060
        %v3377 = vunpack.c.l.b16 %v3061
        %v3378 = vunpack.c.l.b16 %v3062
        %v3379 = vunpack.c.l.b16 %v3063
        %v3380 = vunpack.c.l.b16 %v3064
        %v3381 = vunpack.c.l.b16 %v3065
        %v3382 = vunpack.c.l.b16 %v3066
        %v3383 = vunpack.c.l.b16 %v3067
        %v3384 = vunpack.c.l.b16 %v3068
        %v3385 = vunpack.c.l.b16 %v3069
        %v3386 = vunpack.c.l.b16 %v3070
        %v3387 = vunpack.c.l.b16 %v3071
        %v3388 = vunpack.c.l.b16 %v3072
        %v3389 = vunpack.c.l.b16 %v3073
        %v3390 = vunpack.c.l.b16 %v3074
        %v3391 = vunpack.c.l.b16 %v3075
        %v3392 = vunpack.c.l.b16 %v3076
        %v3393 = vunpack.c.l.b16 %v3077
        %v3394 = vunpack.c.l.b16 %v3078
        %v3395 = vunpack.c.l.b16 %v3079
        %v3396 = vunpack.c.l.b16 %v3080
        %v3397 = vunpack.c.l.b16 %v3081
        %v3398 = vunpack.c.l.b16 %v3082
        %v3399 = vunpack.c.l.b16 %v3083
        %v3400 = vunpack.c.l.b16 %v3084
        %v3401 = vunpack.c.l.b16 %v3085
        %v3402 = vunpack.c.l.b16 %v3086
        %v3403 = vunpack.c.l.b16 %v3087
        %v3404 = vunpack.c.l.b16 %v3088
        %v3405 = vunpack.c.l.b16 %v3089
        %v3406 = vunpack.c.l.b16 %v3090
        %v3407 = vunpack.c.l.b16 %v3091
        %v3408 = vunpack.c.l.b16 %v3092
        %v3409 = vunpack.c.l.b16 %v3093
        %v3410 = vunpack.c.l.b16 %v3094
        %v3411 = vunpack.c.l.b16 %v3095
        %v3412 = vunpack.c.l.b16 %v3096
        %v3413 = vunpack.c.l.b16 %v3097
        %v3414 = vunpack.c.l.b16 %v3098
        %v3415 = vunpack.c.l.b16 %v3099
        %v3416 = vunpack.c.l.b16 %v3100
        %v3417 = vunpack.c.l.b16 %v3101
        %v3418 = vunpack.c.l.b16 %v3102
        %v3419 = vunpack.c.l.b16 %v3103
        %v3420 = vunpack.c.l.b16 %v3104
        %v3421 = vunpack.c.l.b16 %v3105
        %v3422 = vunpack.c.l.b16 %v3106
        %v3423 = vunpack.c.l.b16 %v3107
        %v3424 = vunpack.c.l.b16 %v3108
        %v3425 = vunpack.c.l.b16 %v3109
        %v3426 = vunpack.c.l.b16 %v3110
        %v3427 = vunpack.c.l.b16 %v3111
        %v3428 = vunpack.c.l.b16 %v3112
        %v3429 = vpack.c.b16 %v3334, %v3333
        %v3430 = vpack.c.b16 %v3336, %v3335
        %v3431 = vpack.c.b16 %v3338, %v3337
        %v3432 = vpack.c.b16 %v3340, %v3339
        %v3433 = vpack.c.b16 %v3342, %v3341
        %v3434 = vpack.c.b16 %v3344, %v3343
        %v3435 = vpack.c.b16 %v3346, %v3345
        %v3436 = vpack.c.b16 %v3348, %v3347
        %v3437 = vpack.c.b16 %v3350, %v3349
        %v3438 = vpack.c.b16 %v3352, %v3351
        %v3439 = vpack.c.b16 %v3354, %v3353
        %v3440 = vpack.c.b16 %v3356, %v3355
        %v3441 = vpack.c.b16 %v3358, %v3357
        %v3442 = vpack.c.b16 %v3360, %v3359
        %v3443 = vpack.c.b16 %v3362, %v3361
        %v3444 = vpack.c.b16 %v3364, %v3363
        %v3445 = vpack.c.b16 %v3366, %v3365
        %v3446 = vpack.c.b16 %v3368, %v3367
        %v3447 = vpack.c.b16 %v3370, %v3369
        %v3448 = vpack.c.b16 %v3372, %v3371
        %v3449 = vpack.c.b16 %v3374, %v3373
        %v3450 = vpack.c.b16 %v3376, %v3375
        %v3451 = vpack.c.b16 %v3378, %v3377
        %v3452 = vpack.c.b16 %v3380, %v3379
        %v3453 = vpack.c.b16 %v3382, %v3381
        %v3454 = vpack.c.b16 %v3384, %v3383
        %v3455 = vpack.c.b16 %v3386, %v3385
        %v3456 = vpack.c.b16 %v3388, %v3387
        %v3457 = vpack.c.b16 %v3390, %v3389
        %v3458 = vpack.c.b16 %v3392, %v3391
        %v3459 = vpack.c.b16 %v3394, %v3393
        %v3460 = vpack.c.b16 %v3396, %v3395
        %v3461 = vpack.c.b16 %v3398, %v3397
        %v3462 = vpack.c.b16 %v3400, %v3399
        %v3463 = vpack.c.b16 %v3402, %v3401
        %v3464 = vpack.c.b16 %v3404, %v3403
        %v3465 = vpack.c.b16 %v3406, %v3405
        %v3466 = vpack.c.b16 %v3408, %v3407
        %v3467 = vpack.c.b16 %v3410, %v3409
        %v3468 = vpack.c.b16 %v3412, %v3411
        %v3469 = vpack.c.b16 %v3414, %v3413
        %v3470 = vpack.c.b16 %v3416, %v3415
        %v3471 = vpack.c.b16 %v3418, %v3417
        %v3472 = vpack.c.b16 %v3420, %v3419
        %v3473 = vpack.c.b16 %v3422, %v3421
        %v3474 = vpack.c.b16 %v3424, %v3423
        %v3475 = vpack.c.b16 %v3426, %v3425
        %v3476 = vpack.c.b16 %v3428, %v3427
        %3525 = vmatpush.bf16.msra.mxu0 %v3436
        %3526 = vmatpush.bf16.msra.mxu0 %v3435
        %3527 = vmatpush.bf16.msra.mxu0 %v3434
        %3528 = vmatpush.bf16.msra.mxu0 %v3433
        %3529 = vmatpush.bf16.msra.mxu0 %v3432
        %3530 = vmatpush.bf16.msra.mxu0 %v3431
        %3531 = vmatpush.bf16.msra.mxu0 %v3430
        %3532 = vmatpush.bf16.msra.mxu0 %v3429
        %3533 = vmatmul.bf16.gmra.mxu0 %v3189
        %v3534 = vpop.f32.mrf.mxu0
        %v3535 = vadd.f32 %v3115, %v3534
        %v3536 = vpop.f32.mrf.mxu0
        %v3537 = vadd.f32 %v3115, %v3536
        %3538 = vmatmul.bf16.gmra.mxu0 %v3195
        %v3539 = vpop.f32.mrf.mxu0
        %v3540 = vadd.f32 %v3115, %v3539
        %v3541 = vpop.f32.mrf.mxu0
        %v3542 = vadd.f32 %v3115, %v3541
        %3543 = vmatmul.bf16.gmra.mxu0 %v3201
        %v3544 = vpop.f32.mrf.mxu0
        %v3545 = vadd.f32 %v3115, %v3544
        %v3546 = vpop.f32.mrf.mxu0
        %v3547 = vadd.f32 %v3115, %v3546
        %3548 = vmatmul.bf16.gmra.mxu0 %v3207
        %v3549 = vpop.f32.mrf.mxu0
        %v3550 = vadd.f32 %v3115, %v3549
        %v3551 = vpop.f32.mrf.mxu0
        %v3552 = vadd.f32 %v3115, %v3551
        %3553 = vdwg.mxu0
        %3554 = vmatpush.bf16.msra.mxu0 %v3444
        %3555 = vmatpush.bf16.msra.mxu0 %v3443
        %3556 = vmatpush.bf16.msra.mxu0 %v3442
        %3557 = vmatpush.bf16.msra.mxu0 %v3441
        %3558 = vmatpush.bf16.msra.mxu0 %v3440
        %3559 = vmatpush.bf16.msra.mxu0 %v3439
        %3560 = vmatpush.bf16.msra.mxu0 %v3438
        %3561 = vmatpush.bf16.msra.mxu0 %v3437
        %3562 = vmatmul.bf16.gmra.mxu0 %v3190
        %v3563 = vpop.f32.mrf.mxu0
        %v3564 = vadd.f32 %v3535, %v3563
        %v3565 = vpop.f32.mrf.mxu0
        %v3566 = vadd.f32 %v3537, %v3565
        %3567 = vmatmul.bf16.gmra.mxu0 %v3196
        %v3568 = vpop.f32.mrf.mxu0
        %v3569 = vadd.f32 %v3540, %v3568
        %v3570 = vpop.f32.mrf.mxu0
        %v3571 = vadd.f32 %v3542, %v3570
        %3572 = vmatmul.bf16.gmra.mxu0 %v3202
        %v3573 = vpop.f32.mrf.mxu0
        %v3574 = vadd.f32 %v3545, %v3573
        %v3575 = vpop.f32.mrf.mxu0
        %v3576 = vadd.f32 %v3547, %v3575
        %3577 = vmatmul.bf16.gmra.mxu0 %v3208
        %v3578 = vpop.f32.mrf.mxu0
        %v3579 = vadd.f32 %v3550, %v3578
        %v3580 = vpop.f32.mrf.mxu0
        %v3581 = vadd.f32 %v3552, %v3580
        %3582 = vdwg.mxu0
        %3583 = vmatpush.bf16.msra.mxu0 %v3452
        %3584 = vmatpush.bf16.msra.mxu0 %v3451
        %3585 = vmatpush.bf16.msra.mxu0 %v3450
        %3586 = vmatpush.bf16.msra.mxu0 %v3449
        %3587 = vmatpush.bf16.msra.mxu0 %v3448
        %3588 = vmatpush.bf16.msra.mxu0 %v3447
        %3589 = vmatpush.bf16.msra.mxu0 %v3446
        %3590 = vmatpush.bf16.msra.mxu0 %v3445
        %3591 = vmatmul.bf16.gmra.mxu0 %v3191
        %v3592 = vpop.f32.mrf.mxu0
        %v3593 = vadd.f32 %v3564, %v3592
        %v3594 = vpop.f32.mrf.mxu0
        %v3595 = vadd.f32 %v3566, %v3594
        %3596 = vmatmul.bf16.gmra.mxu0 %v3197
        %v3597 = vpop.f32.mrf.mxu0
        %v3598 = vadd.f32 %v3569, %v3597
        %v3599 = vpop.f32.mrf.mxu0
        %v3600 = vadd.f32 %v3571, %v3599
        %3601 = vmatmul.bf16.gmra.mxu0 %v3203
        %v3602 = vpop.f32.mrf.mxu0
        %v3603 = vadd.f32 %v3574, %v3602
        %v3604 = vpop.f32.mrf.mxu0
        %v3605 = vadd.f32 %v3576, %v3604
        %3606 = vmatmul.bf16.gmra.mxu0 %v3209
        %v3607 = vpop.f32.mrf.mxu0
        %v3608 = vadd.f32 %v3579, %v3607
        %v3609 = vpop.f32.mrf.mxu0
        %v3610 = vadd.f32 %v3581, %v3609
        %3611 = vdwg.mxu0
        %3612 = vmatpush.bf16.msra.mxu0 %v3460
        %3613 = vmatpush.bf16.msra.mxu0 %v3459
        %3614 = vmatpush.bf16.msra.mxu0 %v3458
        %3615 = vmatpush.bf16.msra.mxu0 %v3457
        %3616 = vmatpush.bf16.msra.mxu0 %v3456
        %3617 = vmatpush.bf16.msra.mxu0 %v3455
        %3618 = vmatpush.bf16.msra.mxu0 %v3454
        %3619 = vmatpush.bf16.msra.mxu0 %v3453
        %3620 = vmatmul.bf16.gmra.mxu0 %v3192
        %v3621 = vpop.f32.mrf.mxu0
        %v3622 = vadd.f32 %v3593, %v3621
        %v3623 = vpop.f32.mrf.mxu0
        %v3624 = vadd.f32 %v3595, %v3623
        %3625 = vmatmul.bf16.gmra.mxu0 %v3198
        %v3626 = vpop.f32.mrf.mxu0
        %v3627 = vadd.f32 %v3598, %v3626
        %v3628 = vpop.f32.mrf.mxu0
        %v3629 = vadd.f32 %v3600, %v3628
        %3630 = vmatmul.bf16.gmra.mxu0 %v3204
        %v3631 = vpop.f32.mrf.mxu0
        %v3632 = vadd.f32 %v3603, %v3631
        %v3633 = vpop.f32.mrf.mxu0
        %v3634 = vadd.f32 %v3605, %v3633
        %3635 = vmatmul.bf16.gmra.mxu0 %v3210
        %v3636 = vpop.f32.mrf.mxu0
        %v3637 = vadd.f32 %v3608, %v3636
        %v3638 = vpop.f32.mrf.mxu0
        %v3639 = vadd.f32 %v3610, %v3638
        %3640 = vdwg.mxu0
        %3641 = vmatpush.bf16.msra.mxu0 %v3468
        %3642 = vmatpush.bf16.msra.mxu0 %v3467
        %3643 = vmatpush.bf16.msra.mxu0 %v3466
        %3644 = vmatpush.bf16.msra.mxu0 %v3465
        %3645 = vmatpush.bf16.msra.mxu0 %v3464
        %3646 = vmatpush.bf16.msra.mxu0 %v3463
        %3647 = vmatpush.bf16.msra.mxu0 %v3462
        %3648 = vmatpush.bf16.msra.mxu0 %v3461
        %3649 = vmatmul.bf16.gmra.mxu0 %v3193
        %v3650 = vpop.f32.mrf.mxu0
        %v3651 = vadd.f32 %v3622, %v3650
        %v3652 = vpop.f32.mrf.mxu0
        %v3653 = vadd.f32 %v3624, %v3652
        %3654 = vmatmul.bf16.gmra.mxu0 %v3199
        %v3655 = vpop.f32.mrf.mxu0
        %v3656 = vadd.f32 %v3627, %v3655
        %v3657 = vpop.f32.mrf.mxu0
        %v3658 = vadd.f32 %v3629, %v3657
        %3659 = vmatmul.bf16.gmra.mxu0 %v3205
        %v3660 = vpop.f32.mrf.mxu0
        %v3661 = vadd.f32 %v3632, %v3660
        %v3662 = vpop.f32.mrf.mxu0
        %v3663 = vadd.f32 %v3634, %v3662
        %3664 = vmatmul.bf16.gmra.mxu0 %v3211
        %v3665 = vpop.f32.mrf.mxu0
        %v3666 = vadd.f32 %v3637, %v3665
        %v3667 = vpop.f32.mrf.mxu0
        %v3668 = vadd.f32 %v3639, %v3667
        %3669 = vdwg.mxu0
        %3670 = vmatpush.bf16.msra.mxu0 %v3476
        %3671 = vmatpush.bf16.msra.mxu0 %v3475
        %3672 = vmatpush.bf16.msra.mxu0 %v3474
        %3673 = vmatpush.bf16.msra.mxu0 %v3473
        %3674 = vmatpush.bf16.msra.mxu0 %v3472
        %3675 = vmatpush.bf16.msra.mxu0 %v3471
        %3676 = vmatpush.bf16.msra.mxu0 %v3470
        %3677 = vmatpush.bf16.msra.mxu0 %v3469
        %3678 = vmatmul.bf16.gmra.mxu0 %v3194
        %v3679 = vpop.f32.mrf.mxu0
        %v3680 = vadd.f32 %v3651, %v3679
        %v3681 = vpop.f32.mrf.mxu0
        %v3682 = vadd.f32 %v3653, %v3681
        %3683 = vmatmul.bf16.gmra.mxu0 %v3200
        %v3684 = vpop.f32.mrf.mxu0
        %v3685 = vadd.f32 %v3656, %v3684
        %v3686 = vpop.f32.mrf.mxu0
        %v3687 = vadd.f32 %v3658, %v3686
        %3688 = vmatmul.bf16.gmra.mxu0 %v3206
        %v3689 = vpop.f32.mrf.mxu0
        %v3690 = vadd.f32 %v3661, %v3689
        %v3691 = vpop.f32.mrf.mxu0
        %v3692 = vadd.f32 %v3663, %v3691
        %3693 = vmatmul.bf16.gmra.mxu0 %v3212
        %v3694 = vpop.f32.mrf.mxu0
        %v3695 = vadd.f32 %v3666, %v3694
        %v3696 = vpop.f32.mrf.mxu0
        %v3697 = vadd.f32 %v3668, %v3696
        %3698 = vdwg.mxu0
        %v3699 = vmul.f32 %v2985, %v3680
        %v3700 = vmul.f32 %v2986, %v3682
        %v3701 = vmul.f32 %v2987, %v3685
        %v3702 = vmul.f32 %v2988, %v3687
        %v3703 = vmul.f32 %v2989, %v3690
        %v3704 = vmul.f32 %v2990, %v3692
        %v3705 = vmul.f32 %v2991, %v3695
        %v3706 = vmul.f32 %v2992, %v3697
        %v3707 = vtanh.pop %v3699
        %v3708 = vtanh.pop %v3700
        %v3709 = vtanh.pop %v3701
        %v3710 = vtanh.pop %v3702
        %v3711 = vtanh.pop %v3703
        %v3712 = vtanh.pop %v3704
        %v3713 = vtanh.pop %v3705
        %v3714 = vtanh.pop %v3706
        %v3715 = vpack.c.bf16 %v3708, %v3707
        %v3716 = vpack.c.bf16 %v3710, %v3709
        %v3717 = vpack.c.bf16 %v3712, %v3711
        %v3718 = vpack.c.bf16 %v3714, %v3713
        %v3719 = vld [vmem:[#allocation10] sm:$0xff]
        %v3720 = vld [vmem:[#allocation10 + $0x8] sm:$0xff]
        %v3721 = vld [vmem:[#allocation10 + $0x10] sm:$0xff]
        %v3722 = vld [vmem:[#allocation10 + $0x18] sm:$0xff]
        %v3723 = vld [vmem:[#allocation10 + $0x20] sm:$0xff]
        %v3724 = vld [vmem:[#allocation10 + $0x28] sm:$0xff]
        %v3725 = vld [vmem:[#allocation10 + $0x30] sm:$0xff]
        %v3726 = vld [vmem:[#allocation10 + $0x38] sm:$0xff]
        %v3727 = vld [vmem:[#allocation10 + $0x40] sm:$0xff]
        %v3728 = vld [vmem:[#allocation10 + $0x48] sm:$0xff]
        %v3729 = vld [vmem:[#allocation10 + $0x50] sm:$0xff]
        %v3730 = vld [vmem:[#allocation10 + $0x58] sm:$0xff]
        %v3731 = vld [vmem:[#allocation10 + $0x60] sm:$0xff]
        %v3732 = vld [vmem:[#allocation10 + $0x68] sm:$0xff]
        %v3733 = vld [vmem:[#allocation10 + $0x70] sm:$0xff]
        %v3734 = vld [vmem:[#allocation10 + $0x78] sm:$0xff]
        %v3735 = vld [vmem:[%s7 + $0x2] sm:$0x3]
        %v3737 = vperm.slane %v3735, 0
        %v3738 = vperm.slane %v3735, 1
        %v3757 = vunpack.c.l.b16 %v3719
        %v3758 = vunpack.c.h.b16 %v3719
        %v3759 = vunpack.c.l.b16 %v3720
        %v3760 = vunpack.c.h.b16 %v3720
        %v3761 = vunpack.c.l.b16 %v3721
        %v3762 = vunpack.c.h.b16 %v3721
        %v3763 = vunpack.c.l.b16 %v3722
        %v3764 = vunpack.c.h.b16 %v3722
        %v3765 = vunpack.c.l.b16 %v3723
        %v3766 = vunpack.c.h.b16 %v3723
        %v3767 = vunpack.c.l.b16 %v3724
        %v3768 = vunpack.c.h.b16 %v3724
        %v3769 = vunpack.c.l.b16 %v3725
        %v3770 = vunpack.c.h.b16 %v3725
        %v3771 = vunpack.c.l.b16 %v3726
        %v3772 = vunpack.c.h.b16 %v3726
        %v3773 = vunpack.c.l.b16 %v3727
        %v3774 = vunpack.c.h.b16 %v3727
        %v3775 = vunpack.c.l.b16 %v3728
        %v3776 = vunpack.c.h.b16 %v3728
        %v3777 = vunpack.c.l.b16 %v3729
        %v3778 = vunpack.c.h.b16 %v3729
        %v3779 = vunpack.c.l.b16 %v3730
        %v3780 = vunpack.c.h.b16 %v3730
        %v3781 = vunpack.c.l.b16 %v3731
        %v3782 = vunpack.c.h.b16 %v3731
        %v3783 = vunpack.c.l.b16 %v3732
        %v3784 = vunpack.c.h.b16 %v3732
        %v3785 = vunpack.c.l.b16 %v3733
        %v3786 = vunpack.c.h.b16 %v3733
        %v3787 = vunpack.c.l.b16 %v3734
        %v3788 = vunpack.c.h.b16 %v3734
        %v3789 = vpack.c.b16 %v3759, %v3757
        %v3790 = vpack.c.b16 %v3760, %v3758
        %v3791 = vpack.c.b16 %v3763, %v3761
        %v3792 = vpack.c.b16 %v3764, %v3762
        %v3793 = vpack.c.b16 %v3767, %v3765
        %v3794 = vpack.c.b16 %v3768, %v3766
        %v3795 = vpack.c.b16 %v3771, %v3769
        %v3796 = vpack.c.b16 %v3772, %v3770
        %v3797 = vpack.c.b16 %v3775, %v3773
        %v3798 = vpack.c.b16 %v3776, %v3774
        %v3799 = vpack.c.b16 %v3779, %v3777
        %v3800 = vpack.c.b16 %v3780, %v3778
        %v3801 = vpack.c.b16 %v3783, %v3781
        %v3802 = vpack.c.b16 %v3784, %v3782
        %v3803 = vpack.c.b16 %v3787, %v3785
        %v3804 = vpack.c.b16 %v3788, %v3786
        %3821 = vmatpush.bf16.msra.mxu0 %v3803
        %3822 = vmatpush.bf16.msra.mxu0 %v3801
        %3823 = vmatpush.bf16.msra.mxu0 %v3799
        %3824 = vmatpush.bf16.msra.mxu0 %v3797
        %3825 = vmatpush.bf16.msra.mxu0 %v3795
        %3826 = vmatpush.bf16.msra.mxu0 %v3793
        %3827 = vmatpush.bf16.msra.mxu0 %v3791
        %3828 = vmatpush.bf16.msra.mxu0 %v3789
        %3829 = vmatmul.bf16.gmra.mxu0 %v3715
        %v3830 = vpop.f32.mrf.mxu0
        %v3831 = vadd.f32 %v3737, %v3830
        %v3832 = vpop.f32.mrf.mxu0
        %v3833 = vadd.f32 %v3737, %v3832
        %3834 = vmatmul.bf16.gmra.mxu0 %v3716
        %v3835 = vpop.f32.mrf.mxu0
        %v3836 = vadd.f32 %v3737, %v3835
        %v3837 = vpop.f32.mrf.mxu0
        %v3838 = vadd.f32 %v3737, %v3837
        %3839 = vmatmul.bf16.gmra.mxu0 %v3717
        %v3840 = vpop.f32.mrf.mxu0
        %v3841 = vadd.f32 %v3737, %v3840
        %v3842 = vpop.f32.mrf.mxu0
        %v3843 = vadd.f32 %v3737, %v3842
        %3844 = vmatmul.bf16.gmra.mxu0 %v3718
        %v3845 = vpop.f32.mrf.mxu0
        %v3846 = vadd.f32 %v3737, %v3845
        %v3847 = vpop.f32.mrf.mxu0
        %v3848 = vadd.f32 %v3737, %v3847
        %3849 = vdwg.mxu0
        %3850 = vmatpush.bf16.msra.mxu0 %v3804
        %3851 = vmatpush.bf16.msra.mxu0 %v3802
        %3852 = vmatpush.bf16.msra.mxu0 %v3800
        %3853 = vmatpush.bf16.msra.mxu0 %v3798
        %3854 = vmatpush.bf16.msra.mxu0 %v3796
        %3855 = vmatpush.bf16.msra.mxu0 %v3794
        %3856 = vmatpush.bf16.msra.mxu0 %v3792
        %3857 = vmatpush.bf16.msra.mxu0 %v3790
        %3858 = vmatmul.bf16.gmra.mxu0 %v3715
        %v3859 = vpop.f32.mrf.mxu0
        %v3860 = vadd.f32 %v3738, %v3859
        %v3861 = vpop.f32.mrf.mxu0
        %v3862 = vadd.f32 %v3738, %v3861
        %3863 = vmatmul.bf16.gmra.mxu0 %v3716
        %v3864 = vpop.f32.mrf.mxu0
        %v3865 = vadd.f32 %v3738, %v3864
        %v3866 = vpop.f32.mrf.mxu0
        %v3867 = vadd.f32 %v3738, %v3866
        %3868 = vmatmul.bf16.gmra.mxu0 %v3717
        %v3869 = vpop.f32.mrf.mxu0
        %v3870 = vadd.f32 %v3738, %v3869
        %v3871 = vpop.f32.mrf.mxu0
        %v3872 = vadd.f32 %v3738, %v3871
        %3873 = vmatmul.bf16.gmra.mxu0 %v3718
        %v3874 = vpop.f32.mrf.mxu0
        %v3875 = vadd.f32 %v3738, %v3874
        %v3876 = vpop.f32.mrf.mxu0
        %v3877 = vadd.f32 %v3738, %v3876
        %3878 = vdwg.mxu0
        %v3879 = vtanh.pop %v3831
        %v3880 = vtanh.pop %v3860
        %v3881 = vtanh.pop %v3833
        %v3882 = vtanh.pop %v3862
        %v3883 = vtanh.pop %v3836
        %v3884 = vtanh.pop %v3865
        %v3885 = vtanh.pop %v3838
        %v3886 = vtanh.pop %v3867
        %v3887 = vtanh.pop %v3841
        %v3888 = vtanh.pop %v3870
        %v3889 = vtanh.pop %v3843
        %v3890 = vtanh.pop %v3872
        %v3891 = vtanh.pop %v3846
        %v3892 = vtanh.pop %v3875
        %v3893 = vtanh.pop %v3848
        %v3894 = vtanh.pop %v3877
        %v3895 = vpack.c.bf16 %v3881, %v3879
        %v3896 = vpack.c.bf16 %v3882, %v3880
        %v3897 = vpack.c.bf16 %v3885, %v3883
        %v3898 = vpack.c.bf16 %v3886, %v3884
        %v3899 = vpack.c.bf16 %v3889, %v3887
        %v3900 = vpack.c.bf16 %v3890, %v3888
        %v3901 = vpack.c.bf16 %v3893, %v3891
        %v3902 = vpack.c.bf16 %v3894, %v3892
        %v3903 = vld [vmem:[#allocation12] sm:$0xf]
        %v3904 = vld [vmem:[#allocation12 + $0x4] sm:$0xf]
        %v3905 = vld [vmem:[#allocation12 + $0x8] sm:$0xf]
        %v3906 = vld [vmem:[#allocation12 + $0xc] sm:$0xf]
        %v3907 = vld [vmem:[#allocation12 + $0x10] sm:$0xf]
        %v3908 = vld [vmem:[#allocation12 + $0x14] sm:$0xf]
        %v3909 = vld [vmem:[#allocation12 + $0x18] sm:$0xf]
        %v3910 = vld [vmem:[#allocation12 + $0x1c] sm:$0xf]
        %v3911 = vld [vmem:[#allocation12 + $0x20] sm:$0xf]
        %v3912 = vld [vmem:[#allocation12 + $0x24] sm:$0xf]
        %v3913 = vld [vmem:[#allocation12 + $0x28] sm:$0xf]
        %v3914 = vld [vmem:[#allocation12 + $0x2c] sm:$0xf]
        %v3915 = vld [vmem:[#allocation12 + $0x30] sm:$0xf]
        %v3916 = vld [vmem:[#allocation12 + $0x34] sm:$0xf]
        %v3917 = vld [vmem:[#allocation12 + $0x38] sm:$0xf]
        %v3918 = vld [vmem:[#allocation12 + $0x3c] sm:$0xf]
        %v3919 = vld [vmem:[#allocation12 + $0x40] sm:$0xf]
        %v3920 = vld [vmem:[#allocation12 + $0x44] sm:$0xf]
        %v3921 = vld [vmem:[#allocation12 + $0x48] sm:$0xf]
        %v3922 = vld [vmem:[#allocation12 + $0x4c] sm:$0xf]
        %v3923 = vld [vmem:[#allocation12 + $0x50] sm:$0xf]
        %v3924 = vld [vmem:[#allocation12 + $0x54] sm:$0xf]
        %v3925 = vld [vmem:[#allocation12 + $0x58] sm:$0xf]
        %v3926 = vld [vmem:[#allocation12 + $0x5c] sm:$0xf]
        %v3927 = vld [vmem:[#allocation12 + $0x60] sm:$0xf]
        %v3928 = vld [vmem:[#allocation12 + $0x64] sm:$0xf]
        %v3929 = vld [vmem:[#allocation12 + $0x68] sm:$0xf]
        %v3930 = vld [vmem:[#allocation12 + $0x6c] sm:$0xf]
        %v3931 = vld [vmem:[#allocation12 + $0x70] sm:$0xf]
        %v3932 = vld [vmem:[#allocation12 + $0x74] sm:$0xf]
        %v3933 = vld [vmem:[#allocation12 + $0x78] sm:$0xf]
        %v3934 = vld [vmem:[#allocation12 + $0x7c] sm:$0xf]
        %v3935 = vld [vmem:[%s7 + $0x4] sm:$0x1]
        %v3937 = vperm.slane %v3935, 0
        %v3971 = vunpack.c.l.b16 %v3903
        %v3972 = vunpack.c.l.b16 %v3904
        %v3973 = vunpack.c.l.b16 %v3905
        %v3974 = vunpack.c.l.b16 %v3906
        %v3975 = vunpack.c.l.b16 %v3907
        %v3976 = vunpack.c.l.b16 %v3908
        %v3977 = vunpack.c.l.b16 %v3909
        %v3978 = vunpack.c.l.b16 %v3910
        %v3979 = vunpack.c.l.b16 %v3911
        %v3980 = vunpack.c.l.b16 %v3912
        %v3981 = vunpack.c.l.b16 %v3913
        %v3982 = vunpack.c.l.b16 %v3914
        %v3983 = vunpack.c.l.b16 %v3915
        %v3984 = vunpack.c.l.b16 %v3916
        %v3985 = vunpack.c.l.b16 %v3917
        %v3986 = vunpack.c.l.b16 %v3918
        %v3987 = vunpack.c.l.b16 %v3919
        %v3988 = vunpack.c.l.b16 %v3920
        %v3989 = vunpack.c.l.b16 %v3921
        %v3990 = vunpack.c.l.b16 %v3922
        %v3991 = vunpack.c.l.b16 %v3923
        %v3992 = vunpack.c.l.b16 %v3924
        %v3993 = vunpack.c.l.b16 %v3925
        %v3994 = vunpack.c.l.b16 %v3926
        %v3995 = vunpack.c.l.b16 %v3927
        %v3996 = vunpack.c.l.b16 %v3928
        %v3997 = vunpack.c.l.b16 %v3929
        %v3998 = vunpack.c.l.b16 %v3930
        %v3999 = vunpack.c.l.b16 %v3931
        %v4000 = vunpack.c.l.b16 %v3932
        %v4001 = vunpack.c.l.b16 %v3933
        %v4002 = vunpack.c.l.b16 %v3934
        %v4003 = vpack.c.b16 %v3972, %v3971
        %v4004 = vpack.c.b16 %v3974, %v3973
        %v4005 = vpack.c.b16 %v3976, %v3975
        %v4006 = vpack.c.b16 %v3978, %v3977
        %v4007 = vpack.c.b16 %v3980, %v3979
        %v4008 = vpack.c.b16 %v3982, %v3981
        %v4009 = vpack.c.b16 %v3984, %v3983
        %v4010 = vpack.c.b16 %v3986, %v3985
        %v4011 = vpack.c.b16 %v3988, %v3987
        %v4012 = vpack.c.b16 %v3990, %v3989
        %v4013 = vpack.c.b16 %v3992, %v3991
        %v4014 = vpack.c.b16 %v3994, %v3993
        %v4015 = vpack.c.b16 %v3996, %v3995
        %v4016 = vpack.c.b16 %v3998, %v3997
        %v4017 = vpack.c.b16 %v4000, %v3999
        %v4018 = vpack.c.b16 %v4002, %v4001
        %4035 = vmatpush.bf16.msra.mxu0 %v4010
        %4036 = vmatpush.bf16.msra.mxu0 %v4009
        %4037 = vmatpush.bf16.msra.mxu0 %v4008
        %4038 = vmatpush.bf16.msra.mxu0 %v4007
        %4039 = vmatpush.bf16.msra.mxu0 %v4006
        %4040 = vmatpush.bf16.msra.mxu0 %v4005
        %4041 = vmatpush.bf16.msra.mxu0 %v4004
        %4042 = vmatpush.bf16.msra.mxu0 %v4003
        %4043 = vmatmul.bf16.gmra.mxu0 %v3895
        %v4044 = vpop.f32.mrf.mxu0
        %v4045 = vadd.f32 %v3937, %v4044
        %v4046 = vpop.f32.mrf.mxu0
        %v4047 = vadd.f32 %v3937, %v4046
        %4048 = vmatmul.bf16.gmra.mxu0 %v3897
        %v4049 = vpop.f32.mrf.mxu0
        %v4050 = vadd.f32 %v3937, %v4049
        %v4051 = vpop.f32.mrf.mxu0
        %v4052 = vadd.f32 %v3937, %v4051
        %4053 = vmatmul.bf16.gmra.mxu0 %v3899
        %v4054 = vpop.f32.mrf.mxu0
        %v4055 = vadd.f32 %v3937, %v4054
        %v4056 = vpop.f32.mrf.mxu0
        %v4057 = vadd.f32 %v3937, %v4056
        %4058 = vmatmul.bf16.gmra.mxu0 %v3901
        %v4059 = vpop.f32.mrf.mxu0
        %v4060 = vadd.f32 %v3937, %v4059
        %v4061 = vpop.f32.mrf.mxu0
        %v4062 = vadd.f32 %v3937, %v4061
        %4063 = vdwg.mxu0
        %4064 = vmatpush.bf16.msra.mxu0 %v4018
        %4065 = vmatpush.bf16.msra.mxu0 %v4017
        %4066 = vmatpush.bf16.msra.mxu0 %v4016
        %4067 = vmatpush.bf16.msra.mxu0 %v4015
        %4068 = vmatpush.bf16.msra.mxu0 %v4014
        %4069 = vmatpush.bf16.msra.mxu0 %v4013
        %4070 = vmatpush.bf16.msra.mxu0 %v4012
        %4071 = vmatpush.bf16.msra.mxu0 %v4011
        %4072 = vmatmul.bf16.gmra.mxu0 %v3896
        %v4073 = vpop.f32.mrf.mxu0
        %v4074 = vadd.f32 %v4045, %v4073
        %v4075 = vpop.f32.mrf.mxu0
        %v4076 = vadd.f32 %v4047, %v4075
        %4077 = vmatmul.bf16.gmra.mxu0 %v3898
        %v4078 = vpop.f32.mrf.mxu0
        %v4079 = vadd.f32 %v4050, %v4078
        %v4080 = vpop.f32.mrf.mxu0
        %v4081 = vadd.f32 %v4052, %v4080
        %4082 = vmatmul.bf16.gmra.mxu0 %v3900
        %v4083 = vpop.f32.mrf.mxu0
        %v4084 = vadd.f32 %v4055, %v4083
        %v4085 = vpop.f32.mrf.mxu0
        %v4086 = vadd.f32 %v4057, %v4085
        %4087 = vmatmul.bf16.gmra.mxu0 %v3902
        %v4088 = vpop.f32.mrf.mxu0
        %v4089 = vadd.f32 %v4060, %v4088
        %v4090 = vpop.f32.mrf.mxu0
        %v4091 = vadd.f32 %v4062, %v4090
        %4092 = vdwg.mxu0
        %4093 = vst [vmem:[%s455] sm:$0xff] %v4074
        %4094 = vst [vmem:[%s455 + $0x8] sm:$0xff] %v4076
        %4095 = vst [vmem:[%s455 + $0x10] sm:$0xff] %v4079
        %4096 = vst [vmem:[%s455 + $0x18] sm:$0xff] %v4081
        %4097 = vst [vmem:[%s455 + $0x20] sm:$0xff] %v4084
        %4098 = vst [vmem:[%s455 + $0x28] sm:$0xff] %v4086
        %4099 = vst [vmem:[%s455 + $0x30] sm:$0xff] %v4089
        %4100 = vst [vmem:[%s455 + $0x38] sm:$0xff] %v4091
        %s4101 = smul.u32 8, %s27
        %p4102 = scmp.lt.s32.totalorder %s4101, 15
        %s4103 = scalar_select %p4102, %s4101, 15
        %s4104 = smul.addr %s4103, 8
        %s4105 = scalar_lea.vmem %s8, %s4104
        // Predicated region
        $region81: #{vqa_forward.1} parent=51 // pred_check
          %p4106 = pneg %p223
        $region82: #{vqa_forward.1} parent=51 // pred_check_branch
          %4108 = sbr.rel (%p4106) target = $region84
        $region83: #{vqa_forward.1} parent=51 // pred_region
          %s4109 = smul.u32 8, %s27
        $region84: #{vqa_forward.1} parent=51 // pred_fallthru
          _
      $region52: #{vqa_forward.1} parent=5 // pred_fallthru
        _
      %p4110 = scmp.le.s32.totalorder 2, %s22
      // Predicated region
      $region85: #{vqa_forward.1} parent=5 // pred_check
        %p4111 = pneg %p4110
      $region86: #{vqa_forward.1} parent=5 // pred_check_branch
        %4113 = sbr.rel (%p4111) target = $region88
      $region87: #{vqa_forward.1} parent=5 // pred_region
        %s4114 = ssub.s32 %s22, 2
        // Predicated region
        $region89: #{vqa_forward.1} parent=87 // pred_check
          %p4115 = pneg %p229
        $region90: #{vqa_forward.1} parent=87 // pred_check_branch
          %4117 = sbr.rel (%p4115) target = $region92
        $region91: #{vqa_forward.1} parent=87 // pred_region
          %s4118 = smul.u32 8, %s28
          %p4119 = scmp.lt.s32.totalorder %s4118, 15
          %s4120 = scalar_select %p4119, %s4118, 15
          %s4121 = smul.addr %s4120, 8
          %s4122 = scalar_lea.vmem %s8, %s4121
        $region92: #{vqa_forward.1} parent=87 // pred_fallthru
          _
      $region88: #{vqa_forward.1} parent=5 // pred_fallthru
        _
    $region6: #{vqa_forward.1} parent=1 // loop_footer
      %s26 = sadd.s32 1, %s22
    $region7: #{vqa_forward.1} parent=1 // loop_footer_branch
      %21 = sbr.rel target = $region3
    $region8: #{vqa_forward.1} parent=1 // loop_exit
      _
    %4123 = vsyncpa [#allocation3], 1
    %s4124 = scalar_lea.sflag [#allocation3], 1
    %4125 = vsyncpa %s4124, 1
    %4126 = vsyncpa [#allocation5], 1
    %s4127 = scalar_lea.sflag [#allocation5], 1
    %4128 = vsyncpa %s4127, 1
    %4129 = vsyncpa [#allocation8], 1
    %4130 = vsyncpa [#allocation11], 1

</llo_original>
